<compile_context>
chip_gen: v6e
topology: v6e:2x2x1
jax: 0.10.0
libtpu: 0.0.40
codegen_flags: <defaults>
</compile_context>

<pallas_src>
import math
from functools import partial

import jax
import jax.numpy as jnp
from jax.experimental import pallas as pl
from jax.experimental.pallas import tpu as pltpu


def _transformer_block_kernel(
    x_ref,     # (1, L, D)  f32   full sequence of x for this batch element
    g1_ref,    # (1, D)     f32   RMSNorm gain (pre-attention)
    wq_ref,    # (D, D)     bf16  Q projection
    wkv_ref,   # (D, 2D)    bf16  fused K|V projection
    wo_ref,    # (D, D)     bf16  output projection
    g2_ref,    # (1, D)     f32   RMSNorm gain (pre-FFN)
    w12_ref,   # (D, 2Dh)   bf16  fused SwiGLU gate|up projection
    w3_ref,    # (Dh, D)    bf16  SwiGLU down projection
    o_ref,     # (1, TL, D) f32   output tile
    kv_scr,    # (L, 2D)    bf16  VMEM scratch: K|V for the whole sequence
    *,
    n_heads: int,
    eps: float,
    tl: int,
    tkv: int,
):
    f32, bf16 = jnp.float32, jnp.bfloat16
    L, D = x_ref.shape[1], x_ref.shape[2]
    H = n_heads
    dh = D // H
    inv_scale = 1.0 / math.sqrt(float(dh))   # torch: scores / sqrt(d_model / n_heads)

    g1 = g1_ref[...].astype(f32)             # (1, D)
    g2 = g2_ref[...].astype(f32)             # (1, D)

    def rmsnorm(z, g):
        ms = jnp.mean(z * z, axis=-1, keepdims=True)
        return z * jax.lax.rsqrt(ms + eps) * g

    # ---- K/V path hoisted out of the L-tile loop: computed once per batch ----
    @pl.when(pl.program_id(1) == 0)
    def _compute_kv():
        xf = x_ref[0].astype(f32)                                       # (L, D)
        xnf = rmsnorm(xf, g1).astype(bf16)
        kv = jnp.dot(xnf, wkv_ref[...], preferred_element_type=f32)     # (L, 2D)
        kv_scr[...] = kv.astype(bf16)

    # ---- Per-query-tile work ----
    row0 = pl.multiple_of(pl.program_id(1) * tl, tl)
    xq = x_ref[0, pl.ds(row0, tl), :].astype(f32)                       # (TL, D)

    xnq = rmsnorm(xq, g1).astype(bf16)
    # Softmax scale folded into q in f32 before the bf16 cast.
    q = jnp.dot(xnq, wq_ref[...], preferred_element_type=f32) * inv_scale  # (TL, D)

    n_chunks = L // tkv
    ctx_heads = []
    # TODO(synk): for large H * (L/tkv), convert these unrolled Python loops
    # into lax.fori_loop / an extra "arbitrary" grid axis to bound code size.
    for h in range(H):
        qh = q[:, h * dh:(h + 1) * dh].astype(bf16)                     # (TL, dh)
        m = jnp.full((tl, 1), -1e30, dtype=f32)
        lsum = jnp.zeros((tl, 1), dtype=f32)
        acc = jnp.zeros((tl, dh), dtype=f32)
        for c in range(n_chunks):                 # online softmax over KV chunks
            r0, r1 = c * tkv, (c + 1) * tkv
            kc = kv_scr[r0:r1, h * dh:(h + 1) * dh]                     # (tkv, dh) bf16
            vc = kv_scr[r0:r1, D + h * dh:D + (h + 1) * dh]             # (tkv, dh) bf16
            # q @ k^T without a materialized transpose (contract dh on both).
            s = jax.lax.dot_general(qh, kc, (((1,), (1,)), ((), ())),
                                    preferred_element_type=f32)          # (TL, tkv)
            m_new = jnp.maximum(m, jnp.max(s, axis=-1, keepdims=True))
            alpha = jnp.exp(m - m_new)
            p = jnp.exp(s - m_new)
            lsum = alpha * lsum + jnp.sum(p, axis=-1, keepdims=True)
            acc = alpha * acc + jnp.dot(p.astype(bf16), vc,
                                        preferred_element_type=f32)
            m = m_new
        # EUP reciprocal (off the VALU).
        ctx_heads.append(acc * pl.reciprocal(lsum, approx=True))
    attn = jnp.concatenate(ctx_heads, axis=-1).astype(bf16)             # (TL, D)
    attn = jnp.dot(attn, wo_ref[...], preferred_element_type=f32)       # (TL, D)

    # ---- First residual ----
    x1 = xq + attn

    # ---- RMSNorm (pre-FFN) + fused SwiGLU ----
    x1n = rmsnorm(x1, g2).astype(bf16)
    gu = jnp.dot(x1n, w12_ref[...], preferred_element_type=f32)         # (TL, 2*Dh)
    Dh = gu.shape[-1] // 2
    gate = gu[:, :Dh]
    up = gu[:, Dh:]
    hidden = (gate * jax.nn.sigmoid(gate) * up).astype(bf16)
    ffn = jnp.dot(hidden, w3_ref[...], preferred_element_type=f32)      # (TL, D)

    # ---- Second residual ----
    o_ref[0] = (x1 + ffn).astype(o_ref.dtype)


def _vmem_budget_bytes() -> int:
    """Generation-aware VMEM budget (v7x: 64 MiB/TC; v5e/v6e: 128 MiB)."""
    try:
        info = pltpu.get_tpu_info()
        cap = int(getattr(info, "vmem_capacity_bytes", 0) or 0)
        if cap > 0:
            return (cap * 3) // 4          # headroom for Mosaic internals
    except Exception:
        pass
    return 48 * 1024 * 1024                # conservative default that fits v7x


def _vmem_need_bytes(L, D, Dh, tl, tkv, single_buffer_weights):
    wbytes = 2 * (D * D + D * 2 * D + D * D + D * 2 * Dh + Dh * D)      # bf16 weights
    if not single_buffer_weights:
        wbytes *= 2                                                      # double-buffered
    x_blk = 2 * L * D * 4                  # double-buffered (1, L, D) f32 input
    o_blk = 2 * tl * D * 4                 # double-buffered (1, TL, D) f32 output
    kv = L * 2 * D * 2                     # bf16 KV scratch
    tmp = 4 * (tl * 2 * Dh + tl * tkv + 4 * tl * D)   # in-kernel f32 temporaries
    return wbytes + x_blk + o_blk + kv + tmp + (4 << 20)


def transformer_block(x, params, *, n_heads: int, eps: float = 1e-6,
                      tl=None, tkv=None):
    """x: (B, L, D) float32. params: bf16 weights + f32 gains (see init_params)."""
    B, L, D = x.shape
    Dh = params["w3"].shape[0]
    assert D % n_heads == 0

    budget = _vmem_budget_bytes()

    def _divisors(cands):
        out = [c for c in cands if c <= L and L % c == 0]
        return out if out else [L]

    tl_cands = [tl] if tl is not None else _divisors((256, 128, 64, 32, 16, 8))
    tkv_cands = [tkv] if tkv is not None else _divisors((512, 256, 128, 64, 32, 16, 8))
    tl, tkv = tl_cands[-1], tkv_cands[-1]
    for c_tl in tl_cands:                  # largest tiles that fit the VMEM budget
        for c_tkv in tkv_cands:
            if _vmem_need_bytes(L, D, Dh, c_tl, c_tkv, True) <= budget:
                tl, tkv = c_tl, c_tkv
                break
        else:
            continue
        break
    assert L % tl == 0 and L % tkv == 0

    need = _vmem_need_bytes(L, D, Dh, tl, tkv, True)
    vmem_limit = int(min(budget, max(need, 16 * 1024 * 1024)))

    kernel = partial(_transformer_block_kernel, n_heads=n_heads, eps=eps, tl=tl, tkv=tkv)
    args = (x, params["g1"], params["wq"], params["wkv"], params["wo"],
            params["g2"], params["w12"], params["w3"])

    def _build(single_buffer_weights: bool):
        if single_buffer_weights:
            # Constant-index weights: single-buffered (no VMEM duplication).
            w_spec = lambda s: pl.BlockSpec(s, lambda b, l: (0, 0),
                                            pipeline_mode=pl.Buffered(buffer_count=1))
        else:
            w_spec = lambda s: pl.BlockSpec(s, lambda b, l: (0, 0))
        return pl.pallas_call(
            kernel,
            out_shape=jax.ShapeDtypeStruct((B, L, D), jnp.float32),
            grid=(B, L // tl),
            in_specs=[
                pl.BlockSpec((1, L, D), lambda b, l: (b, 0, 0)),  # x: full seq per batch
                w_spec((1, D)),          # rmsnorm1 gain
                w_spec((D, D)),          # Wq
                w_spec((D, 2 * D)),      # Wk|Wv fused
                w_spec((D, D)),          # Wo
                w_spec((1, D)),          # rmsnorm2 gain
                w_spec((D, 2 * Dh)),     # W1|W2 fused
                w_spec((Dh, D)),         # W3
            ],
            out_specs=pl.BlockSpec((1, tl, D), lambda b, l: (b, l, 0)),
            scratch_shapes=[pltpu.VMEM((L, 2 * D), jnp.bfloat16)],
            compiler_params=pltpu.CompilerParams(
                # KV scratch is written at l==0 and reused -> L axis sequential.
                dimension_semantics=("parallel", "arbitrary"),
                vmem_limit_bytes=vmem_limit,
            ),
        )

    try:
        out = _build(True)(*args)
        return jax.block_until_ready(out)
    except Exception:
        # Fallback for JAX versions without pipeline_mode=pl.Buffered support.
        out = _build(False)(*args)
        return jax.block_until_ready(out)


def init_params(key, d_model, d_hidden):
    ks = jax.random.split(key, 7)
    std = 0.02
    n = lambda k, s: (std * jax.random.normal(k, s, jnp.float32)).astype(jnp.bfloat16)
    wq = n(ks[0], (d_model, d_model))
    wk = n(ks[1], (d_model, d_model))
    wv = n(ks[2], (d_model, d_model))
    wo = n(ks[3], (d_model, d_model))
    w1 = n(ks[4], (d_model, d_hidden))
    w2 = n(ks[5], (d_model, d_hidden))
    w3 = n(ks[6], (d_hidden, d_model))
    return {
        "g1": jnp.ones((1, d_model), jnp.float32),
        "g2": jnp.ones((1, d_model), jnp.float32),
        "wq": wq,
        "wkv": jnp.concatenate([wk, wv], axis=1),   # (D, 2D)  bf16
        "wo": wo,
        "w12": jnp.concatenate([w1, w2], axis=1),   # (D, 2Dh) bf16
        "w3": w3,
    }


def reference_block(x, p, *, n_heads, eps=1e-6):
    """Plain-JAX f32 reference mirroring the PyTorch forward (dropout=identity)."""
    B, L, D = x.shape
    dh = D // n_heads
    Dh = p["w3"].shape[0]
    f32 = lambda a: jnp.asarray(a, jnp.float32)
    wq, wkv, wo = f32(p["wq"]), f32(p["wkv"]), f32(p["wo"])
    w12, w3 = f32(p["w12"]), f32(p["w3"])
    wk, wv = wkv[:, :D], wkv[:, D:]
    w1, w2 = w12[:, :Dh], w12[:, Dh:]

    def rms(z, g):
        return z * jax.lax.rsqrt(jnp.mean(z * z, -1, keepdims=True) + eps) * g

    xn = rms(x, p["g1"])
    q = (xn @ wq).reshape(B, L, n_heads, dh).transpose(0, 2, 1, 3)
    k = (xn @ wk).reshape(B, L, n_heads, dh).transpose(0, 2, 1, 3)
    v = (xn @ wv).reshape(B, L, n_heads, dh).transpose(0, 2, 1, 3)
    s = jnp.einsum("bnld,bnmd->bnlm", q, k) / math.sqrt(dh)
    a = jax.nn.softmax(s, axis=-1)
    o = jnp.einsum("bnlm,bnmd->bnld", a, v).transpose(0, 2, 1, 3).reshape(B, L, D)
    x1 = x + o @ wo
    x1n = rms(x1, p["g2"])
    g = x1n @ w1
    h = jax.nn.silu(g) * (x1n @ w2)
    return x1 + h @ w3


if __name__ == "__main__":
    B, L, D, H = 2, 8, 32, 4
    # TODO(synk): SwiGLU's default d_hidden is not specified in the source; using 2*d_model.
    DH = 2 * D

    key = jax.random.PRNGKey(0)
    kx, kp = jax.random.split(key)
    x = jax.random.normal(kx, (B, L, D), jnp.float32)
    params = init_params(kp, D, DH)

    out = transformer_block(x, params, n_heads=H)
    out = jax.block_until_ready(out)

    ref = reference_block(x, params, n_heads=H)
    assert out.shape == (B, L, D)
    err = float(jnp.max(jnp.abs(out - ref)))
    # bf16 matmul operands + approximate reciprocal => loosened tolerance.
    assert jnp.allclose(out, ref, atol=2e-2, rtol=2e-2), err

    print("KERNEL_OK")
</pallas_src>

<mosaic_0001>
module attributes {stable_mosaic.version = 11 : i64} {
  func.func @_transformer_block_kernel(%arg0: i32, %arg1: i32, %arg2: memref<1x8x32xf32, #tpu.memory_space<vmem>>, %arg3: memref<1x32xf32, #tpu.memory_space<vmem>>, %arg4: memref<32x32xbf16, #tpu.memory_space<vmem>>, %arg5: memref<32x64xbf16, #tpu.memory_space<vmem>>, %arg6: memref<32x32xbf16, #tpu.memory_space<vmem>>, %arg7: memref<1x32xf32, #tpu.memory_space<vmem>>, %arg8: memref<32x128xbf16, #tpu.memory_space<vmem>>, %arg9: memref<64x32xbf16, #tpu.memory_space<vmem>>, %arg10: memref<1x8x32xf32, #tpu.memory_space<vmem>>, %arg11: memref<8x64xbf16, #tpu.memory_space<vmem>>) attributes {dimension_semantics = [#tpu.dimension_semantics<parallel>, #tpu.dimension_semantics<arbitrary>], iteration_bounds = array<i64: 2, 1>, scalar_prefetch = 0 : i64, scratch_operands = 1 : i64, tpu.core_type = #tpu.core_type<tc>, window_params = [{transform_indices = @transform_0, window_bounds = array<i64: 1, 8, 32>}, {pipeline_mode = #tpu.pipeline_mode<synchronous>, transform_indices = @transform_1, window_bounds = array<i64: 1, 32>}, {pipeline_mode = #tpu.pipeline_mode<synchronous>, transform_indices = @transform_2, window_bounds = array<i64: 32, 32>}, {pipeline_mode = #tpu.pipeline_mode<synchronous>, transform_indices = @transform_3, window_bounds = array<i64: 32, 64>}, {pipeline_mode = #tpu.pipeline_mode<synchronous>, transform_indices = @transform_4, window_bounds = array<i64: 32, 32>}, {pipeline_mode = #tpu.pipeline_mode<synchronous>, transform_indices = @transform_5, window_bounds = array<i64: 1, 32>}, {pipeline_mode = #tpu.pipeline_mode<synchronous>, transform_indices = @transform_6, window_bounds = array<i64: 32, 128>}, {pipeline_mode = #tpu.pipeline_mode<synchronous>, transform_indices = @transform_7, window_bounds = array<i64: 64, 32>}, {transform_indices = @transform_8, window_bounds = array<i64: 1, 8, 32>}]} {
    %c0 = arith.constant 0 : index
    %c0_0 = arith.constant 0 : index
    %0 = vector.load %arg3[%c0, %c0_0] : memref<1x32xf32, #tpu.memory_space<vmem>>, vector<1x32xf32>
    %c0_1 = arith.constant 0 : index
    %c0_2 = arith.constant 0 : index
    %1 = vector.load %arg7[%c0_1, %c0_2] : memref<1x32xf32, #tpu.memory_space<vmem>>, vector<1x32xf32>
    %c0_i32 = arith.constant 0 : i32
    %2 = arith.cmpi eq, %arg1, %c0_i32 : i32
    %3 = arith.extui %2 : i1 to i32
    %c0_i32_3 = arith.constant 0 : i32
    %4 = arith.cmpi ne, %3, %c0_i32_3 : i32
    scf.if %4 {
      %c0_65 = arith.constant 0 : index
      %c0_66 = arith.constant 0 : index
      %c0_67 = arith.constant 0 : index
      %175 = vector.load %arg2[%c0_65, %c0_66, %c0_67] : memref<1x8x32xf32, #tpu.memory_space<vmem>>, vector<1x8x32xf32>
      %176 = vector.shape_cast %175 : vector<1x8x32xf32> to vector<8x32xf32>
      %177 = arith.mulf %176, %176 : vector<8x32xf32>
      %cst_68 = arith.constant dense<0.000000e+00> : vector<8xf32>
      %178 = vector.multi_reduction <add>, %177, %cst_68 [1] : vector<8x32xf32> to vector<8xf32>
      %179 = vector.shape_cast %178 : vector<8xf32> to vector<8x1xf32>
      %cst_69 = arith.constant 3.200000e+01 : f32
      %180 = vector.broadcast %cst_69 : f32 to vector<8x1xf32>
      %181 = arith.divf %179, %180 : vector<8x1xf32>
      %cst_70 = arith.constant 9.99999997E-7 : f32
      %182 = vector.broadcast %cst_70 : f32 to vector<8x1xf32>
      %183 = arith.addf %181, %182 : vector<8x1xf32>
      %184 = math.rsqrt %183 : vector<8x1xf32>
      %185 = vector.broadcast %184 : vector<8x1xf32> to vector<8x32xf32>
      %186 = arith.mulf %176, %185 : vector<8x32xf32>
      %187 = vector.broadcast %0 : vector<1x32xf32> to vector<8x32xf32>
      %188 = arith.mulf %186, %187 : vector<8x32xf32>
      %189 = arith.truncf %188 : vector<8x32xf32> to vector<8x32xbf16>
      %c0_71 = arith.constant 0 : index
      %c0_72 = arith.constant 0 : index
      %190 = vector.load %arg5[%c0_71, %c0_72] : memref<32x64xbf16, #tpu.memory_space<vmem>>, vector<32x64xbf16>
      %cst_73 = arith.constant dense<0.000000e+00> : vector<8x64xf32>
      %191 = tpu.matmul %189, %190, %cst_73 {dimension_numbers = #tpu.dot_dimension_numbers<[1], [0], [0], [1], [0, 0, 1, 1], [], []>} : vector<8x32xbf16>, vector<32x64xbf16>, vector<8x64xf32> -> vector<8x64xf32>
      %192 = arith.truncf %191 : vector<8x64xf32> to vector<8x64xbf16>
      %c0_74 = arith.constant 0 : index
      %c0_75 = arith.constant 0 : index
      %193 = vector.load %arg11[%c0_74, %c0_75] : memref<8x64xbf16, #tpu.memory_space<vmem>>, vector<8x64xbf16>
      tpu.vector_store %arg11[%c0_74, %c0_75], %192 {strides = array<i32>} : memref<8x64xbf16, #tpu.memory_space<vmem>>, vector<8x64xbf16>,
    } else {
    }
    %c8_i32 = arith.constant 8 : i32
    %5 = arith.muli %arg1, %c8_i32 : i32
    %6 = tpu.assume_multiple %5, 8 : i32
    %c0_4 = arith.constant 0 : index
    %7 = arith.index_cast %6 : i32 to index
    %c0_5 = arith.constant 0 : index
    %8 = vector.load %arg2[%c0_4, %7, %c0_5] : memref<1x8x32xf32, #tpu.memory_space<vmem>>, vector<1x8x32xf32>
    %9 = vector.shape_cast %8 : vector<1x8x32xf32> to vector<8x32xf32>
    %10 = arith.mulf %9, %9 : vector<8x32xf32>
    %cst = arith.constant dense<0.000000e+00> : vector<8xf32>
    %11 = vector.multi_reduction <add>, %10, %cst [1] : vector<8x32xf32> to vector<8xf32>
    %12 = vector.shape_cast %11 : vector<8xf32> to vector<8x1xf32>
    %cst_6 = arith.constant 3.200000e+01 : f32
    %13 = vector.broadcast %cst_6 : f32 to vector<8x1xf32>
    %14 = arith.divf %12, %13 : vector<8x1xf32>
    %cst_7 = arith.constant 9.99999997E-7 : f32
    %15 = vector.broadcast %cst_7 : f32 to vector<8x1xf32>
    %16 = arith.addf %14, %15 : vector<8x1xf32>
    %17 = math.rsqrt %16 : vector<8x1xf32>
    %18 = vector.broadcast %17 : vector<8x1xf32> to vector<8x32xf32>
    %19 = arith.mulf %9, %18 : vector<8x32xf32>
    %20 = vector.broadcast %0 : vector<1x32xf32> to vector<8x32xf32>
    %21 = arith.mulf %19, %20 : vector<8x32xf32>
    %22 = arith.truncf %21 : vector<8x32xf32> to vector<8x32xbf16>
    %c0_8 = arith.constant 0 : index
    %c0_9 = arith.constant 0 : index
    %23 = vector.load %arg4[%c0_8, %c0_9] : memref<32x32xbf16, #tpu.memory_space<vmem>>, vector<32x32xbf16>
    %cst_10 = arith.constant dense<0.000000e+00> : vector<8x32xf32>
    %24 = tpu.matmul %22, %23, %cst_10 {dimension_numbers = #tpu.dot_dimension_numbers<[1], [0], [0], [1], [0, 0, 1, 1], [], []>} : vector<8x32xbf16>, vector<32x32xbf16>, vector<8x32xf32> -> vector<8x32xf32>
    %cst_11 = arith.constant 0.353553385 : f32
    %25 = vector.broadcast %cst_11 : f32 to vector<8x32xf32>
    %26 = arith.mulf %24, %25 : vector<8x32xf32>
    %27 = vector.extract_strided_slice %26 {offsets = [0, 0], sizes = [8, 8], strides = [1, 1]} : vector<8x32xf32> to vector<8x8xf32>
    %28 = arith.truncf %27 : vector<8x8xf32> to vector<8x8xbf16>
    %cst_12 = arith.constant -1.000000e+30 : f32
    %29 = vector.broadcast %cst_12 : f32 to vector<8x1xf32>
    %cst_13 = arith.constant 0.000000e+00 : f32
    %30 = vector.broadcast %cst_13 : f32 to vector<8x1xf32>
    %cst_14 = arith.constant 0.000000e+00 : f32
    %31 = vector.broadcast %cst_14 : f32 to vector<8x8xf32>
    %c0_15 = arith.constant 0 : index
    %c0_16 = arith.constant 0 : index
    %32 = vector.load %arg11[%c0_15, %c0_16] : memref<8x64xbf16, #tpu.memory_space<vmem>>, vector<8x8xbf16>
    %c0_17 = arith.constant 0 : index
    %c32 = arith.constant 32 : index
    %33 = vector.load %arg11[%c0_17, %c32] : memref<8x64xbf16, #tpu.memory_space<vmem>>, vector<8x8xbf16>
    %cst_18 = arith.constant dense<0.000000e+00> : vector<8x8xf32>
    %34 = tpu.matmul %28, %32, %cst_18 {dimension_numbers = #tpu.dot_dimension_numbers<[1], [1], [0], [0], [0, 0, 1, 0], [], []>} : vector<8x8xbf16>, vector<8x8xbf16>, vector<8x8xf32> -> vector<8x8xf32>
    %cst_19 = arith.constant dense<0xFF800000> : vector<8xf32>
    %35 = vector.multi_reduction <maximumf>, %34, %cst_19 [1] : vector<8x8xf32> to vector<8xf32>
    %36 = vector.shape_cast %35 : vector<8xf32> to vector<8x1xf32>
    %37 = arith.maximumf %29, %36 : vector<8x1xf32>
    %38 = arith.subf %29, %37 : vector<8x1xf32>
    %39 = math.exp %38 : vector<8x1xf32>
    %40 = vector.broadcast %37 : vector<8x1xf32> to vector<8x8xf32>
    %41 = arith.subf %34, %40 : vector<8x8xf32>
    %42 = math.exp %41 : vector<8x8xf32>
    %43 = arith.mulf %39, %30 : vector<8x1xf32>
    %cst_20 = arith.constant dense<0.000000e+00> : vector<8xf32>
    %44 = vector.multi_reduction <add>, %42, %cst_20 [1] : vector<8x8xf32> to vector<8xf32>
    %45 = vector.shape_cast %44 : vector<8xf32> to vector<8x1xf32>
    %46 = arith.addf %43, %45 : vector<8x1xf32>
    %47 = vector.broadcast %39 : vector<8x1xf32> to vector<8x8xf32>
    %48 = arith.mulf %47, %31 : vector<8x8xf32>
    %49 = arith.truncf %42 : vector<8x8xf32> to vector<8x8xbf16>
    %cst_21 = arith.constant dense<0.000000e+00> : vector<8x8xf32>
    %50 = tpu.matmul %49, %33, %cst_21 {dimension_numbers = #tpu.dot_dimension_numbers<[1], [0], [0], [1], [0, 0, 1, 1], [], []>} : vector<8x8xbf16>, vector<8x8xbf16>, vector<8x8xf32> -> vector<8x8xf32>
    %51 = arith.addf %48, %50 : vector<8x8xf32>
    %52 = tpu.reciprocal %46 {approx = true} : vector<8x1xf32> -> vector<8x1xf32>
    %53 = vector.broadcast %52 : vector<8x1xf32> to vector<8x8xf32>
    %54 = arith.mulf %51, %53 : vector<8x8xf32>
    %55 = vector.extract_strided_slice %26 {offsets = [0, 8], sizes = [8, 8], strides = [1, 1]} : vector<8x32xf32> to vector<8x8xf32>
    %56 = arith.truncf %55 : vector<8x8xf32> to vector<8x8xbf16>
    %cst_22 = arith.constant -1.000000e+30 : f32
    %57 = vector.broadcast %cst_22 : f32 to vector<8x1xf32>
    %cst_23 = arith.constant 0.000000e+00 : f32
    %58 = vector.broadcast %cst_23 : f32 to vector<8x1xf32>
    %cst_24 = arith.constant 0.000000e+00 : f32
    %59 = vector.broadcast %cst_24 : f32 to vector<8x8xf32>
    %c0_25 = arith.constant 0 : index
    %c8 = arith.constant 8 : index
    %60 = vector.load %arg11[%c0_25, %c8] : memref<8x64xbf16, #tpu.memory_space<vmem>>, vector<8x8xbf16>
    %c0_26 = arith.constant 0 : index
    %c40 = arith.constant 40 : index
    %61 = vector.load %arg11[%c0_26, %c40] : memref<8x64xbf16, #tpu.memory_space<vmem>>, vector<8x8xbf16>
    %cst_27 = arith.constant dense<0.000000e+00> : vector<8x8xf32>
    %62 = tpu.matmul %56, %60, %cst_27 {dimension_numbers = #tpu.dot_dimension_numbers<[1], [1], [0], [0], [0, 0, 1, 0], [], []>} : vector<8x8xbf16>, vector<8x8xbf16>, vector<8x8xf32> -> vector<8x8xf32>
    %cst_28 = arith.constant dense<0xFF800000> : vector<8xf32>
    %63 = vector.multi_reduction <maximumf>, %62, %cst_28 [1] : vector<8x8xf32> to vector<8xf32>
    %64 = vector.shape_cast %63 : vector<8xf32> to vector<8x1xf32>
    %65 = arith.maximumf %57, %64 : vector<8x1xf32>
    %66 = arith.subf %57, %65 : vector<8x1xf32>
    %67 = math.exp %66 : vector<8x1xf32>
    %68 = vector.broadcast %65 : vector<8x1xf32> to vector<8x8xf32>
    %69 = arith.subf %62, %68 : vector<8x8xf32>
    %70 = math.exp %69 : vector<8x8xf32>
    %71 = arith.mulf %67, %58 : vector<8x1xf32>
    %cst_29 = arith.constant dense<0.000000e+00> : vector<8xf32>
    %72 = vector.multi_reduction <add>, %70, %cst_29 [1] : vector<8x8xf32> to vector<8xf32>
    %73 = vector.shape_cast %72 : vector<8xf32> to vector<8x1xf32>
    %74 = arith.addf %71, %73 : vector<8x1xf32>
    %75 = vector.broadcast %67 : vector<8x1xf32> to vector<8x8xf32>
    %76 = arith.mulf %75, %59 : vector<8x8xf32>
    %77 = arith.truncf %70 : vector<8x8xf32> to vector<8x8xbf16>
    %cst_30 = arith.constant dense<0.000000e+00> : vector<8x8xf32>
    %78 = tpu.matmul %77, %61, %cst_30 {dimension_numbers = #tpu.dot_dimension_numbers<[1], [0], [0], [1], [0, 0, 1, 1], [], []>} : vector<8x8xbf16>, vector<8x8xbf16>, vector<8x8xf32> -> vector<8x8xf32>
    %79 = arith.addf %76, %78 : vector<8x8xf32>
    %80 = tpu.reciprocal %74 {approx = true} : vector<8x1xf32> -> vector<8x1xf32>
    %81 = vector.broadcast %80 : vector<8x1xf32> to vector<8x8xf32>
    %82 = arith.mulf %79, %81 : vector<8x8xf32>
    %83 = vector.extract_strided_slice %26 {offsets = [0, 16], sizes = [8, 8], strides = [1, 1]} : vector<8x32xf32> to vector<8x8xf32>
    %84 = arith.truncf %83 : vector<8x8xf32> to vector<8x8xbf16>
    %cst_31 = arith.constant -1.000000e+30 : f32
    %85 = vector.broadcast %cst_31 : f32 to vector<8x1xf32>
    %cst_32 = arith.constant 0.000000e+00 : f32
    %86 = vector.broadcast %cst_32 : f32 to vector<8x1xf32>
    %cst_33 = arith.constant 0.000000e+00 : f32
    %87 = vector.broadcast %cst_33 : f32 to vector<8x8xf32>
    %c0_34 = arith.constant 0 : index
    %c16 = arith.constant 16 : index
    %88 = vector.load %arg11[%c0_34, %c16] : memref<8x64xbf16, #tpu.memory_space<vmem>>, vector<8x8xbf16>
    %c0_35 = arith.constant 0 : index
    %c48 = arith.constant 48 : index
    %89 = vector.load %arg11[%c0_35, %c48] : memref<8x64xbf16, #tpu.memory_space<vmem>>, vector<8x8xbf16>
    %cst_36 = arith.constant dense<0.000000e+00> : vector<8x8xf32>
    %90 = tpu.matmul %84, %88, %cst_36 {dimension_numbers = #tpu.dot_dimension_numbers<[1], [1], [0], [0], [0, 0, 1, 0], [], []>} : vector<8x8xbf16>, vector<8x8xbf16>, vector<8x8xf32> -> vector<8x8xf32>
    %cst_37 = arith.constant dense<0xFF800000> : vector<8xf32>
    %91 = vector.multi_reduction <maximumf>, %90, %cst_37 [1] : vector<8x8xf32> to vector<8xf32>
    %92 = vector.shape_cast %91 : vector<8xf32> to vector<8x1xf32>
    %93 = arith.maximumf %85, %92 : vector<8x1xf32>
    %94 = arith.subf %85, %93 : vector<8x1xf32>
    %95 = math.exp %94 : vector<8x1xf32>
    %96 = vector.broadcast %93 : vector<8x1xf32> to vector<8x8xf32>
    %97 = arith.subf %90, %96 : vector<8x8xf32>
    %98 = math.exp %97 : vector<8x8xf32>
    %99 = arith.mulf %95, %86 : vector<8x1xf32>
    %cst_38 = arith.constant dense<0.000000e+00> : vector<8xf32>
    %100 = vector.multi_reduction <add>, %98, %cst_38 [1] : vector<8x8xf32> to vector<8xf32>
    %101 = vector.shape_cast %100 : vector<8xf32> to vector<8x1xf32>
    %102 = arith.addf %99, %101 : vector<8x1xf32>
    %103 = vector.broadcast %95 : vector<8x1xf32> to vector<8x8xf32>
    %104 = arith.mulf %103, %87 : vector<8x8xf32>
    %105 = arith.truncf %98 : vector<8x8xf32> to vector<8x8xbf16>
    %cst_39 = arith.constant dense<0.000000e+00> : vector<8x8xf32>
    %106 = tpu.matmul %105, %89, %cst_39 {dimension_numbers = #tpu.dot_dimension_numbers<[1], [0], [0], [1], [0, 0, 1, 1], [], []>} : vector<8x8xbf16>, vector<8x8xbf16>, vector<8x8xf32> -> vector<8x8xf32>
    %107 = arith.addf %104, %106 : vector<8x8xf32>
    %108 = tpu.reciprocal %102 {approx = true} : vector<8x1xf32> -> vector<8x1xf32>
    %109 = vector.broadcast %108 : vector<8x1xf32> to vector<8x8xf32>
    %110 = arith.mulf %107, %109 : vector<8x8xf32>
    %111 = vector.extract_strided_slice %26 {offsets = [0, 24], sizes = [8, 8], strides = [1, 1]} : vector<8x32xf32> to vector<8x8xf32>
    %112 = arith.truncf %111 : vector<8x8xf32> to vector<8x8xbf16>
    %cst_40 = arith.constant -1.000000e+30 : f32
    %113 = vector.broadcast %cst_40 : f32 to vector<8x1xf32>
    %cst_41 = arith.constant 0.000000e+00 : f32
    %114 = vector.broadcast %cst_41 : f32 to vector<8x1xf32>
    %cst_42 = arith.constant 0.000000e+00 : f32
    %115 = vector.broadcast %cst_42 : f32 to vector<8x8xf32>
    %c0_43 = arith.constant 0 : index
    %c24 = arith.constant 24 : index
    %116 = vector.load %arg11[%c0_43, %c24] : memref<8x64xbf16, #tpu.memory_space<vmem>>, vector<8x8xbf16>
    %c0_44 = arith.constant 0 : index
    %c56 = arith.constant 56 : index
    %117 = vector.load %arg11[%c0_44, %c56] : memref<8x64xbf16, #tpu.memory_space<vmem>>, vector<8x8xbf16>
    %cst_45 = arith.constant dense<0.000000e+00> : vector<8x8xf32>
    %118 = tpu.matmul %112, %116, %cst_45 {dimension_numbers = #tpu.dot_dimension_numbers<[1], [1], [0], [0], [0, 0, 1, 0], [], []>} : vector<8x8xbf16>, vector<8x8xbf16>, vector<8x8xf32> -> vector<8x8xf32>
    %cst_46 = arith.constant dense<0xFF800000> : vector<8xf32>
    %119 = vector.multi_reduction <maximumf>, %118, %cst_46 [1] : vector<8x8xf32> to vector<8xf32>
    %120 = vector.shape_cast %119 : vector<8xf32> to vector<8x1xf32>
    %121 = arith.maximumf %113, %120 : vector<8x1xf32>
    %122 = arith.subf %113, %121 : vector<8x1xf32>
    %123 = math.exp %122 : vector<8x1xf32>
    %124 = vector.broadcast %121 : vector<8x1xf32> to vector<8x8xf32>
    %125 = arith.subf %118, %124 : vector<8x8xf32>
    %126 = math.exp %125 : vector<8x8xf32>
    %127 = arith.mulf %123, %114 : vector<8x1xf32>
    %cst_47 = arith.constant dense<0.000000e+00> : vector<8xf32>
    %128 = vector.multi_reduction <add>, %126, %cst_47 [1] : vector<8x8xf32> to vector<8xf32>
    %129 = vector.shape_cast %128 : vector<8xf32> to vector<8x1xf32>
    %130 = arith.addf %127, %129 : vector<8x1xf32>
    %131 = vector.broadcast %123 : vector<8x1xf32> to vector<8x8xf32>
    %132 = arith.mulf %131, %115 : vector<8x8xf32>
    %133 = arith.truncf %126 : vector<8x8xf32> to vector<8x8xbf16>
    %cst_48 = arith.constant dense<0.000000e+00> : vector<8x8xf32>
    %134 = tpu.matmul %133, %117, %cst_48 {dimension_numbers = #tpu.dot_dimension_numbers<[1], [0], [0], [1], [0, 0, 1, 1], [], []>} : vector<8x8xbf16>, vector<8x8xbf16>, vector<8x8xf32> -> vector<8x8xf32>
    %135 = arith.addf %132, %134 : vector<8x8xf32>
    %136 = tpu.reciprocal %130 {approx = true} : vector<8x1xf32> -> vector<8x1xf32>
    %137 = vector.broadcast %136 : vector<8x1xf32> to vector<8x8xf32>
    %138 = arith.mulf %135, %137 : vector<8x8xf32>
    %139 = tpu.concatenate %54, %82, %110, %138 in 1 : vector<8x8xf32>, vector<8x8xf32>, vector<8x8xf32>, vector<8x8xf32> -> vector<8x32xf32>
    %140 = arith.truncf %139 : vector<8x32xf32> to vector<8x32xbf16>
    %c0_49 = arith.constant 0 : index
    %c0_50 = arith.constant 0 : index
    %141 = vector.load %arg6[%c0_49, %c0_50] : memref<32x32xbf16, #tpu.memory_space<vmem>>, vector<32x32xbf16>
    %cst_51 = arith.constant dense<0.000000e+00> : vector<8x32xf32>
    %142 = tpu.matmul %140, %141, %cst_51 {dimension_numbers = #tpu.dot_dimension_numbers<[1], [0], [0], [1], [0, 0, 1, 1], [], []>} : vector<8x32xbf16>, vector<32x32xbf16>, vector<8x32xf32> -> vector<8x32xf32>
    %143 = arith.addf %9, %142 : vector<8x32xf32>
    %144 = arith.mulf %143, %143 : vector<8x32xf32>
    %cst_52 = arith.constant dense<0.000000e+00> : vector<8xf32>
    %145 = vector.multi_reduction <add>, %144, %cst_52 [1] : vector<8x32xf32> to vector<8xf32>
    %146 = vector.shape_cast %145 : vector<8xf32> to vector<8x1xf32>
    %cst_53 = arith.constant 3.200000e+01 : f32
    %147 = vector.broadcast %cst_53 : f32 to vector<8x1xf32>
    %148 = arith.divf %146, %147 : vector<8x1xf32>
    %cst_54 = arith.constant 9.99999997E-7 : f32
    %149 = vector.broadcast %cst_54 : f32 to vector<8x1xf32>
    %150 = arith.addf %148, %149 : vector<8x1xf32>
    %151 = math.rsqrt %150 : vector<8x1xf32>
    %152 = vector.broadcast %151 : vector<8x1xf32> to vector<8x32xf32>
    %153 = arith.mulf %143, %152 : vector<8x32xf32>
    %154 = vector.broadcast %1 : vector<1x32xf32> to vector<8x32xf32>
    %155 = arith.mulf %153, %154 : vector<8x32xf32>
    %156 = arith.truncf %155 : vector<8x32xf32> to vector<8x32xbf16>
    %c0_55 = arith.constant 0 : index
    %c0_56 = arith.constant 0 : index
    %157 = vector.load %arg8[%c0_55, %c0_56] : memref<32x128xbf16, #tpu.memory_space<vmem>>, vector<32x128xbf16>
    %cst_57 = arith.constant dense<0.000000e+00> : vector<8x128xf32>
    %158 = tpu.matmul %156, %157, %cst_57 {dimension_numbers = #tpu.dot_dimension_numbers<[1], [0], [0], [1], [0, 0, 1, 1], [], []>} : vector<8x32xbf16>, vector<32x128xbf16>, vector<8x128xf32> -> vector<8x128xf32>
    %159 = vector.extract_strided_slice %158 {offsets = [0, 0], sizes = [8, 64], strides = [1, 1]} : vector<8x128xf32> to vector<8x64xf32>
    %160 = vector.extract_strided_slice %158 {offsets = [0, 64], sizes = [8, 64], strides = [1, 1]} : vector<8x128xf32> to vector<8x64xf32>
    %161 = arith.negf %159 : vector<8x64xf32>
    %162 = math.exp %161 : vector<8x64xf32>
    %cst_58 = arith.constant 1.000000e+00 : f32
    %163 = vector.broadcast %cst_58 : f32 to vector<8x64xf32>
    %164 = arith.addf %163, %162 : vector<8x64xf32>
    %165 = arith.divf %163, %164 : vector<8x64xf32>
    %166 = arith.mulf %159, %165 : vector<8x64xf32>
    %167 = arith.mulf %166, %160 : vector<8x64xf32>
    %168 = arith.truncf %167 : vector<8x64xf32> to vector<8x64xbf16>
    %c0_59 = arith.constant 0 : index
    %c0_60 = arith.constant 0 : index
    %169 = vector.load %arg9[%c0_59, %c0_60] : memref<64x32xbf16, #tpu.memory_space<vmem>>, vector<64x32xbf16>
    %cst_61 = arith.constant dense<0.000000e+00> : vector<8x32xf32>
    %170 = tpu.matmul %168, %169, %cst_61 {dimension_numbers = #tpu.dot_dimension_numbers<[1], [0], [0], [1], [0, 0, 1, 1], [], []>} : vector<8x64xbf16>, vector<64x32xbf16>, vector<8x32xf32> -> vector<8x32xf32>
    %171 = arith.addf %143, %170 : vector<8x32xf32>
    %c0_62 = arith.constant 0 : index
    %c0_63 = arith.constant 0 : index
    %c0_64 = arith.constant 0 : index
    %172 = vector.load %arg10[%c0_62, %c0_63, %c0_64] : memref<1x8x32xf32, #tpu.memory_space<vmem>>, vector<1x8x32xf32>
    %173 = vector.shape_cast %172 : vector<1x8x32xf32> to vector<8x32xf32>
    %174 = vector.shape_cast %171 : vector<8x32xf32> to vector<1x8x32xf32>
    tpu.vector_store %arg10[%c0_62, %c0_63, %c0_64], %174 {strides = array<i32>} : memref<1x8x32xf32, #tpu.memory_space<vmem>>, vector<1x8x32xf32>,
    return
  }
  func.func @transform_0(%arg0: i32, %arg1: i32) -> (i32, i32, i32) {
    %c0_i32 = arith.constant 0 : i32
    %c0_i32_0 = arith.constant 0 : i32
    %c0_i32_1 = arith.constant 0 : i32
    return %arg0, %c0_i32, %c0_i32_0 : i32, i32, i32
  }
  func.func @transform_1(%arg0: i32, %arg1: i32) -> (i32, i32) {
    %c0_i32 = arith.constant 0 : i32
    %c0_i32_0 = arith.constant 0 : i32
    %c0_i32_1 = arith.constant 0 : i32
    return %c0_i32, %c0_i32_0 : i32, i32
  }
  func.func @transform_2(%arg0: i32, %arg1: i32) -> (i32, i32) {
    %c0_i32 = arith.constant 0 : i32
    %c0_i32_0 = arith.constant 0 : i32
    %c0_i32_1 = arith.constant 0 : i32
    return %c0_i32, %c0_i32_0 : i32, i32
  }
  func.func @transform_3(%arg0: i32, %arg1: i32) -> (i32, i32) {
    %c0_i32 = arith.constant 0 : i32
    %c0_i32_0 = arith.constant 0 : i32
    %c0_i32_1 = arith.constant 0 : i32
    return %c0_i32, %c0_i32_0 : i32, i32
  }
  func.func @transform_4(%arg0: i32, %arg1: i32) -> (i32, i32) {
    %c0_i32 = arith.constant 0 : i32
    %c0_i32_0 = arith.constant 0 : i32
    %c0_i32_1 = arith.constant 0 : i32
    return %c0_i32, %c0_i32_0 : i32, i32
  }
  func.func @transform_5(%arg0: i32, %arg1: i32) -> (i32, i32) {
    %c0_i32 = arith.constant 0 : i32
    %c0_i32_0 = arith.constant 0 : i32
    %c0_i32_1 = arith.constant 0 : i32
    return %c0_i32, %c0_i32_0 : i32, i32
  }
  func.func @transform_6(%arg0: i32, %arg1: i32) -> (i32, i32) {
    %c0_i32 = arith.constant 0 : i32
    %c0_i32_0 = arith.constant 0 : i32
    %c0_i32_1 = arith.constant 0 : i32
    return %c0_i32, %c0_i32_0 : i32, i32
  }
  func.func @transform_7(%arg0: i32, %arg1: i32) -> (i32, i32) {
    %c0_i32 = arith.constant 0 : i32
    %c0_i32_0 = arith.constant 0 : i32
    %c0_i32_1 = arith.constant 0 : i32
    return %c0_i32, %c0_i32_0 : i32, i32
  }
  func.func @transform_8(%arg0: i32, %arg1: i32) -> (i32, i32, i32) {
    %c0_i32 = arith.constant 0 : i32
    %c0_i32_0 = arith.constant 0 : i32
    return %arg0, %arg1, %c0_i32 : i32, i32, i32
  }
}

module attributes {stable_mosaic.version = 11 : i64} {
  func.func @_transformer_block_kernel(%arg0: i32, %arg1: i32, %arg2: memref<1x8x32xf32, #tpu.memory_space<vmem>>, %arg3: memref<1x32xf32, #tpu.memory_space<vmem>>, %arg4: memref<32x32xbf16, #tpu.memory_space<vmem>>, %arg5: memref<32x64xbf16, #tpu.memory_space<vmem>>, %arg6: memref<32x32xbf16, #tpu.memory_space<vmem>>, %arg7: memref<1x32xf32, #tpu.memory_space<vmem>>, %arg8: memref<32x128xbf16, #tpu.memory_space<vmem>>, %arg9: memref<64x32xbf16, #tpu.memory_space<vmem>>, %arg10: memref<1x8x32xf32, #tpu.memory_space<vmem>>, %arg11: memref<8x64xbf16, #tpu.memory_space<vmem>>) attributes {dimension_semantics = [#tpu.dimension_semantics<parallel>, #tpu.dimension_semantics<arbitrary>], iteration_bounds = array<i64: 2, 1>, scalar_prefetch = 0 : i64, scratch_operands = 1 : i64, tpu.core_type = #tpu.core_type<tc>, window_params = [{transform_indices = @transform_0, window_bounds = array<i64: 1, 8, 32>}, {pipeline_mode = #tpu.pipeline_mode<synchronous>, transform_indices = @transform_1, window_bounds = array<i64: 1, 32>}, {pipeline_mode = #tpu.pipeline_mode<synchronous>, transform_indices = @transform_2, window_bounds = array<i64: 32, 32>}, {pipeline_mode = #tpu.pipeline_mode<synchronous>, transform_indices = @transform_3, window_bounds = array<i64: 32, 64>}, {pipeline_mode = #tpu.pipeline_mode<synchronous>, transform_indices = @transform_4, window_bounds = array<i64: 32, 32>}, {pipeline_mode = #tpu.pipeline_mode<synchronous>, transform_indices = @transform_5, window_bounds = array<i64: 1, 32>}, {pipeline_mode = #tpu.pipeline_mode<synchronous>, transform_indices = @transform_6, window_bounds = array<i64: 32, 128>}, {pipeline_mode = #tpu.pipeline_mode<synchronous>, transform_indices = @transform_7, window_bounds = array<i64: 64, 32>}, {transform_indices = @transform_8, window_bounds = array<i64: 1, 8, 32>}]} {
    %c0 = arith.constant 0 : index
    %c0_0 = arith.constant 0 : index
    %0 = vector.load %arg3[%c0, %c0_0] : memref<1x32xf32, #tpu.memory_space<vmem>>, vector<1x32xf32>
    %c0_1 = arith.constant 0 : index
    %c0_2 = arith.constant 0 : index
    %1 = vector.load %arg7[%c0_1, %c0_2] : memref<1x32xf32, #tpu.memory_space<vmem>>, vector<1x32xf32>
    %c0_i32 = arith.constant 0 : i32
    %2 = arith.cmpi eq, %arg1, %c0_i32 : i32
    %3 = arith.extui %2 : i1 to i32
    %c0_i32_3 = arith.constant 0 : i32
    %4 = arith.cmpi ne, %3, %c0_i32_3 : i32
    scf.if %4 {
      %c0_65 = arith.constant 0 : index
      %c0_66 = arith.constant 0 : index
      %c0_67 = arith.constant 0 : index
      %175 = vector.load %arg2[%c0_65, %c0_66, %c0_67] : memref<1x8x32xf32, #tpu.memory_space<vmem>>, vector<1x8x32xf32>
      %176 = vector.shape_cast %175 : vector<1x8x32xf32> to vector<8x32xf32>
      %177 = arith.mulf %176, %176 : vector<8x32xf32>
      %cst_68 = arith.constant dense<0.000000e+00> : vector<8xf32>
      %178 = vector.multi_reduction <add>, %177, %cst_68 [1] : vector<8x32xf32> to vector<8xf32>
      %179 = vector.shape_cast %178 : vector<8xf32> to vector<8x1xf32>
      %cst_69 = arith.constant 3.200000e+01 : f32
      %180 = vector.broadcast %cst_69 : f32 to vector<8x1xf32>
      %181 = arith.divf %179, %180 : vector<8x1xf32>
      %cst_70 = arith.constant 9.99999997E-7 : f32
      %182 = vector.broadcast %cst_70 : f32 to vector<8x1xf32>
      %183 = arith.addf %181, %182 : vector<8x1xf32>
      %184 = math.rsqrt %183 : vector<8x1xf32>
      %185 = vector.broadcast %184 : vector<8x1xf32> to vector<8x32xf32>
      %186 = arith.mulf %176, %185 : vector<8x32xf32>
      %187 = vector.broadcast %0 : vector<1x32xf32> to vector<8x32xf32>
      %188 = arith.mulf %186, %187 : vector<8x32xf32>
      %189 = arith.truncf %188 : vector<8x32xf32> to vector<8x32xbf16>
      %c0_71 = arith.constant 0 : index
      %c0_72 = arith.constant 0 : index
      %190 = vector.load %arg5[%c0_71, %c0_72] : memref<32x64xbf16, #tpu.memory_space<vmem>>, vector<32x64xbf16>
      %cst_73 = arith.constant dense<0.000000e+00> : vector<8x64xf32>
      %191 = tpu.matmul %189, %190, %cst_73 {dimension_numbers = #tpu.dot_dimension_numbers<[1], [0], [0], [1], [0, 0, 1, 1], [], []>} : vector<8x32xbf16>, vector<32x64xbf16>, vector<8x64xf32> -> vector<8x64xf32>
      %192 = arith.truncf %191 : vector<8x64xf32> to vector<8x64xbf16>
      %c0_74 = arith.constant 0 : index
      %c0_75 = arith.constant 0 : index
      %193 = vector.load %arg11[%c0_74, %c0_75] : memref<8x64xbf16, #tpu.memory_space<vmem>>, vector<8x64xbf16>
      tpu.vector_store %arg11[%c0_74, %c0_75], %192 {strides = array<i32>} : memref<8x64xbf16, #tpu.memory_space<vmem>>, vector<8x64xbf16>,
    } else {
    }
    %c8_i32 = arith.constant 8 : i32
    %5 = arith.muli %arg1, %c8_i32 : i32
    %6 = tpu.assume_multiple %5, 8 : i32
    %c0_4 = arith.constant 0 : index
    %7 = arith.index_cast %6 : i32 to index
    %c0_5 = arith.constant 0 : index
    %8 = vector.load %arg2[%c0_4, %7, %c0_5] : memref<1x8x32xf32, #tpu.memory_space<vmem>>, vector<1x8x32xf32>
    %9 = vector.shape_cast %8 : vector<1x8x32xf32> to vector<8x32xf32>
    %10 = arith.mulf %9, %9 : vector<8x32xf32>
    %cst = arith.constant dense<0.000000e+00> : vector<8xf32>
    %11 = vector.multi_reduction <add>, %10, %cst [1] : vector<8x32xf32> to vector<8xf32>
    %12 = vector.shape_cast %11 : vector<8xf32> to vector<8x1xf32>
    %cst_6 = arith.constant 3.200000e+01 : f32
    %13 = vector.broadcast %cst_6 : f32 to vector<8x1xf32>
    %14 = arith.divf %12, %13 : vector<8x1xf32>
    %cst_7 = arith.constant 9.99999997E-7 : f32
    %15 = vector.broadcast %cst_7 : f32 to vector<8x1xf32>
    %16 = arith.addf %14, %15 : vector<8x1xf32>
    %17 = math.rsqrt %16 : vector<8x1xf32>
    %18 = vector.broadcast %17 : vector<8x1xf32> to vector<8x32xf32>
    %19 = arith.mulf %9, %18 : vector<8x32xf32>
    %20 = vector.broadcast %0 : vector<1x32xf32> to vector<8x32xf32>
    %21 = arith.mulf %19, %20 : vector<8x32xf32>
    %22 = arith.truncf %21 : vector<8x32xf32> to vector<8x32xbf16>
    %c0_8 = arith.constant 0 : index
    %c0_9 = arith.constant 0 : index
    %23 = vector.load %arg4[%c0_8, %c0_9] : memref<32x32xbf16, #tpu.memory_space<vmem>>, vector<32x32xbf16>
    %cst_10 = arith.constant dense<0.000000e+00> : vector<8x32xf32>
    %24 = tpu.matmul %22, %23, %cst_10 {dimension_numbers = #tpu.dot_dimension_numbers<[1], [0], [0], [1], [0, 0, 1, 1], [], []>} : vector<8x32xbf16>, vector<32x32xbf16>, vector<8x32xf32> -> vector<8x32xf32>
    %cst_11 = arith.constant 0.353553385 : f32
    %25 = vector.broadcast %cst_11 : f32 to vector<8x32xf32>
    %26 = arith.mulf %24, %25 : vector<8x32xf32>
    %27 = vector.extract_strided_slice %26 {offsets = [0, 0], sizes = [8, 8], strides = [1, 1]} : vector<8x32xf32> to vector<8x8xf32>
    %28 = arith.truncf %27 : vector<8x8xf32> to vector<8x8xbf16>
    %cst_12 = arith.constant -1.000000e+30 : f32
    %29 = vector.broadcast %cst_12 : f32 to vector<8x1xf32>
    %cst_13 = arith.constant 0.000000e+00 : f32
    %30 = vector.broadcast %cst_13 : f32 to vector<8x1xf32>
    %cst_14 = arith.constant 0.000000e+00 : f32
    %31 = vector.broadcast %cst_14 : f32 to vector<8x8xf32>
    %c0_15 = arith.constant 0 : index
    %c0_16 = arith.constant 0 : index
    %32 = vector.load %arg11[%c0_15, %c0_16] : memref<8x64xbf16, #tpu.memory_space<vmem>>, vector<8x8xbf16>
    %c0_17 = arith.constant 0 : index
    %c32 = arith.constant 32 : index
    %33 = vector.load %arg11[%c0_17, %c32] : memref<8x64xbf16, #tpu.memory_space<vmem>>, vector<8x8xbf16>
    %cst_18 = arith.constant dense<0.000000e+00> : vector<8x8xf32>
    %34 = tpu.matmul %28, %32, %cst_18 {dimension_numbers = #tpu.dot_dimension_numbers<[1], [1], [0], [0], [0, 0, 1, 0], [], []>} : vector<8x8xbf16>, vector<8x8xbf16>, vector<8x8xf32> -> vector<8x8xf32>
    %cst_19 = arith.constant dense<0xFF800000> : vector<8xf32>
    %35 = vector.multi_reduction <maximumf>, %34, %cst_19 [1] : vector<8x8xf32> to vector<8xf32>
    %36 = vector.shape_cast %35 : vector<8xf32> to vector<8x1xf32>
    %37 = arith.maximumf %29, %36 : vector<8x1xf32>
    %38 = arith.subf %29, %37 : vector<8x1xf32>
    %39 = math.exp %38 : vector<8x1xf32>
    %40 = vector.broadcast %37 : vector<8x1xf32> to vector<8x8xf32>
    %41 = arith.subf %34, %40 : vector<8x8xf32>
    %42 = math.exp %41 : vector<8x8xf32>
    %43 = arith.mulf %39, %30 : vector<8x1xf32>
    %cst_20 = arith.constant dense<0.000000e+00> : vector<8xf32>
    %44 = vector.multi_reduction <add>, %42, %cst_20 [1] : vector<8x8xf32> to vector<8xf32>
    %45 = vector.shape_cast %44 : vector<8xf32> to vector<8x1xf32>
    %46 = arith.addf %43, %45 : vector<8x1xf32>
    %47 = vector.broadcast %39 : vector<8x1xf32> to vector<8x8xf32>
    %48 = arith.mulf %47, %31 : vector<8x8xf32>
    %49 = arith.truncf %42 : vector<8x8xf32> to vector<8x8xbf16>
    %cst_21 = arith.constant dense<0.000000e+00> : vector<8x8xf32>
    %50 = tpu.matmul %49, %33, %cst_21 {dimension_numbers = #tpu.dot_dimension_numbers<[1], [0], [0], [1], [0, 0, 1, 1], [], []>} : vector<8x8xbf16>, vector<8x8xbf16>, vector<8x8xf32> -> vector<8x8xf32>
    %51 = arith.addf %48, %50 : vector<8x8xf32>
    %52 = tpu.reciprocal %46 {approx = true} : vector<8x1xf32> -> vector<8x1xf32>
    %53 = vector.broadcast %52 : vector<8x1xf32> to vector<8x8xf32>
    %54 = arith.mulf %51, %53 : vector<8x8xf32>
    %55 = vector.extract_strided_slice %26 {offsets = [0, 8], sizes = [8, 8], strides = [1, 1]} : vector<8x32xf32> to vector<8x8xf32>
    %56 = arith.truncf %55 : vector<8x8xf32> to vector<8x8xbf16>
    %cst_22 = arith.constant -1.000000e+30 : f32
    %57 = vector.broadcast %cst_22 : f32 to vector<8x1xf32>
    %cst_23 = arith.constant 0.000000e+00 : f32
    %58 = vector.broadcast %cst_23 : f32 to vector<8x1xf32>
    %cst_24 = arith.constant 0.000000e+00 : f32
    %59 = vector.broadcast %cst_24 : f32 to vector<8x8xf32>
    %c0_25 = arith.constant 0 : index
    %c8 = arith.constant 8 : index
    %60 = vector.load %arg11[%c0_25, %c8] : memref<8x64xbf16, #tpu.memory_space<vmem>>, vector<8x8xbf16>
    %c0_26 = arith.constant 0 : index
    %c40 = arith.constant 40 : index
    %61 = vector.load %arg11[%c0_26, %c40] : memref<8x64xbf16, #tpu.memory_space<vmem>>, vector<8x8xbf16>
    %cst_27 = arith.constant dense<0.000000e+00> : vector<8x8xf32>
    %62 = tpu.matmul %56, %60, %cst_27 {dimension_numbers = #tpu.dot_dimension_numbers<[1], [1], [0], [0], [0, 0, 1, 0], [], []>} : vector<8x8xbf16>, vector<8x8xbf16>, vector<8x8xf32> -> vector<8x8xf32>
    %cst_28 = arith.constant dense<0xFF800000> : vector<8xf32>
    %63 = vector.multi_reduction <maximumf>, %62, %cst_28 [1] : vector<8x8xf32> to vector<8xf32>
    %64 = vector.shape_cast %63 : vector<8xf32> to vector<8x1xf32>
    %65 = arith.maximumf %57, %64 : vector<8x1xf32>
    %66 = arith.subf %57, %65 : vector<8x1xf32>
    %67 = math.exp %66 : vector<8x1xf32>
    %68 = vector.broadcast %65 : vector<8x1xf32> to vector<8x8xf32>
    %69 = arith.subf %62, %68 : vector<8x8xf32>
    %70 = math.exp %69 : vector<8x8xf32>
    %71 = arith.mulf %67, %58 : vector<8x1xf32>
    %cst_29 = arith.constant dense<0.000000e+00> : vector<8xf32>
    %72 = vector.multi_reduction <add>, %70, %cst_29 [1] : vector<8x8xf32> to vector<8xf32>
    %73 = vector.shape_cast %72 : vector<8xf32> to vector<8x1xf32>
    %74 = arith.addf %71, %73 : vector<8x1xf32>
    %75 = vector.broadcast %67 : vector<8x1xf32> to vector<8x8xf32>
    %76 = arith.mulf %75, %59 : vector<8x8xf32>
    %77 = arith.truncf %70 : vector<8x8xf32> to vector<8x8xbf16>
    %cst_30 = arith.constant dense<0.000000e+00> : vector<8x8xf32>
    %78 = tpu.matmul %77, %61, %cst_30 {dimension_numbers = #tpu.dot_dimension_numbers<[1], [0], [0], [1], [0, 0, 1, 1], [], []>} : vector<8x8xbf16>, vector<8x8xbf16>, vector<8x8xf32> -> vector<8x8xf32>
    %79 = arith.addf %76, %78 : vector<8x8xf32>
    %80 = tpu.reciprocal %74 {approx = true} : vector<8x1xf32> -> vector<8x1xf32>
    %81 = vector.broadcast %80 : vector<8x1xf32> to vector<8x8xf32>
    %82 = arith.mulf %79, %81 : vector<8x8xf32>
    %83 = vector.extract_strided_slice %26 {offsets = [0, 16], sizes = [8, 8], strides = [1, 1]} : vector<8x32xf32> to vector<8x8xf32>
    %84 = arith.truncf %83 : vector<8x8xf32> to vector<8x8xbf16>
    %cst_31 = arith.constant -1.000000e+30 : f32
    %85 = vector.broadcast %cst_31 : f32 to vector<8x1xf32>
    %cst_32 = arith.constant 0.000000e+00 : f32
    %86 = vector.broadcast %cst_32 : f32 to vector<8x1xf32>
    %cst_33 = arith.constant 0.000000e+00 : f32
    %87 = vector.broadcast %cst_33 : f32 to vector<8x8xf32>
    %c0_34 = arith.constant 0 : index
    %c16 = arith.constant 16 : index
    %88 = vector.load %arg11[%c0_34, %c16] : memref<8x64xbf16, #tpu.memory_space<vmem>>, vector<8x8xbf16>
    %c0_35 = arith.constant 0 : index
    %c48 = arith.constant 48 : index
    %89 = vector.load %arg11[%c0_35, %c48] : memref<8x64xbf16, #tpu.memory_space<vmem>>, vector<8x8xbf16>
    %cst_36 = arith.constant dense<0.000000e+00> : vector<8x8xf32>
    %90 = tpu.matmul %84, %88, %cst_36 {dimension_numbers = #tpu.dot_dimension_numbers<[1], [1], [0], [0], [0, 0, 1, 0], [], []>} : vector<8x8xbf16>, vector<8x8xbf16>, vector<8x8xf32> -> vector<8x8xf32>
    %cst_37 = arith.constant dense<0xFF800000> : vector<8xf32>
    %91 = vector.multi_reduction <maximumf>, %90, %cst_37 [1] : vector<8x8xf32> to vector<8xf32>
    %92 = vector.shape_cast %91 : vector<8xf32> to vector<8x1xf32>
    %93 = arith.maximumf %85, %92 : vector<8x1xf32>
    %94 = arith.subf %85, %93 : vector<8x1xf32>
    %95 = math.exp %94 : vector<8x1xf32>
    %96 = vector.broadcast %93 : vector<8x1xf32> to vector<8x8xf32>
    %97 = arith.subf %90, %96 : vector<8x8xf32>
    %98 = math.exp %97 : vector<8x8xf32>
    %99 = arith.mulf %95, %86 : vector<8x1xf32>
    %cst_38 = arith.constant dense<0.000000e+00> : vector<8xf32>
    %100 = vector.multi_reduction <add>, %98, %cst_38 [1] : vector<8x8xf32> to vector<8xf32>
    %101 = vector.shape_cast %100 : vector<8xf32> to vector<8x1xf32>
    %102 = arith.addf %99, %101 : vector<8x1xf32>
    %103 = vector.broadcast %95 : vector<8x1xf32> to vector<8x8xf32>
    %104 = arith.mulf %103, %87 : vector<8x8xf32>
    %105 = arith.truncf %98 : vector<8x8xf32> to vector<8x8xbf16>
    %cst_39 = arith.constant dense<0.000000e+00> : vector<8x8xf32>
    %106 = tpu.matmul %105, %89, %cst_39 {dimension_numbers = #tpu.dot_dimension_numbers<[1], [0], [0], [1], [0, 0, 1, 1], [], []>} : vector<8x8xbf16>, vector<8x8xbf16>, vector<8x8xf32> -> vector<8x8xf32>
    %107 = arith.addf %104, %106 : vector<8x8xf32>
    %108 = tpu.reciprocal %102 {approx = true} : vector<8x1xf32> -> vector<8x1xf32>
    %109 = vector.broadcast %108 : vector<8x1xf32> to vector<8x8xf32>
    %110 = arith.mulf %107, %109 : vector<8x8xf32>
    %111 = vector.extract_strided_slice %26 {offsets = [0, 24], sizes = [8, 8], strides = [1, 1]} : vector<8x32xf32> to vector<8x8xf32>
    %112 = arith.truncf %111 : vector<8x8xf32> to vector<8x8xbf16>
    %cst_40 = arith.constant -1.000000e+30 : f32
    %113 = vector.broadcast %cst_40 : f32 to vector<8x1xf32>
    %cst_41 = arith.constant 0.000000e+00 : f32
    %114 = vector.broadcast %cst_41 : f32 to vector<8x1xf32>
    %cst_42 = arith.constant 0.000000e+00 : f32
    %115 = vector.broadcast %cst_42 : f32 to vector<8x8xf32>
    %c0_43 = arith.constant 0 : index
    %c24 = arith.constant 24 : index
    %116 = vector.load %arg11[%c0_43, %c24] : memref<8x64xbf16, #tpu.memory_space<vmem>>, vector<8x8xbf16>
    %c0_44 = arith.constant 0 : index
    %c56 = arith.constant 56 : index
    %117 = vector.load %arg11[%c0_44, %c56] : memref<8x64xbf16, #tpu.memory_space<vmem>>, vector<8x8xbf16>
    %cst_45 = arith.constant dense<0.000000e+00> : vector<8x8xf32>
    %118 = tpu.matmul %112, %116, %cst_45 {dimension_numbers = #tpu.dot_dimension_numbers<[1], [1], [0], [0], [0, 0, 1, 0], [], []>} : vector<8x8xbf16>, vector<8x8xbf16>, vector<8x8xf32> -> vector<8x8xf32>
    %cst_46 = arith.constant dense<0xFF800000> : vector<8xf32>
    %119 = vector.multi_reduction <maximumf>, %118, %cst_46 [1] : vector<8x8xf32> to vector<8xf32>
    %120 = vector.shape_cast %119 : vector<8xf32> to vector<8x1xf32>
    %121 = arith.maximumf %113, %120 : vector<8x1xf32>
    %122 = arith.subf %113, %121 : vector<8x1xf32>
    %123 = math.exp %122 : vector<8x1xf32>
    %124 = vector.broadcast %121 : vector<8x1xf32> to vector<8x8xf32>
    %125 = arith.subf %118, %124 : vector<8x8xf32>
    %126 = math.exp %125 : vector<8x8xf32>
    %127 = arith.mulf %123, %114 : vector<8x1xf32>
    %cst_47 = arith.constant dense<0.000000e+00> : vector<8xf32>
    %128 = vector.multi_reduction <add>, %126, %cst_47 [1] : vector<8x8xf32> to vector<8xf32>
    %129 = vector.shape_cast %128 : vector<8xf32> to vector<8x1xf32>
    %130 = arith.addf %127, %129 : vector<8x1xf32>
    %131 = vector.broadcast %123 : vector<8x1xf32> to vector<8x8xf32>
    %132 = arith.mulf %131, %115 : vector<8x8xf32>
    %133 = arith.truncf %126 : vector<8x8xf32> to vector<8x8xbf16>
    %cst_48 = arith.constant dense<0.000000e+00> : vector<8x8xf32>
    %134 = tpu.matmul %133, %117, %cst_48 {dimension_numbers = #tpu.dot_dimension_numbers<[1], [0], [0], [1], [0, 0, 1, 1], [], []>} : vector<8x8xbf16>, vector<8x8xbf16>, vector<8x8xf32> -> vector<8x8xf32>
    %135 = arith.addf %132, %134 : vector<8x8xf32>
    %136 = tpu.reciprocal %130 {approx = true} : vector<8x1xf32> -> vector<8x1xf32>
    %137 = vector.broadcast %136 : vector<8x1xf32> to vector<8x8xf32>
    %138 = arith.mulf %135, %137 : vector<8x8xf32>
    %139 = tpu.concatenate %54, %82, %110, %138 in 1 : vector<8x8xf32>, vector<8x8xf32>, vector<8x8xf32>, vector<8x8xf32> -> vector<8x32xf32>
    %140 = arith.truncf %139 : vector<8x32xf32> to vector<8x32xbf16>
    %c0_49 = arith.constant 0 : index
    %c0_50 = arith.constant 0 : index
    %141 = vector.load %arg6[%c0_49, %c0_50] : memref<32x32xbf16, #tpu.memory_space<vmem>>, vector<32x32xbf16>
    %cst_51 = arith.constant dense<0.000000e+00> : vector<8x32xf32>
    %142 = tpu.matmul %140, %141, %cst_51 {dimension_numbers = #tpu.dot_dimension_numbers<[1], [0], [0], [1], [0, 0, 1, 1], [], []>} : vector<8x32xbf16>, vector<32x32xbf16>, vector<8x32xf32> -> vector<8x32xf32>
    %143 = arith.addf %9, %142 : vector<8x32xf32>
    %144 = arith.mulf %143, %143 : vector<8x32xf32>
    %cst_52 = arith.constant dense<0.000000e+00> : vector<8xf32>
    %145 = vector.multi_reduction <add>, %144, %cst_52 [1] : vector<8x32xf32> to vector<8xf32>
    %146 = vector.shape_cast %145 : vector<8xf32> to vector<8x1xf32>
    %cst_53 = arith.constant 3.200000e+01 : f32
    %147 = vector.broadcast %cst_53 : f32 to vector<8x1xf32>
    %148 = arith.divf %146, %147 : vector<8x1xf32>
    %cst_54 = arith.constant 9.99999997E-7 : f32
    %149 = vector.broadcast %cst_54 : f32 to vector<8x1xf32>
    %150 = arith.addf %148, %149 : vector<8x1xf32>
    %151 = math.rsqrt %150 : vector<8x1xf32>
    %152 = vector.broadcast %151 : vector<8x1xf32> to vector<8x32xf32>
    %153 = arith.mulf %143, %152 : vector<8x32xf32>
    %154 = vector.broadcast %1 : vector<1x32xf32> to vector<8x32xf32>
    %155 = arith.mulf %153, %154 : vector<8x32xf32>
    %156 = arith.truncf %155 : vector<8x32xf32> to vector<8x32xbf16>
    %c0_55 = arith.constant 0 : index
    %c0_56 = arith.constant 0 : index
    %157 = vector.load %arg8[%c0_55, %c0_56] : memref<32x128xbf16, #tpu.memory_space<vmem>>, vector<32x128xbf16>
    %cst_57 = arith.constant dense<0.000000e+00> : vector<8x128xf32>
    %158 = tpu.matmul %156, %157, %cst_57 {dimension_numbers = #tpu.dot_dimension_numbers<[1], [0], [0], [1], [0, 0, 1, 1], [], []>} : vector<8x32xbf16>, vector<32x128xbf16>, vector<8x128xf32> -> vector<8x128xf32>
    %159 = vector.extract_strided_slice %158 {offsets = [0, 0], sizes = [8, 64], strides = [1, 1]} : vector<8x128xf32> to vector<8x64xf32>
    %160 = vector.extract_strided_slice %158 {offsets = [0, 64], sizes = [8, 64], strides = [1, 1]} : vector<8x128xf32> to vector<8x64xf32>
    %161 = arith.negf %159 : vector<8x64xf32>
    %162 = math.exp %161 : vector<8x64xf32>
    %cst_58 = arith.constant 1.000000e+00 : f32
    %163 = vector.broadcast %cst_58 : f32 to vector<8x64xf32>
    %164 = arith.addf %163, %162 : vector<8x64xf32>
    %165 = arith.divf %163, %164 : vector<8x64xf32>
    %166 = arith.mulf %159, %165 : vector<8x64xf32>
    %167 = arith.mulf %166, %160 : vector<8x64xf32>
    %168 = arith.truncf %167 : vector<8x64xf32> to vector<8x64xbf16>
    %c0_59 = arith.constant 0 : index
    %c0_60 = arith.constant 0 : index
    %169 = vector.load %arg9[%c0_59, %c0_60] : memref<64x32xbf16, #tpu.memory_space<vmem>>, vector<64x32xbf16>
    %cst_61 = arith.constant dense<0.000000e+00> : vector<8x32xf32>
    %170 = tpu.matmul %168, %169, %cst_61 {dimension_numbers = #tpu.dot_dimension_numbers<[1], [0], [0], [1], [0, 0, 1, 1], [], []>} : vector<8x64xbf16>, vector<64x32xbf16>, vector<8x32xf32> -> vector<8x32xf32>
    %171 = arith.addf %143, %170 : vector<8x32xf32>
    %c0_62 = arith.constant 0 : index
    %c0_63 = arith.constant 0 : index
    %c0_64 = arith.constant 0 : index
    %172 = vector.load %arg10[%c0_62, %c0_63, %c0_64] : memref<1x8x32xf32, #tpu.memory_space<vmem>>, vector<1x8x32xf32>
    %173 = vector.shape_cast %172 : vector<1x8x32xf32> to vector<8x32xf32>
    %174 = vector.shape_cast %171 : vector<8x32xf32> to vector<1x8x32xf32>
    tpu.vector_store %arg10[%c0_62, %c0_63, %c0_64], %174 {strides = array<i32>} : memref<1x8x32xf32, #tpu.memory_space<vmem>>, vector<1x8x32xf32>,
    return
  }
  func.func @transform_0(%arg0: i32, %arg1: i32) -> (i32, i32, i32) {
    %c0_i32 = arith.constant 0 : i32
    %c0_i32_0 = arith.constant 0 : i32
    %c0_i32_1 = arith.constant 0 : i32
    return %arg0, %c0_i32, %c0_i32_0 : i32, i32, i32
  }
  func.func @transform_1(%arg0: i32, %arg1: i32) -> (i32, i32) {
    %c0_i32 = arith.constant 0 : i32
    %c0_i32_0 = arith.constant 0 : i32
    %c0_i32_1 = arith.constant 0 : i32
    return %c0_i32, %c0_i32_0 : i32, i32
  }
  func.func @transform_2(%arg0: i32, %arg1: i32) -> (i32, i32) {
    %c0_i32 = arith.constant 0 : i32
    %c0_i32_0 = arith.constant 0 : i32
    %c0_i32_1 = arith.constant 0 : i32
    return %c0_i32, %c0_i32_0 : i32, i32
  }
  func.func @transform_3(%arg0: i32, %arg1: i32) -> (i32, i32) {
    %c0_i32 = arith.constant 0 : i32
    %c0_i32_0 = arith.constant 0 : i32
    %c0_i32_1 = arith.constant 0 : i32
    return %c0_i32, %c0_i32_0 : i32, i32
  }
  func.func @transform_4(%arg0: i32, %arg1: i32) -> (i32, i32) {
    %c0_i32 = arith.constant 0 : i32
    %c0_i32_0 = arith.constant 0 : i32
    %c0_i32_1 = arith.constant 0 : i32
    return %c0_i32, %c0_i32_0 : i32, i32
  }
  func.func @transform_5(%arg0: i32, %arg1: i32) -> (i32, i32) {
    %c0_i32 = arith.constant 0 : i32
    %c0_i32_0 = arith.constant 0 : i32
    %c0_i32_1 = arith.constant 0 : i32
    return %c0_i32, %c0_i32_0 : i32, i32
  }
  func.func @transform_6(%arg0: i32, %arg1: i32) -> (i32, i32) {
    %c0_i32 = arith.constant 0 : i32
    %c0_i32_0 = arith.constant 0 : i32
    %c0_i32_1 = arith.constant 0 : i32
    return %c0_i32, %c0_i32_0 : i32, i32
  }
  func.func @transform_7(%arg0: i32, %arg1: i32) -> (i32, i32) {
    %c0_i32 = arith.constant 0 : i32
    %c0_i32_0 = arith.constant 0 : i32
    %c0_i32_1 = arith.constant 0 : i32
    return %c0_i32, %c0_i32_0 : i32, i32
  }
  func.func @transform_8(%arg0: i32, %arg1: i32) -> (i32, i32, i32) {
    %c0_i32 = arith.constant 0 : i32
    %c0_i32_0 = arith.constant 0 : i32
    return %arg0, %arg1, %c0_i32 : i32, i32, i32
  }
}

</mosaic_0001>

<llo_original>
// kernel: tpu_custom_call.1
$region0: #{tpu_custom_call.1}
  #allocation0 [shape = 'u32[]', space=smem, size = 0x4, offset = 0x4, fixed_abs, tag = 'smem constant byte address 0x4 - core index']
  #allocation1 [shape = 'u32[144,128]{1,0:T(1,128)}', space=vmem, size = 0x12000, scoped, tag = 'internal scratch']
  #allocation2 [shape = 'bf16[8,64]{1,0:T(8,128)(2,1)}', space=vmem, size = 0x800, scoped, tag = 'scratch operand']
  %s0 = inlined_call_operand.vmem [shape: f32[2,8,32], index: 0, kind: input, shape index: {}]
  %s1 = inlined_call_operand.vmem [shape: f32[1,32], index: 1, kind: input, shape index: {}]
  %s2 = inlined_call_operand.vmem [shape: bf16[32,32], index: 2, kind: input, shape index: {}]
  %s3 = inlined_call_operand.vmem [shape: bf16[32,64], index: 3, kind: input, shape index: {}]
  %s4 = inlined_call_operand.hbm [shape: bf16[32,32], index: 4, kind: input, shape index: {}]
  %s5 = inlined_call_operand.vmem [shape: f32[1,32], index: 5, kind: input, shape index: {}]
  %s6 = inlined_call_operand.hbm [shape: bf16[32,128], index: 6, kind: input, shape index: {}]
  %s7 = inlined_call_operand.vmem [shape: bf16[64,32], index: 7, kind: input, shape index: {}]
  %s8 = inlined_call_operand.hbm [shape: f32[2,8,32], index: 8, kind: output, shape index: {}]
  %s9 = sld [smem:[#allocation0]]
  $region77: #{tpu_custom_call.1} parent=0
    _
  %s11 = ssub.s32 1, %s9
  %s12 = scalar_select 0, %s11, %s9
  $region1: #{tpu_custom_call.1} parent=0
    #allocation3 [shape = 'u8[8192]{0}', space=vmem, size = 0x2000, scoped, tag = 'input window, operand 4, single buffered']
    #allocation4 [shape = 's32[2]{0}', space=sflag, size = 0x8, scoped, tag = 'scoped memory for tpu_custom_call.1']
    #allocation5 [shape = 's32[2]{0}', space=sflag, size = 0x8, scoped, tag = 'scoped memory for tpu_custom_call.1']
    #allocation6 [shape = 'u8[8192]{0}', space=vmem, size = 0x2000, scoped, tag = 'input window, operand 6, single buffered']
    #allocation7 [shape = 's32[1]{0}', space=sflag, size = 0x4, scoped, tag = 'scoped memory for tpu_custom_call.1']
    #allocation8 [shape = 'u8[8192]{0}', space=vmem, size = 0x2000, scoped, tag = 'output window, operand 0']
    %13 = vsyncpa [#allocation4], 0
    %14 = vsyncpa [#allocation7], 0
    %15 = vsyncpa [#allocation5], 0
    %s16 = scalar_lea.sflag [#allocation5], 1
    %17 = vsyncpa %s16, 0
    loop: start=0, step=1, limit=4
    $region2: #{tpu_custom_call.1} parent=1 // loop_pre_header
      _
    $region3: #{tpu_custom_call.1} parent=1 // loop_header
      %s19 = sphi 0, %s23
      %p20 = scmp.ge.s32.totalorder %s19, 4
      %s26 = sphi 0, %s38
      %s27 = sphi 0, %s34
      %s28 = sphi 0, %s26
      %s29 = sphi 0, %s27
      %s30 = sphi 0, %s28
      %s31 = sphi 0, %s29
      %s41 = sphi 0, %s43
      %s44 = sphi 0, %s41
      %s45 = sphi 0, %s44
      %s61 = sphi 0, %s45
      %s65 = sphi 0, %s65
      %s67 = sphi 0, %s65
      %s68 = sphi 0, %s67
      %s82 = sphi 0, %s68
      %s86 = sphi 0, %s86
      %s88 = sphi 0, %s86
      %s89 = sphi 0, %s88
      %s103 = sphi 0, %s89
      %s107 = sphi 0, %s107
      %s109 = sphi 0, %s107
      %s110 = sphi 0, %s109
      %s124 = sphi 0, %s110
      %s128 = sphi 0, %s128
      %s130 = sphi 0, %s128
      %s131 = sphi 0, %s130
      %s145 = sphi 0, %s131
      %s149 = sphi 0, %s149
      %s151 = sphi 0, %s149
      %s152 = sphi 0, %s151
      %s166 = sphi 0, %s152
      %s170 = sphi 0, %s170
      %s172 = sphi 0, %s170
      %s173 = sphi 0, %s172
      %s187 = sphi 0, %s173
      %s191 = sphi 0, %s191
      %s193 = sphi 0, %s191
      %s194 = sphi 0, %s193
      %s208 = sphi 0, %s194
      %s216 = sphi 0, %s218
      %s219 = sphi 0, %s216
      %s220 = sphi 0, %s219
      %s236 = sphi 0, %s220
    $region4: #{tpu_custom_call.1} parent=1 // loop_header_branch
      %22 = sbr.rel (%p20) target = $region8
    $region5: #{tpu_custom_call.1} parent=1 // loop_body
      %s24 = ssub.s32 %s19, 1
      %s25 = ssub.s32 %s19, 2
      %s32 = sadd.s32 1, %s27
      %p33 = scmp.ge.s32.totalorder %s32, 1
      %s34 = scalar_select %p33, 0, %s32
      %s35 = sadd.s32 1, %s26
      %s36 = scalar_select %p33, %s35, %s26
      %p37 = scmp.ge.s32.totalorder %s36, 2
      %s38 = scalar_select %p37, 0, %s36
      %s39 = ssub.s32 %s26, %s38
      %p40 = scmp.eq.s32.totalorder %s39, 0
      %s42 = sadd.s32 %s41, 1
      %s43 = scalar_select %p40, %s41, %s42
      %p46 = pneg %p40
      %p47 = scmp.eq.s32.totalorder %s19, 1
      %p48 = por %p46, %p47
      %p49 = scmp.ne.s32.totalorder %s41, %s44
      %p50 = scmp.eq.s32.totalorder %s19, 0
      %p51 = por %p49, %p50
      %p52 = scmp.ne.s32.totalorder %s41, %s44
      %p53 = scmp.eq.s32.totalorder %s24, 1
      %p54 = por %p52, %p53
      %p55 = scmp.ne.s32.totalorder %s44, %s45
      %p56 = scmp.eq.s32.totalorder %s24, 0
      %p57 = por %p55, %p56
      %p58 = scmp.ne.s32.totalorder %s44, %s45
      %p59 = scmp.eq.s32.totalorder %s25, 1
      %p60 = por %p58, %p59
      %p62 = scmp.ne.s32.totalorder %s45, %s61
      %p63 = scmp.eq.s32.totalorder %s25, 0
      %p64 = por %p62, %p63
      %s66 = sadd.s32 %s65, 1
      %p69 = scmp.eq.s32.totalorder %s19, 1
      %p70 = scmp.ne.s32.totalorder %s65, %s67
      %p71 = scmp.eq.s32.totalorder %s19, 0
      %p72 = por %p70, %p71
      %p73 = scmp.ne.s32.totalorder %s65, %s67
      %p74 = scmp.eq.s32.totalorder %s24, 1
      %p75 = por %p73, %p74
      %p76 = scmp.ne.s32.totalorder %s67, %s68
      %p77 = scmp.eq.s32.totalorder %s24, 0
      %p78 = por %p76, %p77
      %p79 = scmp.ne.s32.totalorder %s67, %s68
      %p80 = scmp.eq.s32.totalorder %s25, 1
      %p81 = por %p79, %p80
      %p83 = scmp.ne.s32.totalorder %s68, %s82
      %p84 = scmp.eq.s32.totalorder %s25, 0
      %p85 = por %p83, %p84
      %s87 = sadd.s32 %s86, 1
      %p90 = scmp.eq.s32.totalorder %s19, 1
      %p91 = scmp.ne.s32.totalorder %s86, %s88
      %p92 = scmp.eq.s32.totalorder %s19, 0
      %p93 = por %p91, %p92
      %p94 = scmp.ne.s32.totalorder %s86, %s88
      %p95 = scmp.eq.s32.totalorder %s24, 1
      %p96 = por %p94, %p95
      %p97 = scmp.ne.s32.totalorder %s88, %s89
      %p98 = scmp.eq.s32.totalorder %s24, 0
      %p99 = por %p97, %p98
      %p100 = scmp.ne.s32.totalorder %s88, %s89
      %p101 = scmp.eq.s32.totalorder %s25, 1
      %p102 = por %p100, %p101
      %p104 = scmp.ne.s32.totalorder %s89, %s103
      %p105 = scmp.eq.s32.totalorder %s25, 0
      %p106 = por %p104, %p105
      %s108 = sadd.s32 %s107, 1
      %p111 = scmp.eq.s32.totalorder %s19, 1
      %p112 = scmp.ne.s32.totalorder %s107, %s109
      %p113 = scmp.eq.s32.totalorder %s19, 0
      %p114 = por %p112, %p113
      %p115 = scmp.ne.s32.totalorder %s107, %s109
      %p116 = scmp.eq.s32.totalorder %s24, 1
      %p117 = por %p115, %p116
      %p118 = scmp.ne.s32.totalorder %s109, %s110
      %p119 = scmp.eq.s32.totalorder %s24, 0
      %p120 = por %p118, %p119
      %p121 = scmp.ne.s32.totalorder %s109, %s110
      %p122 = scmp.eq.s32.totalorder %s25, 1
      %p123 = por %p121, %p122
      %p125 = scmp.ne.s32.totalorder %s110, %s124
      %p126 = scmp.eq.s32.totalorder %s25, 0
      %p127 = por %p125, %p126
      %s129 = sadd.s32 %s128, 1
      %p132 = scmp.eq.s32.totalorder %s19, 1
      %p133 = scmp.ne.s32.totalorder %s128, %s130
      %p134 = scmp.eq.s32.totalorder %s19, 0
      %p135 = por %p133, %p134
      %p136 = scmp.ne.s32.totalorder %s128, %s130
      %p137 = scmp.eq.s32.totalorder %s24, 1
      %p138 = por %p136, %p137
      %p139 = scmp.ne.s32.totalorder %s130, %s131
      %p140 = scmp.eq.s32.totalorder %s24, 0
      %p141 = por %p139, %p140
      %p142 = scmp.ne.s32.totalorder %s130, %s131
      %p143 = scmp.eq.s32.totalorder %s25, 1
      %p144 = por %p142, %p143
      %p146 = scmp.ne.s32.totalorder %s131, %s145
      %p147 = scmp.eq.s32.totalorder %s25, 0
      %p148 = por %p146, %p147
      %s150 = sadd.s32 %s149, 1
      %p153 = scmp.eq.s32.totalorder %s19, 1
      %p154 = scmp.ne.s32.totalorder %s149, %s151
      %p155 = scmp.eq.s32.totalorder %s19, 0
      %p156 = por %p154, %p155
      %p157 = scmp.ne.s32.totalorder %s149, %s151
      %p158 = scmp.eq.s32.totalorder %s24, 1
      %p159 = por %p157, %p158
      %p160 = scmp.ne.s32.totalorder %s151, %s152
      %p161 = scmp.eq.s32.totalorder %s24, 0
      %p162 = por %p160, %p161
      %p163 = scmp.ne.s32.totalorder %s151, %s152
      %p164 = scmp.eq.s32.totalorder %s25, 1
      %p165 = por %p163, %p164
      %p167 = scmp.ne.s32.totalorder %s152, %s166
      %p168 = scmp.eq.s32.totalorder %s25, 0
      %p169 = por %p167, %p168
      %s171 = sadd.s32 %s170, 1
      %p174 = scmp.eq.s32.totalorder %s19, 1
      %p175 = scmp.ne.s32.totalorder %s170, %s172
      %p176 = scmp.eq.s32.totalorder %s19, 0
      %p177 = por %p175, %p176
      %p178 = scmp.ne.s32.totalorder %s170, %s172
      %p179 = scmp.eq.s32.totalorder %s24, 1
      %p180 = por %p178, %p179
      %p181 = scmp.ne.s32.totalorder %s172, %s173
      %p182 = scmp.eq.s32.totalorder %s24, 0
      %p183 = por %p181, %p182
      %p184 = scmp.ne.s32.totalorder %s172, %s173
      %p185 = scmp.eq.s32.totalorder %s25, 1
      %p186 = por %p184, %p185
      %p188 = scmp.ne.s32.totalorder %s173, %s187
      %p189 = scmp.eq.s32.totalorder %s25, 0
      %p190 = por %p188, %p189
      %s192 = sadd.s32 %s191, 1
      %p195 = scmp.eq.s32.totalorder %s19, 1
      %p196 = scmp.ne.s32.totalorder %s191, %s193
      %p197 = scmp.eq.s32.totalorder %s19, 0
      %p198 = por %p196, %p197
      %p199 = scmp.ne.s32.totalorder %s191, %s193
      %p200 = scmp.eq.s32.totalorder %s24, 1
      %p201 = por %p199, %p200
      %p202 = scmp.ne.s32.totalorder %s193, %s194
      %p203 = scmp.eq.s32.totalorder %s24, 0
      %p204 = por %p202, %p203
      %p205 = scmp.ne.s32.totalorder %s193, %s194
      %p206 = scmp.eq.s32.totalorder %s25, 1
      %p207 = por %p205, %p206
      %p209 = scmp.ne.s32.totalorder %s194, %s208
      %p210 = scmp.eq.s32.totalorder %s25, 0
      %p211 = por %p209, %p210
      %s212 = ssub.s32 %s26, %s38
      %s213 = ssub.s32 %s27, %s34
      %s214 = sor.u32 %s212, %s213
      %p215 = scmp.eq.s32.totalorder %s214, 0
      %s217 = sadd.s32 %s216, 1
      %s218 = scalar_select %p215, %s216, %s217
      %p221 = pneg %p215
      %p222 = scmp.eq.s32.totalorder %s19, 1
      %p223 = por %p221, %p222
      %p224 = scmp.ne.s32.totalorder %s216, %s219
      %p225 = scmp.eq.s32.totalorder %s19, 0
      %p226 = por %p224, %p225
      %p227 = scmp.ne.s32.totalorder %s216, %s219
      %p228 = scmp.eq.s32.totalorder %s24, 1
      %p229 = por %p227, %p228
      %p230 = scmp.ne.s32.totalorder %s219, %s220
      %p231 = scmp.eq.s32.totalorder %s24, 0
      %p232 = por %p230, %p231
      %p233 = scmp.ne.s32.totalorder %s219, %s220
      %p234 = scmp.eq.s32.totalorder %s25, 1
      %p235 = por %p233, %p234
      %p237 = scmp.ne.s32.totalorder %s220, %s236
      %p238 = scmp.eq.s32.totalorder %s25, 0
      %p239 = por %p237, %p238
      %p240 = scmp.le.s32.totalorder 1, %s19
      %p241 = scmp.lt.s32.totalorder %s19, 3
      %p242 = pnand %p240, %p241
      %p243 = pneg %p242
      // Predicated region
      $region9: #{tpu_custom_call.1} parent=5 // pred_check
        _
      $region10: #{tpu_custom_call.1} parent=5 // pred_check_branch
        %245 = sbr.rel (%p242) target = $region12
      $region11: #{tpu_custom_call.1} parent=5 // pred_region
        %s246 = ssub.s32 %s19, 1
        // Predicated region
        $region13: #{tpu_custom_call.1} parent=11 // pred_check
          %p247 = pneg %p78
        $region14: #{tpu_custom_call.1} parent=11 // pred_check_branch
          %249 = sbr.rel (%p247) target = $region16
        $region15: #{tpu_custom_call.1} parent=11 // pred_region
          _
        $region16: #{tpu_custom_call.1} parent=11 // pred_fallthru
          _
        // Predicated region
        $region17: #{tpu_custom_call.1} parent=11 // pred_check
          %p250 = pneg %p99
        $region18: #{tpu_custom_call.1} parent=11 // pred_check_branch
          %252 = sbr.rel (%p250) target = $region20
        $region19: #{tpu_custom_call.1} parent=11 // pred_region
          _
        $region20: #{tpu_custom_call.1} parent=11 // pred_fallthru
          _
        // Predicated region
        $region21: #{tpu_custom_call.1} parent=11 // pred_check
          %p253 = pneg %p120
        $region22: #{tpu_custom_call.1} parent=11 // pred_check_branch
          %255 = sbr.rel (%p253) target = $region24
        $region23: #{tpu_custom_call.1} parent=11 // pred_region
          _
        $region24: #{tpu_custom_call.1} parent=11 // pred_fallthru
          _
        // Predicated region
        $region25: #{tpu_custom_call.1} parent=11 // pred_check
          %p256 = pneg %p141
        $region26: #{tpu_custom_call.1} parent=11 // pred_check_branch
          %258 = sbr.rel (%p256) target = $region28
        $region27: #{tpu_custom_call.1} parent=11 // pred_region
          %s260 = ssub.s32 256, 256
          %261 = vsyncadd [#allocation4], %s260
          %s262 = sshll.u32 [#allocation3], 4
          %s263 = int_to_ptr.vmem [resolvable:$true] %s262
          %268 = dma.hbm_to_vmem [thread:$0]  %s4, 256, %s263, [#allocation4], 64, 64, 4
        $region28: #{tpu_custom_call.1} parent=11 // pred_fallthru
          _
        // Predicated region
        $region29: #{tpu_custom_call.1} parent=11 // pred_check
          %p269 = pneg %p162
        $region30: #{tpu_custom_call.1} parent=11 // pred_check_branch
          %271 = sbr.rel (%p269) target = $region32
        $region31: #{tpu_custom_call.1} parent=11 // pred_region
          _
        $region32: #{tpu_custom_call.1} parent=11 // pred_fallthru
          _
        // Predicated region
        $region33: #{tpu_custom_call.1} parent=11 // pred_check
          %p272 = pneg %p183
        $region34: #{tpu_custom_call.1} parent=11 // pred_check_branch
          %274 = sbr.rel (%p272) target = $region36
        $region35: #{tpu_custom_call.1} parent=11 // pred_region
          %s276 = ssub.s32 256, 256
          %277 = vsyncadd [#allocation7], %s276
          %s278 = sshll.u32 [#allocation6], 4
          %s279 = int_to_ptr.vmem [resolvable:$true] %s278
          %284 = dma.hbm_to_vmem [thread:$0]  %s6, 256, %s279, [#allocation7], 64, 64, 4
        $region36: #{tpu_custom_call.1} parent=11 // pred_fallthru
          _
        // Predicated region
        $region37: #{tpu_custom_call.1} parent=11 // pred_check
          %p285 = pneg %p204
        $region38: #{tpu_custom_call.1} parent=11 // pred_check_branch
          %287 = sbr.rel (%p285) target = $region40
        $region39: #{tpu_custom_call.1} parent=11 // pred_region
          _
        $region40: #{tpu_custom_call.1} parent=11 // pred_fallthru
          _
      $region12: #{tpu_custom_call.1} parent=5 // pred_fallthru
        _
      %p288 = scmp.lt.s32.totalorder %s19, 2
      // Predicated region
      $region41: #{tpu_custom_call.1} parent=5 // pred_check
        %p289 = pneg %p288
      $region42: #{tpu_custom_call.1} parent=5 // pred_check_branch
        %291 = sbr.rel (%p289) target = $region44
      $region43: #{tpu_custom_call.1} parent=5 // pred_region
        // Predicated region
        $region45: #{tpu_custom_call.1} parent=43 // pred_check
          %p292 = pneg %p51
        $region46: #{tpu_custom_call.1} parent=43 // pred_check_branch
          %294 = sbr.rel (%p292) target = $region48
        $region47: #{tpu_custom_call.1} parent=43 // pred_region
          %p295 = scmp.lt.s32.totalorder %s26, 1
          %s296 = scalar_select %p295, %s26, 1
          %s297 = smul.addr %s296, 8
          %s298 = scalar_lea.vmem %s0, %s297
        $region48: #{tpu_custom_call.1} parent=43 // pred_fallthru
          _
      $region44: #{tpu_custom_call.1} parent=5 // pred_fallthru
        _
      %p299 = scmp.le.s32.totalorder 1, %s19
      %p300 = scmp.lt.s32.totalorder %s19, 3
      %p301 = pnand %p299, %p300
      %p302 = pneg %p301
      // Predicated region
      $region49: #{tpu_custom_call.1} parent=5 // pred_check
        _
      $region50: #{tpu_custom_call.1} parent=5 // pred_check_branch
        %304 = sbr.rel (%p301) target = $region52
      $region51: #{tpu_custom_call.1} parent=5 // pred_region
        %s305 = ssub.s32 %s19, 1
        // Predicated region
        $region53: #{tpu_custom_call.1} parent=51 // pred_check
          %p306 = pneg %p141
        $region54: #{tpu_custom_call.1} parent=51 // pred_check_branch
          %308 = sbr.rel (%p306) target = $region56
        $region55: #{tpu_custom_call.1} parent=51 // pred_region
          %309 = dma.done [#allocation4], 256
        $region56: #{tpu_custom_call.1} parent=51 // pred_fallthru
          _
        // Predicated region
        $region57: #{tpu_custom_call.1} parent=51 // pred_check
          %p310 = pneg %p183
        $region58: #{tpu_custom_call.1} parent=51 // pred_check_branch
          %312 = sbr.rel (%p310) target = $region60
        $region59: #{tpu_custom_call.1} parent=51 // pred_region
          %313 = dma.done [#allocation7], 256
        $region60: #{tpu_custom_call.1} parent=51 // pred_fallthru
          _
        %p314 = scmp.lt.s32.totalorder %s28, 1
        %s315 = scalar_select %p314, %s28, 1
        %s316 = smul.addr %s315, 8
        %s317 = scalar_lea.vmem %s0, %s316
        %p318 = pneg %p57
        %p319 = pneg %p54
        %p320 = pneg %p78
        %p321 = pneg %p75
        %p322 = pneg %p99
        %p323 = pneg %p96
        %p324 = pneg %p120
        %p325 = pneg %p117
        %p326 = pneg %p141
        %p327 = pneg %p138
        %p328 = pneg %p162
        %p329 = pneg %p159
        %p330 = pneg %p183
        %p331 = pneg %p180
        %p332 = pneg %p204
        %p333 = pneg %p201
        %p334 = pneg %p232
        %p335 = pneg %p229
        %s336 = sand.u32 %s219, 1
        %s337 = scalar_lea.sflag [#allocation5], %s336
        %s338 = sand.u32 %s219, 1
        %s339 = smul.addr %s338, 8
        %s340 = scalar_lea.vmem [#allocation8], %s339
        %p341 = scmp.lt.s32.totalorder %s28, 1
        %s342 = scalar_select %p341, %s28, 1
        %s343 = smul.addr %s342, 8
        %s344 = scalar_lea.vmem %s0, %s343
        %v346 = vld [vmem:[%s1] sm:$0x1]
        %v347 = vld [vmem:[%s5] sm:$0x1]
        %p348 = scmp.eq.s32.totalorder %s29, 0
        // Predicated region
        $region61: #{tpu_custom_call.1} parent=51 // pred_check
          %p349 = pneg %p348
        $region62: #{tpu_custom_call.1} parent=51 // pred_check_branch
          %351 = sbr.rel (%p349) target = $region64
        $region63: #{tpu_custom_call.1} parent=51 // pred_region
          %v352 = vld [vmem:[%s344] sm:$0xff]
          %v353 = vmul.f32 %v352, %v352
          %vm354 = vcmask 261120
          %v355 = vsel %vm354, %v353, 0.0
          %356 = vadd.xlane.f32.xlu0 %v355
          %v357 = vpop.xlane.xlu0 %356
          %v358 = vrcp.pop 32.0
          %v359 = vmul.f32 %v357, %v358
          %v360 = vadd.f32 %v359, 1e-06
          %v361 = vrsqrt.pop %v360
          %v362 = vmul.f32 %v352, %v361
          %v364 = vlaneseq
          %v365 = vshrl.u32 %v364, 7
          %v366 = vsub.s32 0, %v365
          %v367 = vrot.slane %v346, %v366
          %v369 = vmul.f32 %v362, %v367
          %v370 = vpack.c.bf16 %v369, %v369
          %v371 = vld [vmem:[%s3] sm:$0xf]
          %v372 = vld [vmem:[%s3 + $0x4] sm:$0xf]
          %v373 = vld [vmem:[%s3 + $0x8] sm:$0xf]
          %v374 = vld [vmem:[%s3 + $0xc] sm:$0xf]
          %v379 = vunpack.c.l.b16 %v371
          %v380 = vunpack.c.l.b16 %v372
          %v381 = vunpack.c.l.b16 %v373
          %v382 = vunpack.c.l.b16 %v374
          %v383 = vpack.c.b16 %v380, %v379
          %v384 = vpack.c.b16 %v382, %v381
          %v388 = vsel %vm354, %v370, 0
          %390 = vmatprep.subr.bf16.mxu0 0
          %391 = vmatpush1.bf16.msra.mxu0 0
          %392 = vmatprep.subr.bf16.mxu0 0
          %393 = vmatpush1.bf16.msra.mxu0 0
          %394 = vmatprep.subr.bf16.mxu0 0
          %395 = vmatpush1.bf16.msra.mxu0 0
          %396 = vmatprep.subr.bf16.mxu0 0
          %397 = vmatpush1.bf16.msra.mxu0 0
          %398 = vmatprep.subr.bf16.mxu0 0
          %399 = vmatpush1.bf16.msra.mxu0 0
          %400 = vmatprep.subr.bf16.mxu0 0
          %401 = vmatpush1.bf16.msra.mxu0 0
          %402 = vmatprep.subr.bf16.mxu0 0
          %403 = vmatpush1.bf16.msra.mxu0 %v384
          %404 = vmatprep.subr.bf16.mxu0 0
          %405 = vmatpush1.bf16.msra.mxu0 %v383
          %406 = vmatprep.subr.bf16.mxu0 0
          %407 = vmatpush2.bf16.msra.mxu0 0
          %408 = vmatprep.subr.bf16.mxu0 0
          %409 = vmatpush2.bf16.msra.mxu0 0
          %410 = vmatprep.subr.bf16.mxu0 0
          %411 = vmatpush2.bf16.msra.mxu0 0
          %412 = vmatprep.subr.bf16.mxu0 0
          %413 = vmatpush2.bf16.msra.mxu0 0
          %414 = vmatprep.subr.bf16.mxu0 0
          %415 = vmatpush2.bf16.msra.mxu0 0
          %416 = vmatprep.subr.bf16.mxu0 0
          %417 = vmatpush2.bf16.msra.mxu0 0
          %418 = vmatprep.subr.bf16.mxu0 0
          %419 = vmatpush2.bf16.msra.mxu0 0
          %420 = vmatprep.subr.bf16.mxu0 0
          %421 = vmatpush2.bf16.msra.mxu0 0
          %422 = vmatprep.mubr.bf16.mxu0 0
          %423 = vmatmul.mubr.bf16.gmra.mxu0 %v388
          %v424 = vpop.f32.mrf.mxu0
          %v425 = vadd.f32 0.0, %v424
          %v426 = vpop.f32.mrf.mxu0
          %v427 = vpop.f32.mrf.mxu0
          %v428 = vpop.f32.mrf.mxu0
          %429 = vdwg.mxu0
          %v430 = vpack.c.bf16 %v425, %v425
          %vm431 = vcmask 519168
          %432 = vst.msk [vmem:[#allocation2] sm:$0xf] %vm431, %v430
        $region64: #{tpu_custom_call.1} parent=51 // pred_fallthru
          _
        %s433 = smul.u32 %s29, 8
        %s434 = scalar_lea.vmem %s344, %s433
        %v435 = vld [vmem:[%s434] sm:$0xff]
        %v436 = vmul.f32 %v435, %v435
        %vm437 = vcmask 261120
        %v438 = vsel %vm437, %v436, 0.0
        %439 = vadd.xlane.f32.xlu0 %v438
        %v440 = vpop.xlane.xlu0 %439
        %v441 = vrcp.pop 32.0
        %v442 = vmul.f32 %v440, %v441
        %v443 = vadd.f32 %v442, 1e-06
        %v444 = vrsqrt.pop %v443
        %v445 = vmul.f32 %v435, %v444
        %v447 = vlaneseq
        %v448 = vshrl.u32 %v447, 7
        %v449 = vsub.s32 0, %v448
        %v450 = vrot.slane %v346, %v449
        %v452 = vmul.f32 %v445, %v450
        %v453 = vpack.c.bf16 %v452, %v452
        %v454 = vld [vmem:[%s2] sm:$0xf]
        %v455 = vld [vmem:[%s2 + $0x4] sm:$0xf]
        %v456 = vld [vmem:[%s2 + $0x8] sm:$0xf]
        %v457 = vld [vmem:[%s2 + $0xc] sm:$0xf]
        %v462 = vunpack.c.l.b16 %v454
        %v463 = vunpack.c.l.b16 %v455
        %v464 = vunpack.c.l.b16 %v456
        %v465 = vunpack.c.l.b16 %v457
        %v466 = vpack.c.b16 %v463, %v462
        %v467 = vpack.c.b16 %v465, %v464
        %v471 = vsel %vm437, %v453, 0
        %473 = vmatprep.subr.bf16.mxu0 0
        %474 = vmatpush1.bf16.msra.mxu0 0
        %475 = vmatprep.subr.bf16.mxu0 0
        %476 = vmatpush1.bf16.msra.mxu0 0
        %477 = vmatprep.subr.bf16.mxu0 0
        %478 = vmatpush1.bf16.msra.mxu0 0
        %479 = vmatprep.subr.bf16.mxu0 0
        %480 = vmatpush1.bf16.msra.mxu0 0
        %481 = vmatprep.subr.bf16.mxu0 0
        %482 = vmatpush1.bf16.msra.mxu0 0
        %483 = vmatprep.subr.bf16.mxu0 0
        %484 = vmatpush1.bf16.msra.mxu0 0
        %485 = vmatprep.subr.bf16.mxu0 0
        %486 = vmatpush1.bf16.msra.mxu0 %v467
        %487 = vmatprep.subr.bf16.mxu0 0
        %488 = vmatpush1.bf16.msra.mxu0 %v466
        %489 = vmatprep.subr.bf16.mxu0 0
        %490 = vmatpush2.bf16.msra.mxu0 0
        %491 = vmatprep.subr.bf16.mxu0 0
        %492 = vmatpush2.bf16.msra.mxu0 0
        %493 = vmatprep.subr.bf16.mxu0 0
        %494 = vmatpush2.bf16.msra.mxu0 0
        %495 = vmatprep.subr.bf16.mxu0 0
        %496 = vmatpush2.bf16.msra.mxu0 0
        %497 = vmatprep.subr.bf16.mxu0 0
        %498 = vmatpush2.bf16.msra.mxu0 0
        %499 = vmatprep.subr.bf16.mxu0 0
        %500 = vmatpush2.bf16.msra.mxu0 0
        %501 = vmatprep.subr.bf16.mxu0 0
        %502 = vmatpush2.bf16.msra.mxu0 0
        %503 = vmatprep.subr.bf16.mxu0 0
        %504 = vmatpush2.bf16.msra.mxu0 0
        %505 = vmatprep.mubr.bf16.mxu0 0
        %506 = vmatmul.mubr.bf16.gmra.mxu0 %v471
        %v507 = vpop.f32.mrf.mxu0
        %v508 = vadd.f32 0.0, %v507
        %v509 = vpop.f32.mrf.mxu0
        %v510 = vpop.f32.mrf.mxu0
        %v511 = vpop.f32.mrf.mxu0
        %512 = vdwg.mxu0
        %v513 = vmul.f32 %v508, 0.35355338
        %v514 = vpack.c.bf16 %v513, %v513
        %v515 = vld [vmem:[#allocation2] sm:$0xf]
        %vm516 = vcmask 64512
        %v518 = vsel %vm516, %v514, 0
        %v521 = vsel %vm516, %v515, 0
        %523 = vmatprep.subr.bf16.mxu0 0
        %524 = vmatpush1.bf16.xpose.msra.mxu0 0
        %525 = vmatprep.subr.bf16.mxu0 0
        %526 = vmatpush1.bf16.xpose.msra.mxu0 0
        %527 = vmatprep.subr.bf16.mxu0 0
        %528 = vmatpush1.bf16.xpose.msra.mxu0 0
        %529 = vmatprep.subr.bf16.mxu0 0
        %530 = vmatpush1.bf16.xpose.msra.mxu0 0
        %531 = vmatprep.subr.bf16.mxu0 0
        %532 = vmatpush1.bf16.xpose.msra.mxu0 0
        %533 = vmatprep.subr.bf16.mxu0 0
        %534 = vmatpush1.bf16.xpose.msra.mxu0 0
        %535 = vmatprep.subr.bf16.mxu0 0
        %536 = vmatpush1.bf16.xpose.msra.mxu0 0
        %537 = vmatprep.subr.bf16.mxu0 0
        %538 = vmatpush1.bf16.xpose.msra.mxu0 %v521
        %539 = vmatprep.subr.bf16.mxu0 0
        %540 = vmatpush2.bf16.xpose.msra.mxu0 0
        %541 = vmatprep.subr.bf16.mxu0 0
        %542 = vmatpush2.bf16.xpose.msra.mxu0 0
        %543 = vmatprep.subr.bf16.mxu0 0
        %544 = vmatpush2.bf16.xpose.msra.mxu0 0
        %545 = vmatprep.subr.bf16.mxu0 0
        %546 = vmatpush2.bf16.xpose.msra.mxu0 0
        %547 = vmatprep.subr.bf16.mxu0 0
        %548 = vmatpush2.bf16.xpose.msra.mxu0 0
        %549 = vmatprep.subr.bf16.mxu0 0
        %550 = vmatpush2.bf16.xpose.msra.mxu0 0
        %551 = vmatprep.subr.bf16.mxu0 0
        %552 = vmatpush2.bf16.xpose.msra.mxu0 0
        %553 = vmatprep.subr.bf16.mxu0 0
        %554 = vmatpush2.bf16.xpose.msra.mxu0 0
        %555 = vmatprep.mubr.bf16.mxu0 0
        %556 = vmatmul.mubr.bf16.gmra.mxu0 %v518
        %v557 = vpop.f32.mrf.mxu0
        %v558 = vadd.f32 0.0, %v557
        %v559 = vpop.f32.mrf.mxu0
        %v560 = vpop.f32.mrf.mxu0
        %v561 = vpop.f32.mrf.mxu0
        %562 = vdwg.mxu0
        %v563 = vsel %vm516, %v558, -inf
        %564 = vmax.xlane.f32.xlu0 %v563
        %v565 = vpop.xlane.xlu0 %564
        %v566 = vmax.f32 %v565, -1e+30
        %v567 = vsub.f32 -1e+30, %v566
        %v568 = vmul.f32 %v567, 1.442695
        %v569 = vpow.pop %v568
        %v570 = vsub.f32 %v558, %v566
        %v571 = vmul.f32 %v570, 1.442695
        %v572 = vpow.pop %v571
        %v573 = vmul.f32 %v569, 0.0
        %v574 = vsel %vm516, %v572, 0.0
        %575 = vadd.xlane.f32.xlu0 %v574
        %v576 = vpop.xlane.xlu0 %575
        %v577 = vadd.f32 %v573, %v576
        %v578 = vpack.c.bf16 %v572, %v572
        %v580 = vunpack.c.l.b16 %v515
        %v581 = vpack.c.b16 %v580, %v580
        %582 = vrot.lane.b32.xlu0 %v581, 96
        %v583 = vpop.permute.xlu0 %582
        %v585 = vsel %vm516, %v578, 0
        %vm587 = vcmask 1043456
        %v589 = vsel %vm587, %v583, 0
        %591 = vmatprep.subr.bf16.mxu0 0
        %592 = vmatpush1.bf16.msra.mxu0 0
        %593 = vmatprep.subr.bf16.mxu0 0
        %594 = vmatpush1.bf16.msra.mxu0 0
        %595 = vmatprep.subr.bf16.mxu0 0
        %596 = vmatpush1.bf16.msra.mxu0 0
        %597 = vmatprep.subr.bf16.mxu0 0
        %598 = vmatpush1.bf16.msra.mxu0 0
        %599 = vmatprep.subr.bf16.mxu0 0
        %600 = vmatpush1.bf16.msra.mxu0 0
        %601 = vmatprep.subr.bf16.mxu0 0
        %602 = vmatpush1.bf16.msra.mxu0 0
        %603 = vmatprep.subr.bf16.mxu0 0
        %604 = vmatpush1.bf16.msra.mxu0 0
        %605 = vmatprep.subr.bf16.mxu0 0
        %606 = vmatpush1.bf16.msra.mxu0 %v589
        %607 = vmatprep.subr.bf16.mxu0 0
        %608 = vmatpush2.bf16.msra.mxu0 0
        %609 = vmatprep.subr.bf16.mxu0 0
        %610 = vmatpush2.bf16.msra.mxu0 0
        %611 = vmatprep.subr.bf16.mxu0 0
        %612 = vmatpush2.bf16.msra.mxu0 0
        %613 = vmatprep.subr.bf16.mxu0 0
        %614 = vmatpush2.bf16.msra.mxu0 0
        %615 = vmatprep.subr.bf16.mxu0 0
        %616 = vmatpush2.bf16.msra.mxu0 0
        %617 = vmatprep.subr.bf16.mxu0 0
        %618 = vmatpush2.bf16.msra.mxu0 0
        %619 = vmatprep.subr.bf16.mxu0 0
        %620 = vmatpush2.bf16.msra.mxu0 0
        %621 = vmatprep.subr.bf16.mxu0 0
        %622 = vmatpush2.bf16.msra.mxu0 0
        %623 = vmatprep.mubr.bf16.mxu0 0
        %624 = vmatmul.mubr.bf16.gmra.mxu0 %v585
        %v625 = vpop.f32.mrf.mxu0
        %v626 = vadd.f32 0.0, %v625
        %v627 = vpop.f32.mrf.mxu0
        %v628 = vpop.f32.mrf.mxu0
        %v629 = vpop.f32.mrf.mxu0
        %630 = vdwg.mxu0
        %v631 = vadd.f32 %v573, %v626
        %v632 = vrcp.pop %v577
        %v633 = vmul.f32 %v631, %v632
        %635 = vrot.lane.b32.xlu0 %v514, 120
        %v636 = vpop.permute.xlu0 %635
        %637 = vrot.lane.b32.xlu0 %v581, 120
        %v638 = vpop.permute.xlu0 %637
        %v640 = vsel %vm516, %v636, 0
        %v643 = vsel %vm516, %v638, 0
        %645 = vmatprep.subr.bf16.mxu0 0
        %646 = vmatpush1.bf16.xpose.msra.mxu0 0
        %647 = vmatprep.subr.bf16.mxu0 0
        %648 = vmatpush1.bf16.xpose.msra.mxu0 0
        %649 = vmatprep.subr.bf16.mxu0 0
        %650 = vmatpush1.bf16.xpose.msra.mxu0 0
        %651 = vmatprep.subr.bf16.mxu0 0
        %652 = vmatpush1.bf16.xpose.msra.mxu0 0
        %653 = vmatprep.subr.bf16.mxu0 0
        %654 = vmatpush1.bf16.xpose.msra.mxu0 0
        %655 = vmatprep.subr.bf16.mxu0 0
        %656 = vmatpush1.bf16.xpose.msra.mxu0 0
        %657 = vmatprep.subr.bf16.mxu0 0
        %658 = vmatpush1.bf16.xpose.msra.mxu0 0
        %659 = vmatprep.subr.bf16.mxu0 0
        %660 = vmatpush1.bf16.xpose.msra.mxu0 %v643
        %661 = vmatprep.subr.bf16.mxu0 0
        %662 = vmatpush2.bf16.xpose.msra.mxu0 0
        %663 = vmatprep.subr.bf16.mxu0 0
        %664 = vmatpush2.bf16.xpose.msra.mxu0 0
        %665 = vmatprep.subr.bf16.mxu0 0
        %666 = vmatpush2.bf16.xpose.msra.mxu0 0
        %667 = vmatprep.subr.bf16.mxu0 0
        %668 = vmatpush2.bf16.xpose.msra.mxu0 0
        %669 = vmatprep.subr.bf16.mxu0 0
        %670 = vmatpush2.bf16.xpose.msra.mxu0 0
        %671 = vmatprep.subr.bf16.mxu0 0
        %672 = vmatpush2.bf16.xpose.msra.mxu0 0
        %673 = vmatprep.subr.bf16.mxu0 0
        %674 = vmatpush2.bf16.xpose.msra.mxu0 0
        %675 = vmatprep.subr.bf16.mxu0 0
        %676 = vmatpush2.bf16.xpose.msra.mxu0 0
        %677 = vmatprep.mubr.bf16.mxu0 0
        %678 = vmatmul.mubr.bf16.gmra.mxu0 %v640
        %v679 = vpop.f32.mrf.mxu0
        %v680 = vadd.f32 0.0, %v679
        %v681 = vpop.f32.mrf.mxu0
        %v682 = vpop.f32.mrf.mxu0
        %v683 = vpop.f32.mrf.mxu0
        %684 = vdwg.mxu0
        %v685 = vsel %vm516, %v680, -inf
        %686 = vmax.xlane.f32.xlu0 %v685
        %v687 = vpop.xlane.xlu0 %686
        %v688 = vmax.f32 %v687, -1e+30
        %v689 = vsub.f32 -1e+30, %v688
        %v690 = vmul.f32 %v689, 1.442695
        %v691 = vpow.pop %v690
        %v692 = vsub.f32 %v680, %v688
        %v693 = vmul.f32 %v692, 1.442695
        %v694 = vpow.pop %v693
        %v695 = vmul.f32 %v691, 0.0
        %v696 = vsel %vm516, %v694, 0.0
        %697 = vadd.xlane.f32.xlu0 %v696
        %v698 = vpop.xlane.xlu0 %697
        %v699 = vadd.f32 %v695, %v698
        %v700 = vpack.c.bf16 %v694, %v694
        %701 = vrot.lane.b32.xlu0 %v581, 88
        %v702 = vpop.permute.xlu0 %701
        %v704 = vsel %vm516, %v700, 0
        %v707 = vsel %vm587, %v702, 0
        %709 = vmatprep.subr.bf16.mxu0 0
        %710 = vmatpush1.bf16.msra.mxu0 0
        %711 = vmatprep.subr.bf16.mxu0 0
        %712 = vmatpush1.bf16.msra.mxu0 0
        %713 = vmatprep.subr.bf16.mxu0 0
        %714 = vmatpush1.bf16.msra.mxu0 0
        %715 = vmatprep.subr.bf16.mxu0 0
        %716 = vmatpush1.bf16.msra.mxu0 0
        %717 = vmatprep.subr.bf16.mxu0 0
        %718 = vmatpush1.bf16.msra.mxu0 0
        %719 = vmatprep.subr.bf16.mxu0 0
        %720 = vmatpush1.bf16.msra.mxu0 0
        %721 = vmatprep.subr.bf16.mxu0 0
        %722 = vmatpush1.bf16.msra.mxu0 0
        %723 = vmatprep.subr.bf16.mxu0 0
        %724 = vmatpush1.bf16.msra.mxu0 %v707
        %725 = vmatprep.subr.bf16.mxu0 0
        %726 = vmatpush2.bf16.msra.mxu0 0
        %727 = vmatprep.subr.bf16.mxu0 0
        %728 = vmatpush2.bf16.msra.mxu0 0
        %729 = vmatprep.subr.bf16.mxu0 0
        %730 = vmatpush2.bf16.msra.mxu0 0
        %731 = vmatprep.subr.bf16.mxu0 0
        %732 = vmatpush2.bf16.msra.mxu0 0
        %733 = vmatprep.subr.bf16.mxu0 0
        %734 = vmatpush2.bf16.msra.mxu0 0
        %735 = vmatprep.subr.bf16.mxu0 0
        %736 = vmatpush2.bf16.msra.mxu0 0
        %737 = vmatprep.subr.bf16.mxu0 0
        %738 = vmatpush2.bf16.msra.mxu0 0
        %739 = vmatprep.subr.bf16.mxu0 0
        %740 = vmatpush2.bf16.msra.mxu0 0
        %741 = vmatprep.mubr.bf16.mxu0 0
        %742 = vmatmul.mubr.bf16.gmra.mxu0 %v704
        %v743 = vpop.f32.mrf.mxu0
        %v744 = vadd.f32 0.0, %v743
        %v745 = vpop.f32.mrf.mxu0
        %v746 = vpop.f32.mrf.mxu0
        %v747 = vpop.f32.mrf.mxu0
        %748 = vdwg.mxu0
        %v749 = vadd.f32 %v695, %v744
        %v750 = vrcp.pop %v699
        %v751 = vmul.f32 %v749, %v750
        %752 = vrot.lane.b32.xlu0 %v514, 112
        %v753 = vpop.permute.xlu0 %752
        %754 = vrot.lane.b32.xlu0 %v581, 112
        %v755 = vpop.permute.xlu0 %754
        %v757 = vsel %vm516, %v753, 0
        %v760 = vsel %vm516, %v755, 0
        %762 = vmatprep.subr.bf16.mxu0 0
        %763 = vmatpush1.bf16.xpose.msra.mxu0 0
        %764 = vmatprep.subr.bf16.mxu0 0
        %765 = vmatpush1.bf16.xpose.msra.mxu0 0
        %766 = vmatprep.subr.bf16.mxu0 0
        %767 = vmatpush1.bf16.xpose.msra.mxu0 0
        %768 = vmatprep.subr.bf16.mxu0 0
        %769 = vmatpush1.bf16.xpose.msra.mxu0 0
        %770 = vmatprep.subr.bf16.mxu0 0
        %771 = vmatpush1.bf16.xpose.msra.mxu0 0
        %772 = vmatprep.subr.bf16.mxu0 0
        %773 = vmatpush1.bf16.xpose.msra.mxu0 0
        %774 = vmatprep.subr.bf16.mxu0 0
        %775 = vmatpush1.bf16.xpose.msra.mxu0 0
        %776 = vmatprep.subr.bf16.mxu0 0
        %777 = vmatpush1.bf16.xpose.msra.mxu0 %v760
        %778 = vmatprep.subr.bf16.mxu0 0
        %779 = vmatpush2.bf16.xpose.msra.mxu0 0
        %780 = vmatprep.subr.bf16.mxu0 0
        %781 = vmatpush2.bf16.xpose.msra.mxu0 0
        %782 = vmatprep.subr.bf16.mxu0 0
        %783 = vmatpush2.bf16.xpose.msra.mxu0 0
        %784 = vmatprep.subr.bf16.mxu0 0
        %785 = vmatpush2.bf16.xpose.msra.mxu0 0
        %786 = vmatprep.subr.bf16.mxu0 0
        %787 = vmatpush2.bf16.xpose.msra.mxu0 0
        %788 = vmatprep.subr.bf16.mxu0 0
        %789 = vmatpush2.bf16.xpose.msra.mxu0 0
        %790 = vmatprep.subr.bf16.mxu0 0
        %791 = vmatpush2.bf16.xpose.msra.mxu0 0
        %792 = vmatprep.subr.bf16.mxu0 0
        %793 = vmatpush2.bf16.xpose.msra.mxu0 0
        %794 = vmatprep.mubr.bf16.mxu0 0
        %795 = vmatmul.mubr.bf16.gmra.mxu0 %v757
        %v796 = vpop.f32.mrf.mxu0
        %v797 = vadd.f32 0.0, %v796
        %v798 = vpop.f32.mrf.mxu0
        %v799 = vpop.f32.mrf.mxu0
        %v800 = vpop.f32.mrf.mxu0
        %801 = vdwg.mxu0
        %v802 = vsel %vm516, %v797, -inf
        %803 = vmax.xlane.f32.xlu0 %v802
        %v804 = vpop.xlane.xlu0 %803
        %v805 = vmax.f32 %v804, -1e+30
        %v806 = vsub.f32 -1e+30, %v805
        %v807 = vmul.f32 %v806, 1.442695
        %v808 = vpow.pop %v807
        %v809 = vsub.f32 %v797, %v805
        %v810 = vmul.f32 %v809, 1.442695
        %v811 = vpow.pop %v810
        %v812 = vmul.f32 %v808, 0.0
        %v813 = vsel %vm516, %v811, 0.0
        %814 = vadd.xlane.f32.xlu0 %v813
        %v815 = vpop.xlane.xlu0 %814
        %v816 = vadd.f32 %v812, %v815
        %v817 = vpack.c.bf16 %v811, %v811
        %818 = vrot.lane.b32.xlu0 %v581, 80
        %v819 = vpop.permute.xlu0 %818
        %v821 = vsel %vm516, %v817, 0
        %v824 = vsel %vm587, %v819, 0
        %826 = vmatprep.subr.bf16.mxu0 0
        %827 = vmatpush1.bf16.msra.mxu0 0
        %828 = vmatprep.subr.bf16.mxu0 0
        %829 = vmatpush1.bf16.msra.mxu0 0
        %830 = vmatprep.subr.bf16.mxu0 0
        %831 = vmatpush1.bf16.msra.mxu0 0
        %832 = vmatprep.subr.bf16.mxu0 0
        %833 = vmatpush1.bf16.msra.mxu0 0
        %834 = vmatprep.subr.bf16.mxu0 0
        %835 = vmatpush1.bf16.msra.mxu0 0
        %836 = vmatprep.subr.bf16.mxu0 0
        %837 = vmatpush1.bf16.msra.mxu0 0
        %838 = vmatprep.subr.bf16.mxu0 0
        %839 = vmatpush1.bf16.msra.mxu0 0
        %840 = vmatprep.subr.bf16.mxu0 0
        %841 = vmatpush1.bf16.msra.mxu0 %v824
        %842 = vmatprep.subr.bf16.mxu0 0
        %843 = vmatpush2.bf16.msra.mxu0 0
        %844 = vmatprep.subr.bf16.mxu0 0
        %845 = vmatpush2.bf16.msra.mxu0 0
        %846 = vmatprep.subr.bf16.mxu0 0
        %847 = vmatpush2.bf16.msra.mxu0 0
        %848 = vmatprep.subr.bf16.mxu0 0
        %849 = vmatpush2.bf16.msra.mxu0 0
        %850 = vmatprep.subr.bf16.mxu0 0
        %851 = vmatpush2.bf16.msra.mxu0 0
        %852 = vmatprep.subr.bf16.mxu0 0
        %853 = vmatpush2.bf16.msra.mxu0 0
        %854 = vmatprep.subr.bf16.mxu0 0
        %855 = vmatpush2.bf16.msra.mxu0 0
        %856 = vmatprep.subr.bf16.mxu0 0
        %857 = vmatpush2.bf16.msra.mxu0 0
        %858 = vmatprep.mubr.bf16.mxu0 0
        %859 = vmatmul.mubr.bf16.gmra.mxu0 %v821
        %v860 = vpop.f32.mrf.mxu0
        %v861 = vadd.f32 0.0, %v860
        %v862 = vpop.f32.mrf.mxu0
        %v863 = vpop.f32.mrf.mxu0
        %v864 = vpop.f32.mrf.mxu0
        %865 = vdwg.mxu0
        %v866 = vadd.f32 %v812, %v861
        %v867 = vrcp.pop %v816
        %v868 = vmul.f32 %v866, %v867
        %869 = vrot.lane.b32.xlu0 %v514, 104
        %v870 = vpop.permute.xlu0 %869
        %871 = vrot.lane.b32.xlu0 %v581, 104
        %v872 = vpop.permute.xlu0 %871
        %v874 = vsel %vm516, %v870, 0
        %v877 = vsel %vm516, %v872, 0
        %879 = vmatprep.subr.bf16.mxu0 0
        %880 = vmatpush1.bf16.xpose.msra.mxu0 0
        %881 = vmatprep.subr.bf16.mxu0 0
        %882 = vmatpush1.bf16.xpose.msra.mxu0 0
        %883 = vmatprep.subr.bf16.mxu0 0
        %884 = vmatpush1.bf16.xpose.msra.mxu0 0
        %885 = vmatprep.subr.bf16.mxu0 0
        %886 = vmatpush1.bf16.xpose.msra.mxu0 0
        %887 = vmatprep.subr.bf16.mxu0 0
        %888 = vmatpush1.bf16.xpose.msra.mxu0 0
        %889 = vmatprep.subr.bf16.mxu0 0
        %890 = vmatpush1.bf16.xpose.msra.mxu0 0
        %891 = vmatprep.subr.bf16.mxu0 0
        %892 = vmatpush1.bf16.xpose.msra.mxu0 0
        %893 = vmatprep.subr.bf16.mxu0 0
        %894 = vmatpush1.bf16.xpose.msra.mxu0 %v877
        %895 = vmatprep.subr.bf16.mxu0 0
        %896 = vmatpush2.bf16.xpose.msra.mxu0 0
        %897 = vmatprep.subr.bf16.mxu0 0
        %898 = vmatpush2.bf16.xpose.msra.mxu0 0
        %899 = vmatprep.subr.bf16.mxu0 0
        %900 = vmatpush2.bf16.xpose.msra.mxu0 0
        %901 = vmatprep.subr.bf16.mxu0 0
        %902 = vmatpush2.bf16.xpose.msra.mxu0 0
        %903 = vmatprep.subr.bf16.mxu0 0
        %904 = vmatpush2.bf16.xpose.msra.mxu0 0
        %905 = vmatprep.subr.bf16.mxu0 0
        %906 = vmatpush2.bf16.xpose.msra.mxu0 0
        %907 = vmatprep.subr.bf16.mxu0 0
        %908 = vmatpush2.bf16.xpose.msra.mxu0 0
        %909 = vmatprep.subr.bf16.mxu0 0
        %910 = vmatpush2.bf16.xpose.msra.mxu0 0
        %911 = vmatprep.mubr.bf16.mxu0 0
        %912 = vmatmul.mubr.bf16.gmra.mxu0 %v874
        %v913 = vpop.f32.mrf.mxu0
        %v914 = vadd.f32 0.0, %v913
        %v915 = vpop.f32.mrf.mxu0
        %v916 = vpop.f32.mrf.mxu0
        %v917 = vpop.f32.mrf.mxu0
        %918 = vdwg.mxu0
        %v919 = vsel %vm516, %v914, -inf
        %920 = vmax.xlane.f32.xlu0 %v919
        %v921 = vpop.xlane.xlu0 %920
        %v922 = vmax.f32 %v921, -1e+30
        %v923 = vsub.f32 -1e+30, %v922
        %v924 = vmul.f32 %v923, 1.442695
        %v925 = vpow.pop %v924
        %v926 = vsub.f32 %v914, %v922
        %v927 = vmul.f32 %v926, 1.442695
        %v928 = vpow.pop %v927
        %v929 = vmul.f32 %v925, 0.0
        %v930 = vsel %vm516, %v928, 0.0
        %931 = vadd.xlane.f32.xlu0 %v930
        %v932 = vpop.xlane.xlu0 %931
        %v933 = vadd.f32 %v929, %v932
        %v934 = vpack.c.bf16 %v928, %v928
        %935 = vrot.lane.b32.xlu0 %v581, 72
        %v936 = vpop.permute.xlu0 %935
        %v938 = vsel %vm516, %v934, 0
        %v941 = vsel %vm587, %v936, 0
        %943 = vmatprep.subr.bf16.mxu0 0
        %944 = vmatpush1.bf16.msra.mxu0 0
        %945 = vmatprep.subr.bf16.mxu0 0
        %946 = vmatpush1.bf16.msra.mxu0 0
        %947 = vmatprep.subr.bf16.mxu0 0
        %948 = vmatpush1.bf16.msra.mxu0 0
        %949 = vmatprep.subr.bf16.mxu0 0
        %950 = vmatpush1.bf16.msra.mxu0 0
        %951 = vmatprep.subr.bf16.mxu0 0
        %952 = vmatpush1.bf16.msra.mxu0 0
        %953 = vmatprep.subr.bf16.mxu0 0
        %954 = vmatpush1.bf16.msra.mxu0 0
        %955 = vmatprep.subr.bf16.mxu0 0
        %956 = vmatpush1.bf16.msra.mxu0 0
        %957 = vmatprep.subr.bf16.mxu0 0
        %958 = vmatpush1.bf16.msra.mxu0 %v941
        %959 = vmatprep.subr.bf16.mxu0 0
        %960 = vmatpush2.bf16.msra.mxu0 0
        %961 = vmatprep.subr.bf16.mxu0 0
        %962 = vmatpush2.bf16.msra.mxu0 0
        %963 = vmatprep.subr.bf16.mxu0 0
        %964 = vmatpush2.bf16.msra.mxu0 0
        %965 = vmatprep.subr.bf16.mxu0 0
        %966 = vmatpush2.bf16.msra.mxu0 0
        %967 = vmatprep.subr.bf16.mxu0 0
        %968 = vmatpush2.bf16.msra.mxu0 0
        %969 = vmatprep.subr.bf16.mxu0 0
        %970 = vmatpush2.bf16.msra.mxu0 0
        %971 = vmatprep.subr.bf16.mxu0 0
        %972 = vmatpush2.bf16.msra.mxu0 0
        %973 = vmatprep.subr.bf16.mxu0 0
        %974 = vmatpush2.bf16.msra.mxu0 0
        %975 = vmatprep.mubr.bf16.mxu0 0
        %976 = vmatmul.mubr.bf16.gmra.mxu0 %v938
        %v977 = vpop.f32.mrf.mxu0
        %v978 = vadd.f32 0.0, %v977
        %v979 = vpop.f32.mrf.mxu0
        %v980 = vpop.f32.mrf.mxu0
        %v981 = vpop.f32.mrf.mxu0
        %982 = vdwg.mxu0
        %v983 = vadd.f32 %v929, %v978
        %v984 = vrcp.pop %v933
        %v985 = vmul.f32 %v983, %v984
        %987 = vrot.lane.b32.xlu0 %v751, 8
        %v988 = vpop.permute.xlu0 %987
        %991 = vrot.lane.b32.xlu0 %v868, 16
        %v992 = vpop.permute.xlu0 %991
        %995 = vrot.lane.b32.xlu0 %v985, 24
        %v996 = vpop.permute.xlu0 %995
        %v998 = vsel %vm516, %v633, %v988
        %vm999 = vcmask 130048
        %v1000 = vsel %vm999, %v998, %v992
        %vm1001 = vcmask 195584
        %v1002 = vsel %vm1001, %v1000, %v996
        %v1003 = vpack.c.bf16 %v1002, %v1002
        %v1004 = vld [vmem:[#allocation3] sm:$0xf]
        %v1005 = vld [vmem:[#allocation3 + $0x4] sm:$0xf]
        %v1006 = vld [vmem:[#allocation3 + $0x8] sm:$0xf]
        %v1007 = vld [vmem:[#allocation3 + $0xc] sm:$0xf]
        %v1012 = vunpack.c.l.b16 %v1004
        %v1013 = vunpack.c.l.b16 %v1005
        %v1014 = vunpack.c.l.b16 %v1006
        %v1015 = vunpack.c.l.b16 %v1007
        %v1016 = vpack.c.b16 %v1013, %v1012
        %v1017 = vpack.c.b16 %v1015, %v1014
        %v1021 = vsel %vm437, %v1003, 0
        %1023 = vmatprep.subr.bf16.mxu0 0
        %1024 = vmatpush1.bf16.msra.mxu0 0
        %1025 = vmatprep.subr.bf16.mxu0 0
        %1026 = vmatpush1.bf16.msra.mxu0 0
        %1027 = vmatprep.subr.bf16.mxu0 0
        %1028 = vmatpush1.bf16.msra.mxu0 0
        %1029 = vmatprep.subr.bf16.mxu0 0
        %1030 = vmatpush1.bf16.msra.mxu0 0
        %1031 = vmatprep.subr.bf16.mxu0 0
        %1032 = vmatpush1.bf16.msra.mxu0 0
        %1033 = vmatprep.subr.bf16.mxu0 0
        %1034 = vmatpush1.bf16.msra.mxu0 0
        %1035 = vmatprep.subr.bf16.mxu0 0
        %1036 = vmatpush1.bf16.msra.mxu0 %v1017
        %1037 = vmatprep.subr.bf16.mxu0 0
        %1038 = vmatpush1.bf16.msra.mxu0 %v1016
        %1039 = vmatprep.subr.bf16.mxu0 0
        %1040 = vmatpush2.bf16.msra.mxu0 0
        %1041 = vmatprep.subr.bf16.mxu0 0
        %1042 = vmatpush2.bf16.msra.mxu0 0
        %1043 = vmatprep.subr.bf16.mxu0 0
        %1044 = vmatpush2.bf16.msra.mxu0 0
        %1045 = vmatprep.subr.bf16.mxu0 0
        %1046 = vmatpush2.bf16.msra.mxu0 0
        %1047 = vmatprep.subr.bf16.mxu0 0
        %1048 = vmatpush2.bf16.msra.mxu0 0
        %1049 = vmatprep.subr.bf16.mxu0 0
        %1050 = vmatpush2.bf16.msra.mxu0 0
        %1051 = vmatprep.subr.bf16.mxu0 0
        %1052 = vmatpush2.bf16.msra.mxu0 0
        %1053 = vmatprep.subr.bf16.mxu0 0
        %1054 = vmatpush2.bf16.msra.mxu0 0
        %1055 = vmatprep.mubr.bf16.mxu0 0
        %1056 = vmatmul.mubr.bf16.gmra.mxu0 %v1021
        %v1057 = vpop.f32.mrf.mxu0
        %v1058 = vadd.f32 0.0, %v1057
        %v1059 = vpop.f32.mrf.mxu0
        %v1060 = vpop.f32.mrf.mxu0
        %v1061 = vpop.f32.mrf.mxu0
        %1062 = vdwg.mxu0
        %v1063 = vadd.f32 %v435, %v1058
        %v1064 = vmul.f32 %v1063, %v1063
        %v1065 = vsel %vm437, %v1064, 0.0
        %1066 = vadd.xlane.f32.xlu0 %v1065
        %v1067 = vpop.xlane.xlu0 %1066
        %v1068 = vmul.f32 %v1067, %v441
        %v1069 = vadd.f32 %v1068, 1e-06
        %v1070 = vrsqrt.pop %v1069
        %v1071 = vmul.f32 %v1063, %v1070
        %v1073 = vlaneseq
        %v1074 = vshrl.u32 %v1073, 7
        %v1075 = vsub.s32 0, %v1074
        %v1076 = vrot.slane %v347, %v1075
        %v1078 = vmul.f32 %v1071, %v1076
        %v1079 = vpack.c.bf16 %v1078, %v1078
        %v1080 = vld [vmem:[#allocation6] sm:$0xf]
        %v1081 = vld [vmem:[#allocation6 + $0x4] sm:$0xf]
        %v1082 = vld [vmem:[#allocation6 + $0x8] sm:$0xf]
        %v1083 = vld [vmem:[#allocation6 + $0xc] sm:$0xf]
        %v1088 = vunpack.c.l.b16 %v1080
        %v1089 = vunpack.c.l.b16 %v1081
        %v1090 = vunpack.c.l.b16 %v1082
        %v1091 = vunpack.c.l.b16 %v1083
        %v1092 = vpack.c.b16 %v1089, %v1088
        %v1093 = vpack.c.b16 %v1091, %v1090
        %v1097 = vsel %vm437, %v1079, 0
        %1099 = vmatprep.subr.bf16.mxu0 0
        %1100 = vmatpush1.bf16.msra.mxu0 0
        %1101 = vmatprep.subr.bf16.mxu0 0
        %1102 = vmatpush1.bf16.msra.mxu0 0
        %1103 = vmatprep.subr.bf16.mxu0 0
        %1104 = vmatpush1.bf16.msra.mxu0 0
        %1105 = vmatprep.subr.bf16.mxu0 0
        %1106 = vmatpush1.bf16.msra.mxu0 0
        %1107 = vmatprep.subr.bf16.mxu0 0
        %1108 = vmatpush1.bf16.msra.mxu0 0
        %1109 = vmatprep.subr.bf16.mxu0 0
        %1110 = vmatpush1.bf16.msra.mxu0 0
        %1111 = vmatprep.subr.bf16.mxu0 0
        %1112 = vmatpush1.bf16.msra.mxu0 %v1093
        %1113 = vmatprep.subr.bf16.mxu0 0
        %1114 = vmatpush1.bf16.msra.mxu0 %v1092
        %1115 = vmatprep.subr.bf16.mxu0 0
        %1116 = vmatpush2.bf16.msra.mxu0 0
        %1117 = vmatprep.subr.bf16.mxu0 0
        %1118 = vmatpush2.bf16.msra.mxu0 0
        %1119 = vmatprep.subr.bf16.mxu0 0
        %1120 = vmatpush2.bf16.msra.mxu0 0
        %1121 = vmatprep.subr.bf16.mxu0 0
        %1122 = vmatpush2.bf16.msra.mxu0 0
        %1123 = vmatprep.subr.bf16.mxu0 0
        %1124 = vmatpush2.bf16.msra.mxu0 0
        %1125 = vmatprep.subr.bf16.mxu0 0
        %1126 = vmatpush2.bf16.msra.mxu0 0
        %1127 = vmatprep.subr.bf16.mxu0 0
        %1128 = vmatpush2.bf16.msra.mxu0 0
        %1129 = vmatprep.subr.bf16.mxu0 0
        %1130 = vmatpush2.bf16.msra.mxu0 0
        %1131 = vmatprep.mubr.bf16.mxu0 0
        %1132 = vmatmul.mubr.bf16.gmra.mxu0 %v1097
        %v1133 = vpop.f32.mrf.mxu0
        %v1134 = vadd.f32 0.0, %v1133
        %v1135 = vpop.f32.mrf.mxu0
        %v1136 = vpop.f32.mrf.mxu0
        %v1137 = vpop.f32.mrf.mxu0
        %1138 = vdwg.mxu0
        %v1139 = vxor.u32 %v1134, 2147483648
        %v1140 = vmul.f32 %v1139, 1.442695
        %v1141 = vpow.pop %v1140
        %v1142 = vadd.f32 %v1141, 1.0
        %v1143 = vrcp.pop %v1142
        %v1144 = vmul.f32 1.0, %v1143
        %v1145 = vmul.f32 %v1134, %v1144
        %1147 = vrot.lane.b32.xlu0 %v1134, 64
        %v1148 = vpop.permute.xlu0 %1147
        %v1150 = vmul.f32 %v1145, %v1148
        %v1151 = vpack.c.bf16 %v1150, %v1150
        %v1152 = vld [vmem:[%s7] sm:$0xf]
        %v1153 = vld [vmem:[%s7 + $0x4] sm:$0xf]
        %v1154 = vld [vmem:[%s7 + $0x8] sm:$0xf]
        %v1155 = vld [vmem:[%s7 + $0xc] sm:$0xf]
        %v1156 = vld [vmem:[%s7 + $0x10] sm:$0xf]
        %v1157 = vld [vmem:[%s7 + $0x14] sm:$0xf]
        %v1158 = vld [vmem:[%s7 + $0x18] sm:$0xf]
        %v1159 = vld [vmem:[%s7 + $0x1c] sm:$0xf]
        %v1168 = vunpack.c.l.b16 %v1152
        %v1169 = vunpack.c.l.b16 %v1153
        %v1170 = vunpack.c.l.b16 %v1154
        %v1171 = vunpack.c.l.b16 %v1155
        %v1172 = vunpack.c.l.b16 %v1156
        %v1173 = vunpack.c.l.b16 %v1157
        %v1174 = vunpack.c.l.b16 %v1158
        %v1175 = vunpack.c.l.b16 %v1159
        %v1176 = vpack.c.b16 %v1169, %v1168
        %v1177 = vpack.c.b16 %v1171, %v1170
        %v1178 = vpack.c.b16 %v1173, %v1172
        %v1179 = vpack.c.b16 %v1175, %v1174
        %vm1184 = vcmask 523264
        %v1186 = vsel %vm1184, %v1151, 0
        %1188 = vmatprep.subr.bf16.mxu0 0
        %1189 = vmatpush1.bf16.msra.mxu0 0
        %1190 = vmatprep.subr.bf16.mxu0 0
        %1191 = vmatpush1.bf16.msra.mxu0 0
        %1192 = vmatprep.subr.bf16.mxu0 0
        %1193 = vmatpush1.bf16.msra.mxu0 0
        %1194 = vmatprep.subr.bf16.mxu0 0
        %1195 = vmatpush1.bf16.msra.mxu0 0
        %1196 = vmatprep.subr.bf16.mxu0 0
        %1197 = vmatpush1.bf16.msra.mxu0 %v1179
        %1198 = vmatprep.subr.bf16.mxu0 0
        %1199 = vmatpush1.bf16.msra.mxu0 %v1178
        %1200 = vmatprep.subr.bf16.mxu0 0
        %1201 = vmatpush1.bf16.msra.mxu0 %v1177
        %1202 = vmatprep.subr.bf16.mxu0 0
        %1203 = vmatpush1.bf16.msra.mxu0 %v1176
        %1204 = vmatprep.subr.bf16.mxu0 0
        %1205 = vmatpush2.bf16.msra.mxu0 0
        %1206 = vmatprep.subr.bf16.mxu0 0
        %1207 = vmatpush2.bf16.msra.mxu0 0
        %1208 = vmatprep.subr.bf16.mxu0 0
        %1209 = vmatpush2.bf16.msra.mxu0 0
        %1210 = vmatprep.subr.bf16.mxu0 0
        %1211 = vmatpush2.bf16.msra.mxu0 0
        %1212 = vmatprep.subr.bf16.mxu0 0
        %1213 = vmatpush2.bf16.msra.mxu0 0
        %1214 = vmatprep.subr.bf16.mxu0 0
        %1215 = vmatpush2.bf16.msra.mxu0 0
        %1216 = vmatprep.subr.bf16.mxu0 0
        %1217 = vmatpush2.bf16.msra.mxu0 0
        %1218 = vmatprep.subr.bf16.mxu0 0
        %1219 = vmatpush2.bf16.msra.mxu0 0
        %1220 = vmatprep.mubr.bf16.mxu0 0
        %1221 = vmatmul.mubr.bf16.gmra.mxu0 %v1186
        %v1222 = vpop.f32.mrf.mxu0
        %v1223 = vadd.f32 0.0, %v1222
        %v1224 = vpop.f32.mrf.mxu0
        %v1225 = vpop.f32.mrf.mxu0
        %v1226 = vpop.f32.mrf.mxu0
        %1227 = vdwg.mxu0
        %v1228 = vadd.f32 %v1063, %v1223
        %1229 = vst.msk [vmem:[%s340] sm:$0xff] %vm437, %v1228
        %s1230 = sand.u32 %s219, 1
        %s1231 = scalar_lea.sflag [#allocation5], %s1230
        %s1232 = sand.u32 %s219, 1
        %s1233 = smul.addr %s1232, 8
        %s1234 = scalar_lea.vmem [#allocation8], %s1233
        // Predicated region
        $region65: #{tpu_custom_call.1} parent=51 // pred_check
          %p1235 = pneg %p229
        $region66: #{tpu_custom_call.1} parent=51 // pred_check_branch
          %1237 = sbr.rel (%p1235) target = $region68
        $region67: #{tpu_custom_call.1} parent=51 // pred_region
          %s1239 = ssub.s32 128, 128
          %1240 = vsyncadd %s1231, %s1239
          %s1241 = sadd.s32 %s29, %s28
          %s1242 = smul.addr %s1241, 128
          %s1243 = scalar_lea.hbm %s8, %s1242
          %s1245 = sshll.u32 %s1234, 4
          %s1246 = int_to_ptr.vmem [resolvable:$true] %s1245
          %1248 = dma.vmem_to_hbm [thread:$0]  %s1246, 128, %s1243, %s1231
        $region68: #{tpu_custom_call.1} parent=51 // pred_fallthru
          _
      $region52: #{tpu_custom_call.1} parent=5 // pred_fallthru
        _
      %p1249 = scmp.le.s32.totalorder 2, %s19
      // Predicated region
      $region69: #{tpu_custom_call.1} parent=5 // pred_check
        %p1250 = pneg %p1249
      $region70: #{tpu_custom_call.1} parent=5 // pred_check_branch
        %1252 = sbr.rel (%p1250) target = $region72
      $region71: #{tpu_custom_call.1} parent=5 // pred_region
        %s1253 = ssub.s32 %s19, 2
        // Predicated region
        $region73: #{tpu_custom_call.1} parent=71 // pred_check
          %p1254 = pneg %p235
        $region74: #{tpu_custom_call.1} parent=71 // pred_check_branch
          %1256 = sbr.rel (%p1254) target = $region76
        $region75: #{tpu_custom_call.1} parent=71 // pred_region
          %s1257 = sand.u32 %s220, 1
          %s1258 = scalar_lea.sflag [#allocation5], %s1257
          %s1259 = sand.u32 %s220, 1
          %s1260 = smul.addr %s1259, 8
          %s1261 = scalar_lea.vmem [#allocation8], %s1260
          %1262 = dma.done %s1258, 128
        $region76: #{tpu_custom_call.1} parent=71 // pred_fallthru
          _
      $region72: #{tpu_custom_call.1} parent=5 // pred_fallthru
        _
    $region6: #{tpu_custom_call.1} parent=1 // loop_footer
      %s23 = sadd.s32 1, %s19
    $region7: #{tpu_custom_call.1} parent=1 // loop_footer_branch
      %18 = sbr.rel target = $region3
    $region8: #{tpu_custom_call.1} parent=1 // loop_exit
      _
    %1263 = vsyncpa [#allocation4], 1
    %s1264 = scalar_lea.sflag [#allocation4], 1
    %1265 = vsyncpa %s1264, 1
    %1266 = vsyncpa [#allocation7], 1
    %1267 = vsyncpa [#allocation5], 1
    %s1268 = scalar_lea.sflag [#allocation5], 1
    %1269 = vsyncpa %s1268, 1

// kernel: tpu_custom_call.1
$region0: #{tpu_custom_call.1}
  #allocation0 [shape = 'u32[]', space=smem, size = 0x4, offset = 0x4, fixed_abs, tag = 'smem constant byte address 0x4 - core index']
  #allocation1 [shape = 'u32[144,128]{1,0:T(1,128)}', space=vmem, size = 0x12000, scoped, tag = 'internal scratch']
  #allocation2 [shape = 'bf16[8,64]{1,0:T(8,128)(2,1)}', space=vmem, size = 0x800, scoped, tag = 'scratch operand']
  %s0 = inlined_call_operand.vmem [shape: f32[2,8,32], index: 0, kind: input, shape index: {}]
  %s1 = inlined_call_operand.vmem [shape: f32[1,32], index: 1, kind: input, shape index: {}]
  %s2 = inlined_call_operand.vmem [shape: bf16[32,32], index: 2, kind: input, shape index: {}]
  %s3 = inlined_call_operand.vmem [shape: bf16[32,64], index: 3, kind: input, shape index: {}]
  %s4 = inlined_call_operand.hbm [shape: bf16[32,32], index: 4, kind: input, shape index: {}]
  %s5 = inlined_call_operand.vmem [shape: f32[1,32], index: 5, kind: input, shape index: {}]
  %s6 = inlined_call_operand.hbm [shape: bf16[32,128], index: 6, kind: input, shape index: {}]
  %s7 = inlined_call_operand.vmem [shape: bf16[64,32], index: 7, kind: input, shape index: {}]
  %s8 = inlined_call_operand.hbm [shape: f32[2,8,32], index: 8, kind: output, shape index: {}]
  %s9 = sld [smem:[#allocation0]]
  $region77: #{tpu_custom_call.1} parent=0
    _
  %s11 = ssub.s32 1, %s9
  %s12 = scalar_select 0, %s11, %s9
  $region1: #{tpu_custom_call.1} parent=0
    #allocation3 [shape = 'u8[8192]{0}', space=vmem, size = 0x2000, scoped, tag = 'input window, operand 4, single buffered']
    #allocation4 [shape = 's32[2]{0}', space=sflag, size = 0x8, scoped, tag = 'scoped memory for tpu_custom_call.1']
    #allocation5 [shape = 's32[2]{0}', space=sflag, size = 0x8, scoped, tag = 'scoped memory for tpu_custom_call.1']
    #allocation6 [shape = 'u8[8192]{0}', space=vmem, size = 0x2000, scoped, tag = 'input window, operand 6, single buffered']
    #allocation7 [shape = 's32[1]{0}', space=sflag, size = 0x4, scoped, tag = 'scoped memory for tpu_custom_call.1']
    #allocation8 [shape = 'u8[8192]{0}', space=vmem, size = 0x2000, scoped, tag = 'output window, operand 0']
    %13 = vsyncpa [#allocation4], 0
    %14 = vsyncpa [#allocation7], 0
    %15 = vsyncpa [#allocation5], 0
    %s16 = scalar_lea.sflag [#allocation5], 1
    %17 = vsyncpa %s16, 0
    loop: start=0, step=1, limit=4
    $region2: #{tpu_custom_call.1} parent=1 // loop_pre_header
      _
    $region3: #{tpu_custom_call.1} parent=1 // loop_header
      %s19 = sphi 0, %s23
      %p20 = scmp.ge.s32.totalorder %s19, 4
      %s26 = sphi 0, %s38
      %s27 = sphi 0, %s34
      %s28 = sphi 0, %s26
      %s29 = sphi 0, %s27
      %s30 = sphi 0, %s28
      %s31 = sphi 0, %s29
      %s41 = sphi 0, %s43
      %s44 = sphi 0, %s41
      %s45 = sphi 0, %s44
      %s61 = sphi 0, %s45
      %s65 = sphi 0, %s65
      %s67 = sphi 0, %s65
      %s68 = sphi 0, %s67
      %s82 = sphi 0, %s68
      %s86 = sphi 0, %s86
      %s88 = sphi 0, %s86
      %s89 = sphi 0, %s88
      %s103 = sphi 0, %s89
      %s107 = sphi 0, %s107
      %s109 = sphi 0, %s107
      %s110 = sphi 0, %s109
      %s124 = sphi 0, %s110
      %s128 = sphi 0, %s128
      %s130 = sphi 0, %s128
      %s131 = sphi 0, %s130
      %s145 = sphi 0, %s131
      %s149 = sphi 0, %s149
      %s151 = sphi 0, %s149
      %s152 = sphi 0, %s151
      %s166 = sphi 0, %s152
      %s170 = sphi 0, %s170
      %s172 = sphi 0, %s170
      %s173 = sphi 0, %s172
      %s187 = sphi 0, %s173
      %s191 = sphi 0, %s191
      %s193 = sphi 0, %s191
      %s194 = sphi 0, %s193
      %s208 = sphi 0, %s194
      %s216 = sphi 0, %s218
      %s219 = sphi 0, %s216
      %s220 = sphi 0, %s219
      %s236 = sphi 0, %s220
    $region4: #{tpu_custom_call.1} parent=1 // loop_header_branch
      %22 = sbr.rel (%p20) target = $region8
    $region5: #{tpu_custom_call.1} parent=1 // loop_body
      %s24 = ssub.s32 %s19, 1
      %s25 = ssub.s32 %s19, 2
      %s32 = sadd.s32 1, %s27
      %p33 = scmp.ge.s32.totalorder %s32, 1
      %s34 = scalar_select %p33, 0, %s32
      %s35 = sadd.s32 1, %s26
      %s36 = scalar_select %p33, %s35, %s26
      %p37 = scmp.ge.s32.totalorder %s36, 2
      %s38 = scalar_select %p37, 0, %s36
      %s39 = ssub.s32 %s26, %s38
      %p40 = scmp.eq.s32.totalorder %s39, 0
      %s42 = sadd.s32 %s41, 1
      %s43 = scalar_select %p40, %s41, %s42
      %p46 = pneg %p40
      %p47 = scmp.eq.s32.totalorder %s19, 1
      %p48 = por %p46, %p47
      %p49 = scmp.ne.s32.totalorder %s41, %s44
      %p50 = scmp.eq.s32.totalorder %s19, 0
      %p51 = por %p49, %p50
      %p52 = scmp.ne.s32.totalorder %s41, %s44
      %p53 = scmp.eq.s32.totalorder %s24, 1
      %p54 = por %p52, %p53
      %p55 = scmp.ne.s32.totalorder %s44, %s45
      %p56 = scmp.eq.s32.totalorder %s24, 0
      %p57 = por %p55, %p56
      %p58 = scmp.ne.s32.totalorder %s44, %s45
      %p59 = scmp.eq.s32.totalorder %s25, 1
      %p60 = por %p58, %p59
      %p62 = scmp.ne.s32.totalorder %s45, %s61
      %p63 = scmp.eq.s32.totalorder %s25, 0
      %p64 = por %p62, %p63
      %s66 = sadd.s32 %s65, 1
      %p69 = scmp.eq.s32.totalorder %s19, 1
      %p70 = scmp.ne.s32.totalorder %s65, %s67
      %p71 = scmp.eq.s32.totalorder %s19, 0
      %p72 = por %p70, %p71
      %p73 = scmp.ne.s32.totalorder %s65, %s67
      %p74 = scmp.eq.s32.totalorder %s24, 1
      %p75 = por %p73, %p74
      %p76 = scmp.ne.s32.totalorder %s67, %s68
      %p77 = scmp.eq.s32.totalorder %s24, 0
      %p78 = por %p76, %p77
      %p79 = scmp.ne.s32.totalorder %s67, %s68
      %p80 = scmp.eq.s32.totalorder %s25, 1
      %p81 = por %p79, %p80
      %p83 = scmp.ne.s32.totalorder %s68, %s82
      %p84 = scmp.eq.s32.totalorder %s25, 0
      %p85 = por %p83, %p84
      %s87 = sadd.s32 %s86, 1
      %p90 = scmp.eq.s32.totalorder %s19, 1
      %p91 = scmp.ne.s32.totalorder %s86, %s88
      %p92 = scmp.eq.s32.totalorder %s19, 0
      %p93 = por %p91, %p92
      %p94 = scmp.ne.s32.totalorder %s86, %s88
      %p95 = scmp.eq.s32.totalorder %s24, 1
      %p96 = por %p94, %p95
      %p97 = scmp.ne.s32.totalorder %s88, %s89
      %p98 = scmp.eq.s32.totalorder %s24, 0
      %p99 = por %p97, %p98
      %p100 = scmp.ne.s32.totalorder %s88, %s89
      %p101 = scmp.eq.s32.totalorder %s25, 1
      %p102 = por %p100, %p101
      %p104 = scmp.ne.s32.totalorder %s89, %s103
      %p105 = scmp.eq.s32.totalorder %s25, 0
      %p106 = por %p104, %p105
      %s108 = sadd.s32 %s107, 1
      %p111 = scmp.eq.s32.totalorder %s19, 1
      %p112 = scmp.ne.s32.totalorder %s107, %s109
      %p113 = scmp.eq.s32.totalorder %s19, 0
      %p114 = por %p112, %p113
      %p115 = scmp.ne.s32.totalorder %s107, %s109
      %p116 = scmp.eq.s32.totalorder %s24, 1
      %p117 = por %p115, %p116
      %p118 = scmp.ne.s32.totalorder %s109, %s110
      %p119 = scmp.eq.s32.totalorder %s24, 0
      %p120 = por %p118, %p119
      %p121 = scmp.ne.s32.totalorder %s109, %s110
      %p122 = scmp.eq.s32.totalorder %s25, 1
      %p123 = por %p121, %p122
      %p125 = scmp.ne.s32.totalorder %s110, %s124
      %p126 = scmp.eq.s32.totalorder %s25, 0
      %p127 = por %p125, %p126
      %s129 = sadd.s32 %s128, 1
      %p132 = scmp.eq.s32.totalorder %s19, 1
      %p133 = scmp.ne.s32.totalorder %s128, %s130
      %p134 = scmp.eq.s32.totalorder %s19, 0
      %p135 = por %p133, %p134
      %p136 = scmp.ne.s32.totalorder %s128, %s130
      %p137 = scmp.eq.s32.totalorder %s24, 1
      %p138 = por %p136, %p137
      %p139 = scmp.ne.s32.totalorder %s130, %s131
      %p140 = scmp.eq.s32.totalorder %s24, 0
      %p141 = por %p139, %p140
      %p142 = scmp.ne.s32.totalorder %s130, %s131
      %p143 = scmp.eq.s32.totalorder %s25, 1
      %p144 = por %p142, %p143
      %p146 = scmp.ne.s32.totalorder %s131, %s145
      %p147 = scmp.eq.s32.totalorder %s25, 0
      %p148 = por %p146, %p147
      %s150 = sadd.s32 %s149, 1
      %p153 = scmp.eq.s32.totalorder %s19, 1
      %p154 = scmp.ne.s32.totalorder %s149, %s151
      %p155 = scmp.eq.s32.totalorder %s19, 0
      %p156 = por %p154, %p155
      %p157 = scmp.ne.s32.totalorder %s149, %s151
      %p158 = scmp.eq.s32.totalorder %s24, 1
      %p159 = por %p157, %p158
      %p160 = scmp.ne.s32.totalorder %s151, %s152
      %p161 = scmp.eq.s32.totalorder %s24, 0
      %p162 = por %p160, %p161
      %p163 = scmp.ne.s32.totalorder %s151, %s152
      %p164 = scmp.eq.s32.totalorder %s25, 1
      %p165 = por %p163, %p164
      %p167 = scmp.ne.s32.totalorder %s152, %s166
      %p168 = scmp.eq.s32.totalorder %s25, 0
      %p169 = por %p167, %p168
      %s171 = sadd.s32 %s170, 1
      %p174 = scmp.eq.s32.totalorder %s19, 1
      %p175 = scmp.ne.s32.totalorder %s170, %s172
      %p176 = scmp.eq.s32.totalorder %s19, 0
      %p177 = por %p175, %p176
      %p178 = scmp.ne.s32.totalorder %s170, %s172
      %p179 = scmp.eq.s32.totalorder %s24, 1
      %p180 = por %p178, %p179
      %p181 = scmp.ne.s32.totalorder %s172, %s173
      %p182 = scmp.eq.s32.totalorder %s24, 0
      %p183 = por %p181, %p182
      %p184 = scmp.ne.s32.totalorder %s172, %s173
      %p185 = scmp.eq.s32.totalorder %s25, 1
      %p186 = por %p184, %p185
      %p188 = scmp.ne.s32.totalorder %s173, %s187
      %p189 = scmp.eq.s32.totalorder %s25, 0
      %p190 = por %p188, %p189
      %s192 = sadd.s32 %s191, 1
      %p195 = scmp.eq.s32.totalorder %s19, 1
      %p196 = scmp.ne.s32.totalorder %s191, %s193
      %p197 = scmp.eq.s32.totalorder %s19, 0
      %p198 = por %p196, %p197
      %p199 = scmp.ne.s32.totalorder %s191, %s193
      %p200 = scmp.eq.s32.totalorder %s24, 1
      %p201 = por %p199, %p200
      %p202 = scmp.ne.s32.totalorder %s193, %s194
      %p203 = scmp.eq.s32.totalorder %s24, 0
      %p204 = por %p202, %p203
      %p205 = scmp.ne.s32.totalorder %s193, %s194
      %p206 = scmp.eq.s32.totalorder %s25, 1
      %p207 = por %p205, %p206
      %p209 = scmp.ne.s32.totalorder %s194, %s208
      %p210 = scmp.eq.s32.totalorder %s25, 0
      %p211 = por %p209, %p210
      %s212 = ssub.s32 %s26, %s38
      %s213 = ssub.s32 %s27, %s34
      %s214 = sor.u32 %s212, %s213
      %p215 = scmp.eq.s32.totalorder %s214, 0
      %s217 = sadd.s32 %s216, 1
      %s218 = scalar_select %p215, %s216, %s217
      %p221 = pneg %p215
      %p222 = scmp.eq.s32.totalorder %s19, 1
      %p223 = por %p221, %p222
      %p224 = scmp.ne.s32.totalorder %s216, %s219
      %p225 = scmp.eq.s32.totalorder %s19, 0
      %p226 = por %p224, %p225
      %p227 = scmp.ne.s32.totalorder %s216, %s219
      %p228 = scmp.eq.s32.totalorder %s24, 1
      %p229 = por %p227, %p228
      %p230 = scmp.ne.s32.totalorder %s219, %s220
      %p231 = scmp.eq.s32.totalorder %s24, 0
      %p232 = por %p230, %p231
      %p233 = scmp.ne.s32.totalorder %s219, %s220
      %p234 = scmp.eq.s32.totalorder %s25, 1
      %p235 = por %p233, %p234
      %p237 = scmp.ne.s32.totalorder %s220, %s236
      %p238 = scmp.eq.s32.totalorder %s25, 0
      %p239 = por %p237, %p238
      %p240 = scmp.le.s32.totalorder 1, %s19
      %p241 = scmp.lt.s32.totalorder %s19, 3
      %p242 = pnand %p240, %p241
      %p243 = pneg %p242
      // Predicated region
      $region9: #{tpu_custom_call.1} parent=5 // pred_check
        _
      $region10: #{tpu_custom_call.1} parent=5 // pred_check_branch
        %245 = sbr.rel (%p242) target = $region12
      $region11: #{tpu_custom_call.1} parent=5 // pred_region
        %s246 = ssub.s32 %s19, 1
        // Predicated region
        $region13: #{tpu_custom_call.1} parent=11 // pred_check
          %p247 = pneg %p78
        $region14: #{tpu_custom_call.1} parent=11 // pred_check_branch
          %249 = sbr.rel (%p247) target = $region16
        $region15: #{tpu_custom_call.1} parent=11 // pred_region
          _
        $region16: #{tpu_custom_call.1} parent=11 // pred_fallthru
          _
        // Predicated region
        $region17: #{tpu_custom_call.1} parent=11 // pred_check
          %p250 = pneg %p99
        $region18: #{tpu_custom_call.1} parent=11 // pred_check_branch
          %252 = sbr.rel (%p250) target = $region20
        $region19: #{tpu_custom_call.1} parent=11 // pred_region
          _
        $region20: #{tpu_custom_call.1} parent=11 // pred_fallthru
          _
        // Predicated region
        $region21: #{tpu_custom_call.1} parent=11 // pred_check
          %p253 = pneg %p120
        $region22: #{tpu_custom_call.1} parent=11 // pred_check_branch
          %255 = sbr.rel (%p253) target = $region24
        $region23: #{tpu_custom_call.1} parent=11 // pred_region
          _
        $region24: #{tpu_custom_call.1} parent=11 // pred_fallthru
          _
        // Predicated region
        $region25: #{tpu_custom_call.1} parent=11 // pred_check
          %p256 = pneg %p141
        $region26: #{tpu_custom_call.1} parent=11 // pred_check_branch
          %258 = sbr.rel (%p256) target = $region28
        $region27: #{tpu_custom_call.1} parent=11 // pred_region
          %s260 = ssub.s32 256, 256
          %261 = vsyncadd [#allocation4], %s260
          %s262 = sshll.u32 [#allocation3], 4
          %s263 = int_to_ptr.vmem [resolvable:$true] %s262
          %268 = dma.hbm_to_vmem [thread:$0]  %s4, 256, %s263, [#allocation4], 64, 64, 4
        $region28: #{tpu_custom_call.1} parent=11 // pred_fallthru
          _
        // Predicated region
        $region29: #{tpu_custom_call.1} parent=11 // pred_check
          %p269 = pneg %p162
        $region30: #{tpu_custom_call.1} parent=11 // pred_check_branch
          %271 = sbr.rel (%p269) target = $region32
        $region31: #{tpu_custom_call.1} parent=11 // pred_region
          _
        $region32: #{tpu_custom_call.1} parent=11 // pred_fallthru
          _
        // Predicated region
        $region33: #{tpu_custom_call.1} parent=11 // pred_check
          %p272 = pneg %p183
        $region34: #{tpu_custom_call.1} parent=11 // pred_check_branch
          %274 = sbr.rel (%p272) target = $region36
        $region35: #{tpu_custom_call.1} parent=11 // pred_region
          %s276 = ssub.s32 256, 256
          %277 = vsyncadd [#allocation7], %s276
          %s278 = sshll.u32 [#allocation6], 4
          %s279 = int_to_ptr.vmem [resolvable:$true] %s278
          %284 = dma.hbm_to_vmem [thread:$0]  %s6, 256, %s279, [#allocation7], 64, 64, 4
        $region36: #{tpu_custom_call.1} parent=11 // pred_fallthru
          _
        // Predicated region
        $region37: #{tpu_custom_call.1} parent=11 // pred_check
          %p285 = pneg %p204
        $region38: #{tpu_custom_call.1} parent=11 // pred_check_branch
          %287 = sbr.rel (%p285) target = $region40
        $region39: #{tpu_custom_call.1} parent=11 // pred_region
          _
        $region40: #{tpu_custom_call.1} parent=11 // pred_fallthru
          _
      $region12: #{tpu_custom_call.1} parent=5 // pred_fallthru
        _
      %p288 = scmp.lt.s32.totalorder %s19, 2
      // Predicated region
      $region41: #{tpu_custom_call.1} parent=5 // pred_check
        %p289 = pneg %p288
      $region42: #{tpu_custom_call.1} parent=5 // pred_check_branch
        %291 = sbr.rel (%p289) target = $region44
      $region43: #{tpu_custom_call.1} parent=5 // pred_region
        // Predicated region
        $region45: #{tpu_custom_call.1} parent=43 // pred_check
          %p292 = pneg %p51
        $region46: #{tpu_custom_call.1} parent=43 // pred_check_branch
          %294 = sbr.rel (%p292) target = $region48
        $region47: #{tpu_custom_call.1} parent=43 // pred_region
          %p295 = scmp.lt.s32.totalorder %s26, 1
          %s296 = scalar_select %p295, %s26, 1
          %s297 = smul.addr %s296, 8
          %s298 = scalar_lea.vmem %s0, %s297
        $region48: #{tpu_custom_call.1} parent=43 // pred_fallthru
          _
      $region44: #{tpu_custom_call.1} parent=5 // pred_fallthru
        _
      %p299 = scmp.le.s32.totalorder 1, %s19
      %p300 = scmp.lt.s32.totalorder %s19, 3
      %p301 = pnand %p299, %p300
      %p302 = pneg %p301
      // Predicated region
      $region49: #{tpu_custom_call.1} parent=5 // pred_check
        _
      $region50: #{tpu_custom_call.1} parent=5 // pred_check_branch
        %304 = sbr.rel (%p301) target = $region52
      $region51: #{tpu_custom_call.1} parent=5 // pred_region
        %s305 = ssub.s32 %s19, 1
        // Predicated region
        $region53: #{tpu_custom_call.1} parent=51 // pred_check
          %p306 = pneg %p141
        $region54: #{tpu_custom_call.1} parent=51 // pred_check_branch
          %308 = sbr.rel (%p306) target = $region56
        $region55: #{tpu_custom_call.1} parent=51 // pred_region
          %309 = dma.done [#allocation4], 256
        $region56: #{tpu_custom_call.1} parent=51 // pred_fallthru
          _
        // Predicated region
        $region57: #{tpu_custom_call.1} parent=51 // pred_check
          %p310 = pneg %p183
        $region58: #{tpu_custom_call.1} parent=51 // pred_check_branch
          %312 = sbr.rel (%p310) target = $region60
        $region59: #{tpu_custom_call.1} parent=51 // pred_region
          %313 = dma.done [#allocation7], 256
        $region60: #{tpu_custom_call.1} parent=51 // pred_fallthru
          _
        %p314 = scmp.lt.s32.totalorder %s28, 1
        %s315 = scalar_select %p314, %s28, 1
        %s316 = smul.addr %s315, 8
        %s317 = scalar_lea.vmem %s0, %s316
        %p318 = pneg %p57
        %p319 = pneg %p54
        %p320 = pneg %p78
        %p321 = pneg %p75
        %p322 = pneg %p99
        %p323 = pneg %p96
        %p324 = pneg %p120
        %p325 = pneg %p117
        %p326 = pneg %p141
        %p327 = pneg %p138
        %p328 = pneg %p162
        %p329 = pneg %p159
        %p330 = pneg %p183
        %p331 = pneg %p180
        %p332 = pneg %p204
        %p333 = pneg %p201
        %p334 = pneg %p232
        %p335 = pneg %p229
        %s336 = sand.u32 %s219, 1
        %s337 = scalar_lea.sflag [#allocation5], %s336
        %s338 = sand.u32 %s219, 1
        %s339 = smul.addr %s338, 8
        %s340 = scalar_lea.vmem [#allocation8], %s339
        %p341 = scmp.lt.s32.totalorder %s28, 1
        %s342 = scalar_select %p341, %s28, 1
        %s343 = smul.addr %s342, 8
        %s344 = scalar_lea.vmem %s0, %s343
        %v346 = vld [vmem:[%s1] sm:$0x1]
        %v347 = vld [vmem:[%s5] sm:$0x1]
        %p348 = scmp.eq.s32.totalorder %s29, 0
        // Predicated region
        $region61: #{tpu_custom_call.1} parent=51 // pred_check
          %p349 = pneg %p348
        $region62: #{tpu_custom_call.1} parent=51 // pred_check_branch
          %351 = sbr.rel (%p349) target = $region64
        $region63: #{tpu_custom_call.1} parent=51 // pred_region
          %v352 = vld [vmem:[%s344] sm:$0xff]
          %v353 = vmul.f32 %v352, %v352
          %vm354 = vcmask 261120
          %v355 = vsel %vm354, %v353, 0.0
          %356 = vadd.xlane.f32.xlu0 %v355
          %v357 = vpop.xlane.xlu0 %356
          %v358 = vrcp.pop 32.0
          %v359 = vmul.f32 %v357, %v358
          %v360 = vadd.f32 %v359, 1e-06
          %v361 = vrsqrt.pop %v360
          %v362 = vmul.f32 %v352, %v361
          %v364 = vlaneseq
          %v365 = vshrl.u32 %v364, 7
          %v366 = vsub.s32 0, %v365
          %v367 = vrot.slane %v346, %v366
          %v369 = vmul.f32 %v362, %v367
          %v370 = vpack.c.bf16 %v369, %v369
          %v371 = vld [vmem:[%s3] sm:$0xf]
          %v372 = vld [vmem:[%s3 + $0x4] sm:$0xf]
          %v373 = vld [vmem:[%s3 + $0x8] sm:$0xf]
          %v374 = vld [vmem:[%s3 + $0xc] sm:$0xf]
          %v379 = vunpack.c.l.b16 %v371
          %v380 = vunpack.c.l.b16 %v372
          %v381 = vunpack.c.l.b16 %v373
          %v382 = vunpack.c.l.b16 %v374
          %v383 = vpack.c.b16 %v380, %v379
          %v384 = vpack.c.b16 %v382, %v381
          %v388 = vsel %vm354, %v370, 0
          %390 = vmatprep.subr.bf16.mxu0 0
          %391 = vmatpush1.bf16.msra.mxu0 0
          %392 = vmatprep.subr.bf16.mxu0 0
          %393 = vmatpush1.bf16.msra.mxu0 0
          %394 = vmatprep.subr.bf16.mxu0 0
          %395 = vmatpush1.bf16.msra.mxu0 0
          %396 = vmatprep.subr.bf16.mxu0 0
          %397 = vmatpush1.bf16.msra.mxu0 0
          %398 = vmatprep.subr.bf16.mxu0 0
          %399 = vmatpush1.bf16.msra.mxu0 0
          %400 = vmatprep.subr.bf16.mxu0 0
          %401 = vmatpush1.bf16.msra.mxu0 0
          %402 = vmatprep.subr.bf16.mxu0 0
          %403 = vmatpush1.bf16.msra.mxu0 %v384
          %404 = vmatprep.subr.bf16.mxu0 0
          %405 = vmatpush1.bf16.msra.mxu0 %v383
          %406 = vmatprep.subr.bf16.mxu0 0
          %407 = vmatpush2.bf16.msra.mxu0 0
          %408 = vmatprep.subr.bf16.mxu0 0
          %409 = vmatpush2.bf16.msra.mxu0 0
          %410 = vmatprep.subr.bf16.mxu0 0
          %411 = vmatpush2.bf16.msra.mxu0 0
          %412 = vmatprep.subr.bf16.mxu0 0
          %413 = vmatpush2.bf16.msra.mxu0 0
          %414 = vmatprep.subr.bf16.mxu0 0
          %415 = vmatpush2.bf16.msra.mxu0 0
          %416 = vmatprep.subr.bf16.mxu0 0
          %417 = vmatpush2.bf16.msra.mxu0 0
          %418 = vmatprep.subr.bf16.mxu0 0
          %419 = vmatpush2.bf16.msra.mxu0 0
          %420 = vmatprep.subr.bf16.mxu0 0
          %421 = vmatpush2.bf16.msra.mxu0 0
          %422 = vmatprep.mubr.bf16.mxu0 0
          %423 = vmatmul.mubr.bf16.gmra.mxu0 %v388
          %v424 = vpop.f32.mrf.mxu0
          %v425 = vadd.f32 0.0, %v424
          %v426 = vpop.f32.mrf.mxu0
          %v427 = vpop.f32.mrf.mxu0
          %v428 = vpop.f32.mrf.mxu0
          %429 = vdwg.mxu0
          %v430 = vpack.c.bf16 %v425, %v425
          %vm431 = vcmask 519168
          %432 = vst.msk [vmem:[#allocation2] sm:$0xf] %vm431, %v430
        $region64: #{tpu_custom_call.1} parent=51 // pred_fallthru
          _
        %s433 = smul.u32 %s29, 8
        %s434 = scalar_lea.vmem %s344, %s433
        %v435 = vld [vmem:[%s434] sm:$0xff]
        %v436 = vmul.f32 %v435, %v435
        %vm437 = vcmask 261120
        %v438 = vsel %vm437, %v436, 0.0
        %439 = vadd.xlane.f32.xlu0 %v438
        %v440 = vpop.xlane.xlu0 %439
        %v441 = vrcp.pop 32.0
        %v442 = vmul.f32 %v440, %v441
        %v443 = vadd.f32 %v442, 1e-06
        %v444 = vrsqrt.pop %v443
        %v445 = vmul.f32 %v435, %v444
        %v447 = vlaneseq
        %v448 = vshrl.u32 %v447, 7
        %v449 = vsub.s32 0, %v448
        %v450 = vrot.slane %v346, %v449
        %v452 = vmul.f32 %v445, %v450
        %v453 = vpack.c.bf16 %v452, %v452
        %v454 = vld [vmem:[%s2] sm:$0xf]
        %v455 = vld [vmem:[%s2 + $0x4] sm:$0xf]
        %v456 = vld [vmem:[%s2 + $0x8] sm:$0xf]
        %v457 = vld [vmem:[%s2 + $0xc] sm:$0xf]
        %v462 = vunpack.c.l.b16 %v454
        %v463 = vunpack.c.l.b16 %v455
        %v464 = vunpack.c.l.b16 %v456
        %v465 = vunpack.c.l.b16 %v457
        %v466 = vpack.c.b16 %v463, %v462
        %v467 = vpack.c.b16 %v465, %v464
        %v471 = vsel %vm437, %v453, 0
        %473 = vmatprep.subr.bf16.mxu0 0
        %474 = vmatpush1.bf16.msra.mxu0 0
        %475 = vmatprep.subr.bf16.mxu0 0
        %476 = vmatpush1.bf16.msra.mxu0 0
        %477 = vmatprep.subr.bf16.mxu0 0
        %478 = vmatpush1.bf16.msra.mxu0 0
        %479 = vmatprep.subr.bf16.mxu0 0
        %480 = vmatpush1.bf16.msra.mxu0 0
        %481 = vmatprep.subr.bf16.mxu0 0
        %482 = vmatpush1.bf16.msra.mxu0 0
        %483 = vmatprep.subr.bf16.mxu0 0
        %484 = vmatpush1.bf16.msra.mxu0 0
        %485 = vmatprep.subr.bf16.mxu0 0
        %486 = vmatpush1.bf16.msra.mxu0 %v467
        %487 = vmatprep.subr.bf16.mxu0 0
        %488 = vmatpush1.bf16.msra.mxu0 %v466
        %489 = vmatprep.subr.bf16.mxu0 0
        %490 = vmatpush2.bf16.msra.mxu0 0
        %491 = vmatprep.subr.bf16.mxu0 0
        %492 = vmatpush2.bf16.msra.mxu0 0
        %493 = vmatprep.subr.bf16.mxu0 0
        %494 = vmatpush2.bf16.msra.mxu0 0
        %495 = vmatprep.subr.bf16.mxu0 0
        %496 = vmatpush2.bf16.msra.mxu0 0
        %497 = vmatprep.subr.bf16.mxu0 0
        %498 = vmatpush2.bf16.msra.mxu0 0
        %499 = vmatprep.subr.bf16.mxu0 0
        %500 = vmatpush2.bf16.msra.mxu0 0
        %501 = vmatprep.subr.bf16.mxu0 0
        %502 = vmatpush2.bf16.msra.mxu0 0
        %503 = vmatprep.subr.bf16.mxu0 0
        %504 = vmatpush2.bf16.msra.mxu0 0
        %505 = vmatprep.mubr.bf16.mxu0 0
        %506 = vmatmul.mubr.bf16.gmra.mxu0 %v471
        %v507 = vpop.f32.mrf.mxu0
        %v508 = vadd.f32 0.0, %v507
        %v509 = vpop.f32.mrf.mxu0
        %v510 = vpop.f32.mrf.mxu0
        %v511 = vpop.f32.mrf.mxu0
        %512 = vdwg.mxu0
        %v513 = vmul.f32 %v508, 0.35355338
        %v514 = vpack.c.bf16 %v513, %v513
        %v515 = vld [vmem:[#allocation2] sm:$0xf]
        %vm516 = vcmask 64512
        %v518 = vsel %vm516, %v514, 0
        %v521 = vsel %vm516, %v515, 0
        %523 = vmatprep.subr.bf16.mxu0 0
        %524 = vmatpush1.bf16.xpose.msra.mxu0 0
        %525 = vmatprep.subr.bf16.mxu0 0
        %526 = vmatpush1.bf16.xpose.msra.mxu0 0
        %527 = vmatprep.subr.bf16.mxu0 0
        %528 = vmatpush1.bf16.xpose.msra.mxu0 0
        %529 = vmatprep.subr.bf16.mxu0 0
        %530 = vmatpush1.bf16.xpose.msra.mxu0 0
        %531 = vmatprep.subr.bf16.mxu0 0
        %532 = vmatpush1.bf16.xpose.msra.mxu0 0
        %533 = vmatprep.subr.bf16.mxu0 0
        %534 = vmatpush1.bf16.xpose.msra.mxu0 0
        %535 = vmatprep.subr.bf16.mxu0 0
        %536 = vmatpush1.bf16.xpose.msra.mxu0 0
        %537 = vmatprep.subr.bf16.mxu0 0
        %538 = vmatpush1.bf16.xpose.msra.mxu0 %v521
        %539 = vmatprep.subr.bf16.mxu0 0
        %540 = vmatpush2.bf16.xpose.msra.mxu0 0
        %541 = vmatprep.subr.bf16.mxu0 0
        %542 = vmatpush2.bf16.xpose.msra.mxu0 0
        %543 = vmatprep.subr.bf16.mxu0 0
        %544 = vmatpush2.bf16.xpose.msra.mxu0 0
        %545 = vmatprep.subr.bf16.mxu0 0
        %546 = vmatpush2.bf16.xpose.msra.mxu0 0
        %547 = vmatprep.subr.bf16.mxu0 0
        %548 = vmatpush2.bf16.xpose.msra.mxu0 0
        %549 = vmatprep.subr.bf16.mxu0 0
        %550 = vmatpush2.bf16.xpose.msra.mxu0 0
        %551 = vmatprep.subr.bf16.mxu0 0
        %552 = vmatpush2.bf16.xpose.msra.mxu0 0
        %553 = vmatprep.subr.bf16.mxu0 0
        %554 = vmatpush2.bf16.xpose.msra.mxu0 0
        %555 = vmatprep.mubr.bf16.mxu0 0
        %556 = vmatmul.mubr.bf16.gmra.mxu0 %v518
        %v557 = vpop.f32.mrf.mxu0
        %v558 = vadd.f32 0.0, %v557
        %v559 = vpop.f32.mrf.mxu0
        %v560 = vpop.f32.mrf.mxu0
        %v561 = vpop.f32.mrf.mxu0
        %562 = vdwg.mxu0
        %v563 = vsel %vm516, %v558, -inf
        %564 = vmax.xlane.f32.xlu0 %v563
        %v565 = vpop.xlane.xlu0 %564
        %v566 = vmax.f32 %v565, -1e+30
        %v567 = vsub.f32 -1e+30, %v566
        %v568 = vmul.f32 %v567, 1.442695
        %v569 = vpow.pop %v568
        %v570 = vsub.f32 %v558, %v566
        %v571 = vmul.f32 %v570, 1.442695
        %v572 = vpow.pop %v571
        %v573 = vmul.f32 %v569, 0.0
        %v574 = vsel %vm516, %v572, 0.0
        %575 = vadd.xlane.f32.xlu0 %v574
        %v576 = vpop.xlane.xlu0 %575
        %v577 = vadd.f32 %v573, %v576
        %v578 = vpack.c.bf16 %v572, %v572
        %v580 = vunpack.c.l.b16 %v515
        %v581 = vpack.c.b16 %v580, %v580
        %582 = vrot.lane.b32.xlu0 %v581, 96
        %v583 = vpop.permute.xlu0 %582
        %v585 = vsel %vm516, %v578, 0
        %vm587 = vcmask 1043456
        %v589 = vsel %vm587, %v583, 0
        %591 = vmatprep.subr.bf16.mxu0 0
        %592 = vmatpush1.bf16.msra.mxu0 0
        %593 = vmatprep.subr.bf16.mxu0 0
        %594 = vmatpush1.bf16.msra.mxu0 0
        %595 = vmatprep.subr.bf16.mxu0 0
        %596 = vmatpush1.bf16.msra.mxu0 0
        %597 = vmatprep.subr.bf16.mxu0 0
        %598 = vmatpush1.bf16.msra.mxu0 0
        %599 = vmatprep.subr.bf16.mxu0 0
        %600 = vmatpush1.bf16.msra.mxu0 0
        %601 = vmatprep.subr.bf16.mxu0 0
        %602 = vmatpush1.bf16.msra.mxu0 0
        %603 = vmatprep.subr.bf16.mxu0 0
        %604 = vmatpush1.bf16.msra.mxu0 0
        %605 = vmatprep.subr.bf16.mxu0 0
        %606 = vmatpush1.bf16.msra.mxu0 %v589
        %607 = vmatprep.subr.bf16.mxu0 0
        %608 = vmatpush2.bf16.msra.mxu0 0
        %609 = vmatprep.subr.bf16.mxu0 0
        %610 = vmatpush2.bf16.msra.mxu0 0
        %611 = vmatprep.subr.bf16.mxu0 0
        %612 = vmatpush2.bf16.msra.mxu0 0
        %613 = vmatprep.subr.bf16.mxu0 0
        %614 = vmatpush2.bf16.msra.mxu0 0
        %615 = vmatprep.subr.bf16.mxu0 0
        %616 = vmatpush2.bf16.msra.mxu0 0
        %617 = vmatprep.subr.bf16.mxu0 0
        %618 = vmatpush2.bf16.msra.mxu0 0
        %619 = vmatprep.subr.bf16.mxu0 0
        %620 = vmatpush2.bf16.msra.mxu0 0
        %621 = vmatprep.subr.bf16.mxu0 0
        %622 = vmatpush2.bf16.msra.mxu0 0
        %623 = vmatprep.mubr.bf16.mxu0 0
        %624 = vmatmul.mubr.bf16.gmra.mxu0 %v585
        %v625 = vpop.f32.mrf.mxu0
        %v626 = vadd.f32 0.0, %v625
        %v627 = vpop.f32.mrf.mxu0
        %v628 = vpop.f32.mrf.mxu0
        %v629 = vpop.f32.mrf.mxu0
        %630 = vdwg.mxu0
        %v631 = vadd.f32 %v573, %v626
        %v632 = vrcp.pop %v577
        %v633 = vmul.f32 %v631, %v632
        %635 = vrot.lane.b32.xlu0 %v514, 120
        %v636 = vpop.permute.xlu0 %635
        %637 = vrot.lane.b32.xlu0 %v581, 120
        %v638 = vpop.permute.xlu0 %637
        %v640 = vsel %vm516, %v636, 0
        %v643 = vsel %vm516, %v638, 0
        %645 = vmatprep.subr.bf16.mxu0 0
        %646 = vmatpush1.bf16.xpose.msra.mxu0 0
        %647 = vmatprep.subr.bf16.mxu0 0
        %648 = vmatpush1.bf16.xpose.msra.mxu0 0
        %649 = vmatprep.subr.bf16.mxu0 0
        %650 = vmatpush1.bf16.xpose.msra.mxu0 0
        %651 = vmatprep.subr.bf16.mxu0 0
        %652 = vmatpush1.bf16.xpose.msra.mxu0 0
        %653 = vmatprep.subr.bf16.mxu0 0
        %654 = vmatpush1.bf16.xpose.msra.mxu0 0
        %655 = vmatprep.subr.bf16.mxu0 0
        %656 = vmatpush1.bf16.xpose.msra.mxu0 0
        %657 = vmatprep.subr.bf16.mxu0 0
        %658 = vmatpush1.bf16.xpose.msra.mxu0 0
        %659 = vmatprep.subr.bf16.mxu0 0
        %660 = vmatpush1.bf16.xpose.msra.mxu0 %v643
        %661 = vmatprep.subr.bf16.mxu0 0
        %662 = vmatpush2.bf16.xpose.msra.mxu0 0
        %663 = vmatprep.subr.bf16.mxu0 0
        %664 = vmatpush2.bf16.xpose.msra.mxu0 0
        %665 = vmatprep.subr.bf16.mxu0 0
        %666 = vmatpush2.bf16.xpose.msra.mxu0 0
        %667 = vmatprep.subr.bf16.mxu0 0
        %668 = vmatpush2.bf16.xpose.msra.mxu0 0
        %669 = vmatprep.subr.bf16.mxu0 0
        %670 = vmatpush2.bf16.xpose.msra.mxu0 0
        %671 = vmatprep.subr.bf16.mxu0 0
        %672 = vmatpush2.bf16.xpose.msra.mxu0 0
        %673 = vmatprep.subr.bf16.mxu0 0
        %674 = vmatpush2.bf16.xpose.msra.mxu0 0
        %675 = vmatprep.subr.bf16.mxu0 0
        %676 = vmatpush2.bf16.xpose.msra.mxu0 0
        %677 = vmatprep.mubr.bf16.mxu0 0
        %678 = vmatmul.mubr.bf16.gmra.mxu0 %v640
        %v679 = vpop.f32.mrf.mxu0
        %v680 = vadd.f32 0.0, %v679
        %v681 = vpop.f32.mrf.mxu0
        %v682 = vpop.f32.mrf.mxu0
        %v683 = vpop.f32.mrf.mxu0
        %684 = vdwg.mxu0
        %v685 = vsel %vm516, %v680, -inf
        %686 = vmax.xlane.f32.xlu0 %v685
        %v687 = vpop.xlane.xlu0 %686
        %v688 = vmax.f32 %v687, -1e+30
        %v689 = vsub.f32 -1e+30, %v688
        %v690 = vmul.f32 %v689, 1.442695
        %v691 = vpow.pop %v690
        %v692 = vsub.f32 %v680, %v688
        %v693 = vmul.f32 %v692, 1.442695
        %v694 = vpow.pop %v693
        %v695 = vmul.f32 %v691, 0.0
        %v696 = vsel %vm516, %v694, 0.0
        %697 = vadd.xlane.f32.xlu0 %v696
        %v698 = vpop.xlane.xlu0 %697
        %v699 = vadd.f32 %v695, %v698
        %v700 = vpack.c.bf16 %v694, %v694
        %701 = vrot.lane.b32.xlu0 %v581, 88
        %v702 = vpop.permute.xlu0 %701
        %v704 = vsel %vm516, %v700, 0
        %v707 = vsel %vm587, %v702, 0
        %709 = vmatprep.subr.bf16.mxu0 0
        %710 = vmatpush1.bf16.msra.mxu0 0
        %711 = vmatprep.subr.bf16.mxu0 0
        %712 = vmatpush1.bf16.msra.mxu0 0
        %713 = vmatprep.subr.bf16.mxu0 0
        %714 = vmatpush1.bf16.msra.mxu0 0
        %715 = vmatprep.subr.bf16.mxu0 0
        %716 = vmatpush1.bf16.msra.mxu0 0
        %717 = vmatprep.subr.bf16.mxu0 0
        %718 = vmatpush1.bf16.msra.mxu0 0
        %719 = vmatprep.subr.bf16.mxu0 0
        %720 = vmatpush1.bf16.msra.mxu0 0
        %721 = vmatprep.subr.bf16.mxu0 0
        %722 = vmatpush1.bf16.msra.mxu0 0
        %723 = vmatprep.subr.bf16.mxu0 0
        %724 = vmatpush1.bf16.msra.mxu0 %v707
        %725 = vmatprep.subr.bf16.mxu0 0
        %726 = vmatpush2.bf16.msra.mxu0 0
        %727 = vmatprep.subr.bf16.mxu0 0
        %728 = vmatpush2.bf16.msra.mxu0 0
        %729 = vmatprep.subr.bf16.mxu0 0
        %730 = vmatpush2.bf16.msra.mxu0 0
        %731 = vmatprep.subr.bf16.mxu0 0
        %732 = vmatpush2.bf16.msra.mxu0 0
        %733 = vmatprep.subr.bf16.mxu0 0
        %734 = vmatpush2.bf16.msra.mxu0 0
        %735 = vmatprep.subr.bf16.mxu0 0
        %736 = vmatpush2.bf16.msra.mxu0 0
        %737 = vmatprep.subr.bf16.mxu0 0
        %738 = vmatpush2.bf16.msra.mxu0 0
        %739 = vmatprep.subr.bf16.mxu0 0
        %740 = vmatpush2.bf16.msra.mxu0 0
        %741 = vmatprep.mubr.bf16.mxu0 0
        %742 = vmatmul.mubr.bf16.gmra.mxu0 %v704
        %v743 = vpop.f32.mrf.mxu0
        %v744 = vadd.f32 0.0, %v743
        %v745 = vpop.f32.mrf.mxu0
        %v746 = vpop.f32.mrf.mxu0
        %v747 = vpop.f32.mrf.mxu0
        %748 = vdwg.mxu0
        %v749 = vadd.f32 %v695, %v744
        %v750 = vrcp.pop %v699
        %v751 = vmul.f32 %v749, %v750
        %752 = vrot.lane.b32.xlu0 %v514, 112
        %v753 = vpop.permute.xlu0 %752
        %754 = vrot.lane.b32.xlu0 %v581, 112
        %v755 = vpop.permute.xlu0 %754
        %v757 = vsel %vm516, %v753, 0
        %v760 = vsel %vm516, %v755, 0
        %762 = vmatprep.subr.bf16.mxu0 0
        %763 = vmatpush1.bf16.xpose.msra.mxu0 0
        %764 = vmatprep.subr.bf16.mxu0 0
        %765 = vmatpush1.bf16.xpose.msra.mxu0 0
        %766 = vmatprep.subr.bf16.mxu0 0
        %767 = vmatpush1.bf16.xpose.msra.mxu0 0
        %768 = vmatprep.subr.bf16.mxu0 0
        %769 = vmatpush1.bf16.xpose.msra.mxu0 0
        %770 = vmatprep.subr.bf16.mxu0 0
        %771 = vmatpush1.bf16.xpose.msra.mxu0 0
        %772 = vmatprep.subr.bf16.mxu0 0
        %773 = vmatpush1.bf16.xpose.msra.mxu0 0
        %774 = vmatprep.subr.bf16.mxu0 0
        %775 = vmatpush1.bf16.xpose.msra.mxu0 0
        %776 = vmatprep.subr.bf16.mxu0 0
        %777 = vmatpush1.bf16.xpose.msra.mxu0 %v760
        %778 = vmatprep.subr.bf16.mxu0 0
        %779 = vmatpush2.bf16.xpose.msra.mxu0 0
        %780 = vmatprep.subr.bf16.mxu0 0
        %781 = vmatpush2.bf16.xpose.msra.mxu0 0
        %782 = vmatprep.subr.bf16.mxu0 0
        %783 = vmatpush2.bf16.xpose.msra.mxu0 0
        %784 = vmatprep.subr.bf16.mxu0 0
        %785 = vmatpush2.bf16.xpose.msra.mxu0 0
        %786 = vmatprep.subr.bf16.mxu0 0
        %787 = vmatpush2.bf16.xpose.msra.mxu0 0
        %788 = vmatprep.subr.bf16.mxu0 0
        %789 = vmatpush2.bf16.xpose.msra.mxu0 0
        %790 = vmatprep.subr.bf16.mxu0 0
        %791 = vmatpush2.bf16.xpose.msra.mxu0 0
        %792 = vmatprep.subr.bf16.mxu0 0
        %793 = vmatpush2.bf16.xpose.msra.mxu0 0
        %794 = vmatprep.mubr.bf16.mxu0 0
        %795 = vmatmul.mubr.bf16.gmra.mxu0 %v757
        %v796 = vpop.f32.mrf.mxu0
        %v797 = vadd.f32 0.0, %v796
        %v798 = vpop.f32.mrf.mxu0
        %v799 = vpop.f32.mrf.mxu0
        %v800 = vpop.f32.mrf.mxu0
        %801 = vdwg.mxu0
        %v802 = vsel %vm516, %v797, -inf
        %803 = vmax.xlane.f32.xlu0 %v802
        %v804 = vpop.xlane.xlu0 %803
        %v805 = vmax.f32 %v804, -1e+30
        %v806 = vsub.f32 -1e+30, %v805
        %v807 = vmul.f32 %v806, 1.442695
        %v808 = vpow.pop %v807
        %v809 = vsub.f32 %v797, %v805
        %v810 = vmul.f32 %v809, 1.442695
        %v811 = vpow.pop %v810
        %v812 = vmul.f32 %v808, 0.0
        %v813 = vsel %vm516, %v811, 0.0
        %814 = vadd.xlane.f32.xlu0 %v813
        %v815 = vpop.xlane.xlu0 %814
        %v816 = vadd.f32 %v812, %v815
        %v817 = vpack.c.bf16 %v811, %v811
        %818 = vrot.lane.b32.xlu0 %v581, 80
        %v819 = vpop.permute.xlu0 %818
        %v821 = vsel %vm516, %v817, 0
        %v824 = vsel %vm587, %v819, 0
        %826 = vmatprep.subr.bf16.mxu0 0
        %827 = vmatpush1.bf16.msra.mxu0 0
        %828 = vmatprep.subr.bf16.mxu0 0
        %829 = vmatpush1.bf16.msra.mxu0 0
        %830 = vmatprep.subr.bf16.mxu0 0
        %831 = vmatpush1.bf16.msra.mxu0 0
        %832 = vmatprep.subr.bf16.mxu0 0
        %833 = vmatpush1.bf16.msra.mxu0 0
        %834 = vmatprep.subr.bf16.mxu0 0
        %835 = vmatpush1.bf16.msra.mxu0 0
        %836 = vmatprep.subr.bf16.mxu0 0
        %837 = vmatpush1.bf16.msra.mxu0 0
        %838 = vmatprep.subr.bf16.mxu0 0
        %839 = vmatpush1.bf16.msra.mxu0 0
        %840 = vmatprep.subr.bf16.mxu0 0
        %841 = vmatpush1.bf16.msra.mxu0 %v824
        %842 = vmatprep.subr.bf16.mxu0 0
        %843 = vmatpush2.bf16.msra.mxu0 0
        %844 = vmatprep.subr.bf16.mxu0 0
        %845 = vmatpush2.bf16.msra.mxu0 0
        %846 = vmatprep.subr.bf16.mxu0 0
        %847 = vmatpush2.bf16.msra.mxu0 0
        %848 = vmatprep.subr.bf16.mxu0 0
        %849 = vmatpush2.bf16.msra.mxu0 0
        %850 = vmatprep.subr.bf16.mxu0 0
        %851 = vmatpush2.bf16.msra.mxu0 0
        %852 = vmatprep.subr.bf16.mxu0 0
        %853 = vmatpush2.bf16.msra.mxu0 0
        %854 = vmatprep.subr.bf16.mxu0 0
        %855 = vmatpush2.bf16.msra.mxu0 0
        %856 = vmatprep.subr.bf16.mxu0 0
        %857 = vmatpush2.bf16.msra.mxu0 0
        %858 = vmatprep.mubr.bf16.mxu0 0
        %859 = vmatmul.mubr.bf16.gmra.mxu0 %v821
        %v860 = vpop.f32.mrf.mxu0
        %v861 = vadd.f32 0.0, %v860
        %v862 = vpop.f32.mrf.mxu0
        %v863 = vpop.f32.mrf.mxu0
        %v864 = vpop.f32.mrf.mxu0
        %865 = vdwg.mxu0
        %v866 = vadd.f32 %v812, %v861
        %v867 = vrcp.pop %v816
        %v868 = vmul.f32 %v866, %v867
        %869 = vrot.lane.b32.xlu0 %v514, 104
        %v870 = vpop.permute.xlu0 %869
        %871 = vrot.lane.b32.xlu0 %v581, 104
        %v872 = vpop.permute.xlu0 %871
        %v874 = vsel %vm516, %v870, 0
        %v877 = vsel %vm516, %v872, 0
        %879 = vmatprep.subr.bf16.mxu0 0
        %880 = vmatpush1.bf16.xpose.msra.mxu0 0
        %881 = vmatprep.subr.bf16.mxu0 0
        %882 = vmatpush1.bf16.xpose.msra.mxu0 0
        %883 = vmatprep.subr.bf16.mxu0 0
        %884 = vmatpush1.bf16.xpose.msra.mxu0 0
        %885 = vmatprep.subr.bf16.mxu0 0
        %886 = vmatpush1.bf16.xpose.msra.mxu0 0
        %887 = vmatprep.subr.bf16.mxu0 0
        %888 = vmatpush1.bf16.xpose.msra.mxu0 0
        %889 = vmatprep.subr.bf16.mxu0 0
        %890 = vmatpush1.bf16.xpose.msra.mxu0 0
        %891 = vmatprep.subr.bf16.mxu0 0
        %892 = vmatpush1.bf16.xpose.msra.mxu0 0
        %893 = vmatprep.subr.bf16.mxu0 0
        %894 = vmatpush1.bf16.xpose.msra.mxu0 %v877
        %895 = vmatprep.subr.bf16.mxu0 0
        %896 = vmatpush2.bf16.xpose.msra.mxu0 0
        %897 = vmatprep.subr.bf16.mxu0 0
        %898 = vmatpush2.bf16.xpose.msra.mxu0 0
        %899 = vmatprep.subr.bf16.mxu0 0
        %900 = vmatpush2.bf16.xpose.msra.mxu0 0
        %901 = vmatprep.subr.bf16.mxu0 0
        %902 = vmatpush2.bf16.xpose.msra.mxu0 0
        %903 = vmatprep.subr.bf16.mxu0 0
        %904 = vmatpush2.bf16.xpose.msra.mxu0 0
        %905 = vmatprep.subr.bf16.mxu0 0
        %906 = vmatpush2.bf16.xpose.msra.mxu0 0
        %907 = vmatprep.subr.bf16.mxu0 0
        %908 = vmatpush2.bf16.xpose.msra.mxu0 0
        %909 = vmatprep.subr.bf16.mxu0 0
        %910 = vmatpush2.bf16.xpose.msra.mxu0 0
        %911 = vmatprep.mubr.bf16.mxu0 0
        %912 = vmatmul.mubr.bf16.gmra.mxu0 %v874
        %v913 = vpop.f32.mrf.mxu0
        %v914 = vadd.f32 0.0, %v913
        %v915 = vpop.f32.mrf.mxu0
        %v916 = vpop.f32.mrf.mxu0
        %v917 = vpop.f32.mrf.mxu0
        %918 = vdwg.mxu0
        %v919 = vsel %vm516, %v914, -inf
        %920 = vmax.xlane.f32.xlu0 %v919
        %v921 = vpop.xlane.xlu0 %920
        %v922 = vmax.f32 %v921, -1e+30
        %v923 = vsub.f32 -1e+30, %v922
        %v924 = vmul.f32 %v923, 1.442695
        %v925 = vpow.pop %v924
        %v926 = vsub.f32 %v914, %v922
        %v927 = vmul.f32 %v926, 1.442695
        %v928 = vpow.pop %v927
        %v929 = vmul.f32 %v925, 0.0
        %v930 = vsel %vm516, %v928, 0.0
        %931 = vadd.xlane.f32.xlu0 %v930
        %v932 = vpop.xlane.xlu0 %931
        %v933 = vadd.f32 %v929, %v932
        %v934 = vpack.c.bf16 %v928, %v928
        %935 = vrot.lane.b32.xlu0 %v581, 72
        %v936 = vpop.permute.xlu0 %935
        %v938 = vsel %vm516, %v934, 0
        %v941 = vsel %vm587, %v936, 0
        %943 = vmatprep.subr.bf16.mxu0 0
        %944 = vmatpush1.bf16.msra.mxu0 0
        %945 = vmatprep.subr.bf16.mxu0 0
        %946 = vmatpush1.bf16.msra.mxu0 0
        %947 = vmatprep.subr.bf16.mxu0 0
        %948 = vmatpush1.bf16.msra.mxu0 0
        %949 = vmatprep.subr.bf16.mxu0 0
        %950 = vmatpush1.bf16.msra.mxu0 0
        %951 = vmatprep.subr.bf16.mxu0 0
        %952 = vmatpush1.bf16.msra.mxu0 0
        %953 = vmatprep.subr.bf16.mxu0 0
        %954 = vmatpush1.bf16.msra.mxu0 0
        %955 = vmatprep.subr.bf16.mxu0 0
        %956 = vmatpush1.bf16.msra.mxu0 0
        %957 = vmatprep.subr.bf16.mxu0 0
        %958 = vmatpush1.bf16.msra.mxu0 %v941
        %959 = vmatprep.subr.bf16.mxu0 0
        %960 = vmatpush2.bf16.msra.mxu0 0
        %961 = vmatprep.subr.bf16.mxu0 0
        %962 = vmatpush2.bf16.msra.mxu0 0
        %963 = vmatprep.subr.bf16.mxu0 0
        %964 = vmatpush2.bf16.msra.mxu0 0
        %965 = vmatprep.subr.bf16.mxu0 0
        %966 = vmatpush2.bf16.msra.mxu0 0
        %967 = vmatprep.subr.bf16.mxu0 0
        %968 = vmatpush2.bf16.msra.mxu0 0
        %969 = vmatprep.subr.bf16.mxu0 0
        %970 = vmatpush2.bf16.msra.mxu0 0
        %971 = vmatprep.subr.bf16.mxu0 0
        %972 = vmatpush2.bf16.msra.mxu0 0
        %973 = vmatprep.subr.bf16.mxu0 0
        %974 = vmatpush2.bf16.msra.mxu0 0
        %975 = vmatprep.mubr.bf16.mxu0 0
        %976 = vmatmul.mubr.bf16.gmra.mxu0 %v938
        %v977 = vpop.f32.mrf.mxu0
        %v978 = vadd.f32 0.0, %v977
        %v979 = vpop.f32.mrf.mxu0
        %v980 = vpop.f32.mrf.mxu0
        %v981 = vpop.f32.mrf.mxu0
        %982 = vdwg.mxu0
        %v983 = vadd.f32 %v929, %v978
        %v984 = vrcp.pop %v933
        %v985 = vmul.f32 %v983, %v984
        %987 = vrot.lane.b32.xlu0 %v751, 8
        %v988 = vpop.permute.xlu0 %987
        %991 = vrot.lane.b32.xlu0 %v868, 16
        %v992 = vpop.permute.xlu0 %991
        %995 = vrot.lane.b32.xlu0 %v985, 24
        %v996 = vpop.permute.xlu0 %995
        %v998 = vsel %vm516, %v633, %v988
        %vm999 = vcmask 130048
        %v1000 = vsel %vm999, %v998, %v992
        %vm1001 = vcmask 195584
        %v1002 = vsel %vm1001, %v1000, %v996
        %v1003 = vpack.c.bf16 %v1002, %v1002
        %v1004 = vld [vmem:[#allocation3] sm:$0xf]
        %v1005 = vld [vmem:[#allocation3 + $0x4] sm:$0xf]
        %v1006 = vld [vmem:[#allocation3 + $0x8] sm:$0xf]
        %v1007 = vld [vmem:[#allocation3 + $0xc] sm:$0xf]
        %v1012 = vunpack.c.l.b16 %v1004
        %v1013 = vunpack.c.l.b16 %v1005
        %v1014 = vunpack.c.l.b16 %v1006
        %v1015 = vunpack.c.l.b16 %v1007
        %v1016 = vpack.c.b16 %v1013, %v1012
        %v1017 = vpack.c.b16 %v1015, %v1014
        %v1021 = vsel %vm437, %v1003, 0
        %1023 = vmatprep.subr.bf16.mxu0 0
        %1024 = vmatpush1.bf16.msra.mxu0 0
        %1025 = vmatprep.subr.bf16.mxu0 0
        %1026 = vmatpush1.bf16.msra.mxu0 0
        %1027 = vmatprep.subr.bf16.mxu0 0
        %1028 = vmatpush1.bf16.msra.mxu0 0
        %1029 = vmatprep.subr.bf16.mxu0 0
        %1030 = vmatpush1.bf16.msra.mxu0 0
        %1031 = vmatprep.subr.bf16.mxu0 0
        %1032 = vmatpush1.bf16.msra.mxu0 0
        %1033 = vmatprep.subr.bf16.mxu0 0
        %1034 = vmatpush1.bf16.msra.mxu0 0
        %1035 = vmatprep.subr.bf16.mxu0 0
        %1036 = vmatpush1.bf16.msra.mxu0 %v1017
        %1037 = vmatprep.subr.bf16.mxu0 0
        %1038 = vmatpush1.bf16.msra.mxu0 %v1016
        %1039 = vmatprep.subr.bf16.mxu0 0
        %1040 = vmatpush2.bf16.msra.mxu0 0
        %1041 = vmatprep.subr.bf16.mxu0 0
        %1042 = vmatpush2.bf16.msra.mxu0 0
        %1043 = vmatprep.subr.bf16.mxu0 0
        %1044 = vmatpush2.bf16.msra.mxu0 0
        %1045 = vmatprep.subr.bf16.mxu0 0
        %1046 = vmatpush2.bf16.msra.mxu0 0
        %1047 = vmatprep.subr.bf16.mxu0 0
        %1048 = vmatpush2.bf16.msra.mxu0 0
        %1049 = vmatprep.subr.bf16.mxu0 0
        %1050 = vmatpush2.bf16.msra.mxu0 0
        %1051 = vmatprep.subr.bf16.mxu0 0
        %1052 = vmatpush2.bf16.msra.mxu0 0
        %1053 = vmatprep.subr.bf16.mxu0 0
        %1054 = vmatpush2.bf16.msra.mxu0 0
        %1055 = vmatprep.mubr.bf16.mxu0 0
        %1056 = vmatmul.mubr.bf16.gmra.mxu0 %v1021
        %v1057 = vpop.f32.mrf.mxu0
        %v1058 = vadd.f32 0.0, %v1057
        %v1059 = vpop.f32.mrf.mxu0
        %v1060 = vpop.f32.mrf.mxu0
        %v1061 = vpop.f32.mrf.mxu0
        %1062 = vdwg.mxu0
        %v1063 = vadd.f32 %v435, %v1058
        %v1064 = vmul.f32 %v1063, %v1063
        %v1065 = vsel %vm437, %v1064, 0.0
        %1066 = vadd.xlane.f32.xlu0 %v1065
        %v1067 = vpop.xlane.xlu0 %1066
        %v1068 = vmul.f32 %v1067, %v441
        %v1069 = vadd.f32 %v1068, 1e-06
        %v1070 = vrsqrt.pop %v1069
        %v1071 = vmul.f32 %v1063, %v1070
        %v1073 = vlaneseq
        %v1074 = vshrl.u32 %v1073, 7
        %v1075 = vsub.s32 0, %v1074
        %v1076 = vrot.slane %v347, %v1075
        %v1078 = vmul.f32 %v1071, %v1076
        %v1079 = vpack.c.bf16 %v1078, %v1078
        %v1080 = vld [vmem:[#allocation6] sm:$0xf]
        %v1081 = vld [vmem:[#allocation6 + $0x4] sm:$0xf]
        %v1082 = vld [vmem:[#allocation6 + $0x8] sm:$0xf]
        %v1083 = vld [vmem:[#allocation6 + $0xc] sm:$0xf]
        %v1088 = vunpack.c.l.b16 %v1080
        %v1089 = vunpack.c.l.b16 %v1081
        %v1090 = vunpack.c.l.b16 %v1082
        %v1091 = vunpack.c.l.b16 %v1083
        %v1092 = vpack.c.b16 %v1089, %v1088
        %v1093 = vpack.c.b16 %v1091, %v1090
        %v1097 = vsel %vm437, %v1079, 0
        %1099 = vmatprep.subr.bf16.mxu0 0
        %1100 = vmatpush1.bf16.msra.mxu0 0
        %1101 = vmatprep.subr.bf16.mxu0 0
        %1102 = vmatpush1.bf16.msra.mxu0 0
        %1103 = vmatprep.subr.bf16.mxu0 0
        %1104 = vmatpush1.bf16.msra.mxu0 0
        %1105 = vmatprep.subr.bf16.mxu0 0
        %1106 = vmatpush1.bf16.msra.mxu0 0
        %1107 = vmatprep.subr.bf16.mxu0 0
        %1108 = vmatpush1.bf16.msra.mxu0 0
        %1109 = vmatprep.subr.bf16.mxu0 0
        %1110 = vmatpush1.bf16.msra.mxu0 0
        %1111 = vmatprep.subr.bf16.mxu0 0
        %1112 = vmatpush1.bf16.msra.mxu0 %v1093
        %1113 = vmatprep.subr.bf16.mxu0 0
        %1114 = vmatpush1.bf16.msra.mxu0 %v1092
        %1115 = vmatprep.subr.bf16.mxu0 0
        %1116 = vmatpush2.bf16.msra.mxu0 0
        %1117 = vmatprep.subr.bf16.mxu0 0
        %1118 = vmatpush2.bf16.msra.mxu0 0
        %1119 = vmatprep.subr.bf16.mxu0 0
        %1120 = vmatpush2.bf16.msra.mxu0 0
        %1121 = vmatprep.subr.bf16.mxu0 0
        %1122 = vmatpush2.bf16.msra.mxu0 0
        %1123 = vmatprep.subr.bf16.mxu0 0
        %1124 = vmatpush2.bf16.msra.mxu0 0
        %1125 = vmatprep.subr.bf16.mxu0 0
        %1126 = vmatpush2.bf16.msra.mxu0 0
        %1127 = vmatprep.subr.bf16.mxu0 0
        %1128 = vmatpush2.bf16.msra.mxu0 0
        %1129 = vmatprep.subr.bf16.mxu0 0
        %1130 = vmatpush2.bf16.msra.mxu0 0
        %1131 = vmatprep.mubr.bf16.mxu0 0
        %1132 = vmatmul.mubr.bf16.gmra.mxu0 %v1097
        %v1133 = vpop.f32.mrf.mxu0
        %v1134 = vadd.f32 0.0, %v1133
        %v1135 = vpop.f32.mrf.mxu0
        %v1136 = vpop.f32.mrf.mxu0
        %v1137 = vpop.f32.mrf.mxu0
        %1138 = vdwg.mxu0
        %v1139 = vxor.u32 %v1134, 2147483648
        %v1140 = vmul.f32 %v1139, 1.442695
        %v1141 = vpow.pop %v1140
        %v1142 = vadd.f32 %v1141, 1.0
        %v1143 = vrcp.pop %v1142
        %v1144 = vmul.f32 1.0, %v1143
        %v1145 = vmul.f32 %v1134, %v1144
        %1147 = vrot.lane.b32.xlu0 %v1134, 64
        %v1148 = vpop.permute.xlu0 %1147
        %v1150 = vmul.f32 %v1145, %v1148
        %v1151 = vpack.c.bf16 %v1150, %v1150
        %v1152 = vld [vmem:[%s7] sm:$0xf]
        %v1153 = vld [vmem:[%s7 + $0x4] sm:$0xf]
        %v1154 = vld [vmem:[%s7 + $0x8] sm:$0xf]
        %v1155 = vld [vmem:[%s7 + $0xc] sm:$0xf]
        %v1156 = vld [vmem:[%s7 + $0x10] sm:$0xf]
        %v1157 = vld [vmem:[%s7 + $0x14] sm:$0xf]
        %v1158 = vld [vmem:[%s7 + $0x18] sm:$0xf]
        %v1159 = vld [vmem:[%s7 + $0x1c] sm:$0xf]
        %v1168 = vunpack.c.l.b16 %v1152
        %v1169 = vunpack.c.l.b16 %v1153
        %v1170 = vunpack.c.l.b16 %v1154
        %v1171 = vunpack.c.l.b16 %v1155
        %v1172 = vunpack.c.l.b16 %v1156
        %v1173 = vunpack.c.l.b16 %v1157
        %v1174 = vunpack.c.l.b16 %v1158
        %v1175 = vunpack.c.l.b16 %v1159
        %v1176 = vpack.c.b16 %v1169, %v1168
        %v1177 = vpack.c.b16 %v1171, %v1170
        %v1178 = vpack.c.b16 %v1173, %v1172
        %v1179 = vpack.c.b16 %v1175, %v1174
        %vm1184 = vcmask 523264
        %v1186 = vsel %vm1184, %v1151, 0
        %1188 = vmatprep.subr.bf16.mxu0 0
        %1189 = vmatpush1.bf16.msra.mxu0 0
        %1190 = vmatprep.subr.bf16.mxu0 0
        %1191 = vmatpush1.bf16.msra.mxu0 0
        %1192 = vmatprep.subr.bf16.mxu0 0
        %1193 = vmatpush1.bf16.msra.mxu0 0
        %1194 = vmatprep.subr.bf16.mxu0 0
        %1195 = vmatpush1.bf16.msra.mxu0 0
        %1196 = vmatprep.subr.bf16.mxu0 0
        %1197 = vmatpush1.bf16.msra.mxu0 %v1179
        %1198 = vmatprep.subr.bf16.mxu0 0
        %1199 = vmatpush1.bf16.msra.mxu0 %v1178
        %1200 = vmatprep.subr.bf16.mxu0 0
        %1201 = vmatpush1.bf16.msra.mxu0 %v1177
        %1202 = vmatprep.subr.bf16.mxu0 0
        %1203 = vmatpush1.bf16.msra.mxu0 %v1176
        %1204 = vmatprep.subr.bf16.mxu0 0
        %1205 = vmatpush2.bf16.msra.mxu0 0
        %1206 = vmatprep.subr.bf16.mxu0 0
        %1207 = vmatpush2.bf16.msra.mxu0 0
        %1208 = vmatprep.subr.bf16.mxu0 0
        %1209 = vmatpush2.bf16.msra.mxu0 0
        %1210 = vmatprep.subr.bf16.mxu0 0
        %1211 = vmatpush2.bf16.msra.mxu0 0
        %1212 = vmatprep.subr.bf16.mxu0 0
        %1213 = vmatpush2.bf16.msra.mxu0 0
        %1214 = vmatprep.subr.bf16.mxu0 0
        %1215 = vmatpush2.bf16.msra.mxu0 0
        %1216 = vmatprep.subr.bf16.mxu0 0
        %1217 = vmatpush2.bf16.msra.mxu0 0
        %1218 = vmatprep.subr.bf16.mxu0 0
        %1219 = vmatpush2.bf16.msra.mxu0 0
        %1220 = vmatprep.mubr.bf16.mxu0 0
        %1221 = vmatmul.mubr.bf16.gmra.mxu0 %v1186
        %v1222 = vpop.f32.mrf.mxu0
        %v1223 = vadd.f32 0.0, %v1222
        %v1224 = vpop.f32.mrf.mxu0
        %v1225 = vpop.f32.mrf.mxu0
        %v1226 = vpop.f32.mrf.mxu0
        %1227 = vdwg.mxu0
        %v1228 = vadd.f32 %v1063, %v1223
        %1229 = vst.msk [vmem:[%s340] sm:$0xff] %vm437, %v1228
        %s1230 = sand.u32 %s219, 1
        %s1231 = scalar_lea.sflag [#allocation5], %s1230
        %s1232 = sand.u32 %s219, 1
        %s1233 = smul.addr %s1232, 8
        %s1234 = scalar_lea.vmem [#allocation8], %s1233
        // Predicated region
        $region65: #{tpu_custom_call.1} parent=51 // pred_check
          %p1235 = pneg %p229
        $region66: #{tpu_custom_call.1} parent=51 // pred_check_branch
          %1237 = sbr.rel (%p1235) target = $region68
        $region67: #{tpu_custom_call.1} parent=51 // pred_region
          %s1239 = ssub.s32 128, 128
          %1240 = vsyncadd %s1231, %s1239
          %s1241 = sadd.s32 %s29, %s28
          %s1242 = smul.addr %s1241, 128
          %s1243 = scalar_lea.hbm %s8, %s1242
          %s1245 = sshll.u32 %s1234, 4
          %s1246 = int_to_ptr.vmem [resolvable:$true] %s1245
          %1248 = dma.vmem_to_hbm [thread:$0]  %s1246, 128, %s1243, %s1231
        $region68: #{tpu_custom_call.1} parent=51 // pred_fallthru
          _
      $region52: #{tpu_custom_call.1} parent=5 // pred_fallthru
        _
      %p1249 = scmp.le.s32.totalorder 2, %s19
      // Predicated region
      $region69: #{tpu_custom_call.1} parent=5 // pred_check
        %p1250 = pneg %p1249
      $region70: #{tpu_custom_call.1} parent=5 // pred_check_branch
        %1252 = sbr.rel (%p1250) target = $region72
      $region71: #{tpu_custom_call.1} parent=5 // pred_region
        %s1253 = ssub.s32 %s19, 2
        // Predicated region
        $region73: #{tpu_custom_call.1} parent=71 // pred_check
          %p1254 = pneg %p235
        $region74: #{tpu_custom_call.1} parent=71 // pred_check_branch
          %1256 = sbr.rel (%p1254) target = $region76
        $region75: #{tpu_custom_call.1} parent=71 // pred_region
          %s1257 = sand.u32 %s220, 1
          %s1258 = scalar_lea.sflag [#allocation5], %s1257
          %s1259 = sand.u32 %s220, 1
          %s1260 = smul.addr %s1259, 8
          %s1261 = scalar_lea.vmem [#allocation8], %s1260
          %1262 = dma.done %s1258, 128
        $region76: #{tpu_custom_call.1} parent=71 // pred_fallthru
          _
      $region72: #{tpu_custom_call.1} parent=5 // pred_fallthru
        _
    $region6: #{tpu_custom_call.1} parent=1 // loop_footer
      %s23 = sadd.s32 1, %s19
    $region7: #{tpu_custom_call.1} parent=1 // loop_footer_branch
      %18 = sbr.rel target = $region3
    $region8: #{tpu_custom_call.1} parent=1 // loop_exit
      _
    %1263 = vsyncpa [#allocation4], 1
    %s1264 = scalar_lea.sflag [#allocation4], 1
    %1265 = vsyncpa %s1264, 1
    %1266 = vsyncpa [#allocation7], 1
    %1267 = vsyncpa [#allocation5], 1
    %s1268 = scalar_lea.sflag [#allocation5], 1
    %1269 = vsyncpa %s1268, 1

</llo_original>
